<compile_context>
chip_gen: v7x
topology: tpu7x:2x2x1
jax: 0.10.0
libtpu: 0.0.40
codegen_flags: <defaults>
</compile_context>

<pallas_src>
import functools

import jax
import jax.numpy as jnp
import numpy as np
from jax import lax
from jax.experimental import pallas as pl
from jax.experimental.pallas import tpu as pltpu


def _round_up(x, m):
    return ((x + m - 1) // m) * m


def _layernorm(x, gamma, beta, eps=1e-5):
    mu = jnp.mean(x, axis=-1, keepdims=True)
    var = jnp.mean((x - mu) ** 2, axis=-1, keepdims=True)
    return (x - mu) * jax.lax.rsqrt(var + eps) * gamma + beta


# ----------------------------- kernel ---------------------------------------


def poserac_kernel(num_heads, num_layers, dim, dh,
                   x_ref,
                   wqkv_ref, bqkv_ref, wo_ref, bo_ref,
                   g1_ref, be1_ref, w1_ref, bf1_ref, w2_ref, bf2_ref,
                   g2_ref, be2_ref,
                   wfc_ref, bfc_ref,
                   out_ref,
                   h_scr, qkv_scr, ctx_scr):
    """One TransformerEncoderLayer per grid step (post-norm, relu, eval-mode
    dropout = identity).  The (N, D) activation is carried across grid steps in
    h_scr; per-layer weights are streamed by the BlockSpec pipeline; the final
    Linear classifier runs at the last grid step."""
    layer = pl.program_id(0)

    @pl.when(layer == 0)
    def _():
        h_scr[...] = x_ref[...]

    h = h_scr[...]                       # (N, D) f32, VMEM-resident
    xb = h.astype(jnp.bfloat16)          # bf16 only at MXU inputs

    # ---- fused QKV projection: one lane-dense matmul, columns [Q | K | V | pad]
    qkv_scr[...] = (jnp.dot(xb, wqkv_ref[...],
                            preferred_element_type=jnp.float32) + bqkv_ref[...])

    # ---- per-head attention; head contexts packed back into adjacent lanes ----
    for hd in range(num_heads):
        lo = hd * dh
        qh = qkv_scr[:, lo:lo + dh]                          # (N, dh), scale folded
        kh = qkv_scr[:, dim + lo:dim + lo + dh]
        vh = qkv_scr[:, 2 * dim + lo:2 * dim + lo + dh]
        # contract last dims of Q and K directly (no explicit transpose)
        s = lax.dot_general(qh, kh, (((1,), (1,)), ((), ())),
                            preferred_element_type=jnp.float32)  # (N, N)
        s = s - jnp.max(s, axis=-1, keepdims=True)
        p = jnp.exp(s)
        p = p * pl.reciprocal(jnp.sum(p, axis=-1, keepdims=True), approx=True)
        ctx_scr[:, lo:lo + dh] = jnp.dot(p, vh, preferred_element_type=jnp.float32)

    # ---- fused output projection: one (N, D) @ (D, D) matmul ----
    attn = jnp.dot(ctx_scr[...].astype(jnp.bfloat16), wo_ref[...],
                   preferred_element_type=jnp.float32) + bo_ref[...]

    # residual + LayerNorm1 (dropout is identity in eval mode)
    h1 = _layernorm(h + attn, g1_ref[...], be1_ref[...])

    # ---- feed-forward: linear -> relu -> linear ----
    f = jnp.dot(h1.astype(jnp.bfloat16), w1_ref[...],
                preferred_element_type=jnp.float32) + bf1_ref[...]
    f = jnp.maximum(f, 0.0)
    f = jnp.dot(f.astype(jnp.bfloat16), w2_ref[...],
                preferred_element_type=jnp.float32) + bf2_ref[...]

    # residual + LayerNorm2; carry to next grid step
    h_new = _layernorm(h1 + f, g2_ref[...], be2_ref[...])
    h_scr[...] = h_new

    # ---- final classifier at the last layer, lane-padded (N, pad_c) output ----
    @pl.when(layer == num_layers - 1)
    def _():
        out_ref[...] = (jnp.dot(h_new.astype(jnp.bfloat16), wfc_ref[...],
                                preferred_element_type=jnp.float32) + bfc_ref[...])


# ----------------------------- module ---------------------------------------


class PoseRACPallas:
    """Inference-only PoseRAC: TransformerEncoder(enc_layer) + Linear(dim, C)."""

    def __init__(self, dim, heads, enc_layer, num_classes, alpha,
                 dim_feedforward=2048, key=None):
        assert dim % heads == 0 and enc_layer >= 1
        self.dim = dim
        self.heads = heads
        self.enc_layer = enc_layer
        self.num_classes = num_classes
        self.alpha = alpha            # only used by the (untranslated) training path
        self.dff = dim_feedforward
        self.dh = dim // heads
        self.pad_c = _round_up(num_classes, 128)    # lane-dense classifier output
        self.pad_qkv = _round_up(3 * dim, 128)      # lane-dense fused QKV weight
        if key is None:
            key = jax.random.PRNGKey(0)

        scale = 1.0 / float(np.sqrt(self.dh))

        def w(k, shape, s=0.02):
            return (s * jax.random.normal(k, shape)).astype(jnp.float32)

        wqkv_l, bqkv_l, wo_l, bo_l = [], [], [], []
        g1_l, be1_l, w1_l, bf1_l, w2_l, bf2_l, g2_l, be2_l = ([] for _ in range(8))

        for _ in range(enc_layer):
            key, *ks = jax.random.split(key, 7)
            wq = w(ks[0], (dim, dim)) * scale          # 1/sqrt(dh) folded into Wq
            wk = w(ks[1], (dim, dim))
            wv = w(ks[2], (dim, dim))
            wo = w(ks[3], (dim, dim))
            bq = jnp.zeros((1, dim), jnp.float32) * scale
            bk = jnp.zeros((1, dim), jnp.float32)
            bv = jnp.zeros((1, dim), jnp.float32)
            bo = jnp.zeros((1, dim), jnp.float32)
            w1 = w(ks[4], (dim, dim_feedforward))
            w2 = w(ks[5], (dim_feedforward, dim))

            # fused QKV weight/bias, zero-padded to a lane-dense 128-wide block
            wqkv = jnp.zeros((dim, self.pad_qkv), jnp.float32)
            wqkv = wqkv.at[:, :3 * dim].set(jnp.concatenate([wq, wk, wv], axis=1))
            bqkv = jnp.zeros((1, self.pad_qkv), jnp.float32)
            bqkv = bqkv.at[:, :3 * dim].set(jnp.concatenate([bq, bk, bv], axis=1))

            wqkv_l.append(wqkv); bqkv_l.append(bqkv)
            wo_l.append(wo); bo_l.append(bo)
            g1_l.append(jnp.ones((1, dim), jnp.float32))
            be1_l.append(jnp.zeros((1, dim), jnp.float32))
            w1_l.append(w1)
            bf1_l.append(jnp.zeros((1, dim_feedforward), jnp.float32))
            w2_l.append(w2)
            bf2_l.append(jnp.zeros((1, dim), jnp.float32))
            g2_l.append(jnp.ones((1, dim), jnp.float32))
            be2_l.append(jnp.zeros((1, dim), jnp.float32))

        # Layer-stacked parameters (leading axis = layer), streamed per grid step.
        # Matmul weights bf16 (MXU-native, half the DMA); VPU-side math stays f32.
        self.wqkv = jnp.stack(wqkv_l).astype(jnp.bfloat16)     # (L, D, pad_qkv)
        self.bqkv = jnp.stack(bqkv_l)                          # (L, 1, pad_qkv) f32
        self.wo = jnp.stack(wo_l).astype(jnp.bfloat16)         # (L, D, D)
        self.bo = jnp.stack(bo_l)                              # (L, 1, D) f32
        self.g1 = jnp.stack(g1_l); self.be1 = jnp.stack(be1_l)
        self.w1 = jnp.stack(w1_l).astype(jnp.bfloat16)         # (L, D, Dff)
        self.bf1 = jnp.stack(bf1_l)
        self.w2 = jnp.stack(w2_l).astype(jnp.bfloat16)         # (L, Dff, D)
        self.bf2 = jnp.stack(bf2_l)
        self.g2 = jnp.stack(g2_l); self.be2 = jnp.stack(be2_l)

        key, kfc = jax.random.split(key)
        wfc = w(kfc, (dim, num_classes))
        self.wfc = (jnp.zeros((dim, self.pad_c), jnp.float32)
                    .at[:, :num_classes].set(wfc).astype(jnp.bfloat16))
        self.bfc = jnp.zeros((1, self.pad_c), jnp.float32)

    # TODO(synk): training path (MultiSimilarityMiner / Triplet / Circle /
    # Contrastive / BCE losses) has no Pallas equivalent here; only the
    # y=None inference branch of forward() is implemented.
    def __call__(self, x):
        n = x.size // self.dim                   # x.view(-1, 1, dim) -> N tokens
        emb = x.reshape(n, self.dim).astype(jnp.float32)
        dim, dff = self.dim, self.dff

        def layer_spec(*tail):                   # per-layer streamed weight block
            nd = len(tail)
            return pl.BlockSpec((None,) + tuple(tail), lambda l: (l,) + (0,) * nd)

        def fixed_spec(*shape):                  # resident across all grid steps
            nd = len(shape)
            return pl.BlockSpec(tuple(shape), lambda l: (0,) * nd)

        in_specs = [
            fixed_spec(n, dim),                  # x
            layer_spec(dim, self.pad_qkv),       # wqkv
            layer_spec(1, self.pad_qkv),         # bqkv
            layer_spec(dim, dim),                # wo
            layer_spec(1, dim),                  # bo
            layer_spec(1, dim),                  # ln1 gamma
            layer_spec(1, dim),                  # ln1 beta
            layer_spec(dim, dff),                # ffn w1
            layer_spec(1, dff),                  # ffn b1
            layer_spec(dff, dim),                # ffn w2
            layer_spec(1, dim),                  # ffn b2
            layer_spec(1, dim),                  # ln2 gamma
            layer_spec(1, dim),                  # ln2 beta
            fixed_spec(dim, self.pad_c),         # classifier weight
            fixed_spec(1, self.pad_c),           # classifier bias
        ]

        params = (self.wqkv, self.bqkv, self.wo, self.bo,
                  self.g1, self.be1, self.w1, self.bf1,
                  self.w2, self.bf2, self.g2, self.be2,
                  self.wfc, self.bfc)

        # Explicit VMEM budget: generous upper bound on the double-buffered
        # weight working set + headroom for activations / scratch (v7x cap 64 MiB).
        weight_bytes = sum(int(p.size) * p.dtype.itemsize for p in params)
        vmem_limit = int(min(2 * weight_bytes + (8 << 20), 32 << 20))

        y_pad = pl.pallas_call(
            functools.partial(poserac_kernel, self.heads, self.enc_layer,
                              dim, self.dh),
            out_shape=jax.ShapeDtypeStruct((n, self.pad_c), jnp.float32),
            grid_spec=pltpu.PrefetchScalarGridSpec(
                num_scalar_prefetch=0,
                grid=(self.enc_layer,),
                in_specs=in_specs,
                out_specs=fixed_spec(n, self.pad_c),
                scratch_shapes=[
                    pltpu.VMEM((n, dim), jnp.float32),            # carried activation
                    pltpu.VMEM((n, self.pad_qkv), jnp.float32),   # fused QKV
                    pltpu.VMEM((n, dim), jnp.float32),            # packed head ctx
                ],
            ),
            compiler_params=pltpu.CompilerParams(
                dimension_semantics=("arbitrary",),
                vmem_limit_bytes=vmem_limit,
            ),
        )(emb, *params)
        return y_pad[:, :self.num_classes]

    # pure-JAX reference (same math, same bf16 weight quantization, no Pallas)
    def reference(self, x):
        n = x.size // self.dim
        h = x.reshape(n, self.dim).astype(jnp.float32)
        for l in range(self.enc_layer):
            xb = h.astype(jnp.bfloat16)
            qkv = (jnp.dot(xb, self.wqkv[l], preferred_element_type=jnp.float32)
                   + self.bqkv[l])
            ctx = []
            for hd in range(self.heads):
                lo = hd * self.dh
                qh = qkv[:, lo:lo + self.dh]
                kh = qkv[:, self.dim + lo:self.dim + lo + self.dh]
                vh = qkv[:, 2 * self.dim + lo:2 * self.dim + lo + self.dh]
                p = jax.nn.softmax(qh @ kh.T, axis=-1)
                ctx.append(p @ vh)
            ctx = jnp.concatenate(ctx, axis=-1)
            attn = (jnp.dot(ctx.astype(jnp.bfloat16), self.wo[l],
                            preferred_element_type=jnp.float32) + self.bo[l])
            h1 = _layernorm(h + attn, self.g1[l], self.be1[l])
            f = jnp.maximum(jnp.dot(h1.astype(jnp.bfloat16), self.w1[l],
                                    preferred_element_type=jnp.float32)
                            + self.bf1[l], 0.0)
            f = (jnp.dot(f.astype(jnp.bfloat16), self.w2[l],
                         preferred_element_type=jnp.float32) + self.bf2[l])
            h = _layernorm(h1 + f, self.g2[l], self.be2[l])
        y = (jnp.dot(h.astype(jnp.bfloat16), self.wfc,
                     preferred_element_type=jnp.float32) + self.bfc)
        return y[:, :self.num_classes]


# ----------------------------- main ------------------------------------------

if __name__ == "__main__":
    dim, heads, enc_layer, num_classes, alpha = 32, 4, 2, 5, 0.5

    key = jax.random.PRNGKey(0)
    kx, kp = jax.random.split(key)
    # x is (2, 4, 32); forward flattens it to N=8 tokens of width dim=32.
    x = jax.random.normal(kx, (2, 4, dim), dtype=jnp.float32)

    model = PoseRACPallas(dim, heads, enc_layer, num_classes, alpha, key=kp)

    y_hat = jax.block_until_ready(model(x))
    y_ref = jax.block_until_ready(model.reference(x))

    assert y_hat.shape == (8, num_classes)
    np.testing.assert_allclose(np.asarray(y_hat), np.asarray(y_ref),
                               rtol=2e-2, atol=2e-3)

    print("KERNEL_OK")
</pallas_src>

<mosaic_0001>
module attributes {stable_mosaic.version = 11 : i64} {
  func.func @poserac_kernel(%arg0: i32, %arg1: memref<8x32xf32, #tpu.memory_space<vmem>>, %arg2: memref<1x32x128xbf16, #tpu.memory_space<vmem>>, %arg3: memref<1x1x128xf32, #tpu.memory_space<vmem>>, %arg4: memref<1x32x32xbf16, #tpu.memory_space<vmem>>, %arg5: memref<1x1x32xf32, #tpu.memory_space<vmem>>, %arg6: memref<1x1x32xf32, #tpu.memory_space<vmem>>, %arg7: memref<1x1x32xf32, #tpu.memory_space<vmem>>, %arg8: memref<1x32x2048xbf16, #tpu.memory_space<vmem>>, %arg9: memref<1x1x2048xf32, #tpu.memory_space<vmem>>, %arg10: memref<1x2048x32xbf16, #tpu.memory_space<vmem>>, %arg11: memref<1x1x32xf32, #tpu.memory_space<vmem>>, %arg12: memref<1x1x32xf32, #tpu.memory_space<vmem>>, %arg13: memref<1x1x32xf32, #tpu.memory_space<vmem>>, %arg14: memref<32x128xbf16, #tpu.memory_space<vmem>>, %arg15: memref<1x128xf32, #tpu.memory_space<vmem>>, %arg16: memref<8x128xf32, #tpu.memory_space<vmem>>, %arg17: memref<8x32xf32, #tpu.memory_space<vmem>>, %arg18: memref<8x128xf32, #tpu.memory_space<vmem>>, %arg19: memref<8x32xf32, #tpu.memory_space<vmem>>) attributes {dimension_semantics = [#tpu.dimension_semantics<arbitrary>], iteration_bounds = array<i64: 2>, scalar_prefetch = 0 : i64, scratch_operands = 3 : i64, tpu.core_type = #tpu.core_type<tc>, window_params = [{pipeline_mode = #tpu.pipeline_mode<synchronous>, transform_indices = @transform_0, window_bounds = array<i64: 8, 32>}, {transform_indices = @transform_1, window_bounds = array<i64: 1, 32, 128>}, {transform_indices = @transform_2, window_bounds = array<i64: 1, 1, 128>}, {transform_indices = @transform_3, window_bounds = array<i64: 1, 32, 32>}, {transform_indices = @transform_4, window_bounds = array<i64: 1, 1, 32>}, {transform_indices = @transform_5, window_bounds = array<i64: 1, 1, 32>}, {transform_indices = @transform_6, window_bounds = array<i64: 1, 1, 32>}, {transform_indices = @transform_7, window_bounds = array<i64: 1, 32, 2048>}, {transform_indices = @transform_8, window_bounds = array<i64: 1, 1, 2048>}, {transform_indices = @transform_9, window_bounds = array<i64: 1, 2048, 32>}, {transform_indices = @transform_10, window_bounds = array<i64: 1, 1, 32>}, {transform_indices = @transform_11, window_bounds = array<i64: 1, 1, 32>}, {transform_indices = @transform_12, window_bounds = array<i64: 1, 1, 32>}, {pipeline_mode = #tpu.pipeline_mode<synchronous>, transform_indices = @transform_13, window_bounds = array<i64: 32, 128>}, {pipeline_mode = #tpu.pipeline_mode<synchronous>, transform_indices = @transform_14, window_bounds = array<i64: 1, 128>}, {pipeline_mode = #tpu.pipeline_mode<synchronous>, transform_indices = @transform_15, window_bounds = array<i64: 8, 128>}]} {
    %c0_i32 = arith.constant 0 : i32
    %0 = arith.cmpi eq, %arg0, %c0_i32 : i32
    %1 = arith.extui %0 : i1 to i32
    %c0_i32_0 = arith.constant 0 : i32
    %2 = arith.cmpi ne, %1, %c0_i32_0 : i32
    scf.if %2 {
      %c0_96 = arith.constant 0 : index
      %c0_97 = arith.constant 0 : index
      %162 = vector.load %arg1[%c0_96, %c0_97] : memref<8x32xf32, #tpu.memory_space<vmem>>, vector<8x32xf32>
      %c0_98 = arith.constant 0 : index
      %c0_99 = arith.constant 0 : index
      %163 = vector.load %arg17[%c0_98, %c0_99] : memref<8x32xf32, #tpu.memory_space<vmem>>, vector<8x32xf32>
      tpu.vector_store %arg17[%c0_98, %c0_99], %162 {strides = array<i32>} : memref<8x32xf32, #tpu.memory_space<vmem>>, vector<8x32xf32>,
    } else {
    }
    %c0 = arith.constant 0 : index
    %c0_1 = arith.constant 0 : index
    %3 = vector.load %arg17[%c0, %c0_1] : memref<8x32xf32, #tpu.memory_space<vmem>>, vector<8x32xf32>
    %4 = arith.truncf %3 : vector<8x32xf32> to vector<8x32xbf16>
    %c0_2 = arith.constant 0 : index
    %c0_3 = arith.constant 0 : index
    %c0_4 = arith.constant 0 : index
    %5 = vector.load %arg2[%c0_2, %c0_3, %c0_4] : memref<1x32x128xbf16, #tpu.memory_space<vmem>>, vector<1x32x128xbf16>
    %6 = vector.shape_cast %5 : vector<1x32x128xbf16> to vector<32x128xbf16>
    %cst = arith.constant dense<0.000000e+00> : vector<8x128xf32>
    %7 = tpu.matmul %4, %6, %cst {dimension_numbers = #tpu.dot_dimension_numbers<[1], [0], [0], [1], [0, 0, 1, 1], [], []>} : vector<8x32xbf16>, vector<32x128xbf16>, vector<8x128xf32> -> vector<8x128xf32>
    %c0_5 = arith.constant 0 : index
    %c0_6 = arith.constant 0 : index
    %c0_7 = arith.constant 0 : index
    %8 = vector.load %arg3[%c0_5, %c0_6, %c0_7] : memref<1x1x128xf32, #tpu.memory_space<vmem>>, vector<1x1x128xf32>
    %9 = vector.shape_cast %8 : vector<1x1x128xf32> to vector<1x128xf32>
    %10 = vector.broadcast %9 : vector<1x128xf32> to vector<8x128xf32>
    %11 = arith.addf %7, %10 : vector<8x128xf32>
    %c0_8 = arith.constant 0 : index
    %c0_9 = arith.constant 0 : index
    %12 = vector.load %arg18[%c0_8, %c0_9] : memref<8x128xf32, #tpu.memory_space<vmem>>, vector<8x128xf32>
    tpu.vector_store %arg18[%c0_8, %c0_9], %11 {strides = array<i32>} : memref<8x128xf32, #tpu.memory_space<vmem>>, vector<8x128xf32>,
    %c0_10 = arith.constant 0 : index
    %c0_11 = arith.constant 0 : index
    %13 = vector.load %arg18[%c0_10, %c0_11] : memref<8x128xf32, #tpu.memory_space<vmem>>, vector<8x8xf32>
    %c0_12 = arith.constant 0 : index
    %c32 = arith.constant 32 : index
    %14 = vector.load %arg18[%c0_12, %c32] : memref<8x128xf32, #tpu.memory_space<vmem>>, vector<8x8xf32>
    %c0_13 = arith.constant 0 : index
    %c64 = arith.constant 64 : index
    %15 = vector.load %arg18[%c0_13, %c64] : memref<8x128xf32, #tpu.memory_space<vmem>>, vector<8x8xf32>
    %cst_14 = arith.constant dense<0.000000e+00> : vector<8x8xf32>
    %16 = tpu.matmul %13, %14, %cst_14 {dimension_numbers = #tpu.dot_dimension_numbers<[1], [1], [0], [0], [0, 0, 1, 0], [], []>} : vector<8x8xf32>, vector<8x8xf32>, vector<8x8xf32> -> vector<8x8xf32>
    %cst_15 = arith.constant dense<0xFF800000> : vector<8xf32>
    %17 = vector.multi_reduction <maximumf>, %16, %cst_15 [1] : vector<8x8xf32> to vector<8xf32>
    %18 = vector.shape_cast %17 : vector<8xf32> to vector<8x1xf32>
    %19 = vector.broadcast %18 : vector<8x1xf32> to vector<8x8xf32>
    %20 = arith.subf %16, %19 : vector<8x8xf32>
    %21 = math.exp %20 : vector<8x8xf32>
    %cst_16 = arith.constant dense<0.000000e+00> : vector<8xf32>
    %22 = vector.multi_reduction <add>, %21, %cst_16 [1] : vector<8x8xf32> to vector<8xf32>
    %23 = vector.shape_cast %22 : vector<8xf32> to vector<8x1xf32>
    %24 = tpu.reciprocal %23 {approx = true} : vector<8x1xf32> -> vector<8x1xf32>
    %25 = vector.broadcast %24 : vector<8x1xf32> to vector<8x8xf32>
    %26 = arith.mulf %21, %25 : vector<8x8xf32>
    %cst_17 = arith.constant dense<0.000000e+00> : vector<8x8xf32>
    %27 = tpu.matmul %26, %15, %cst_17 {dimension_numbers = #tpu.dot_dimension_numbers<[1], [0], [0], [1], [0, 0, 1, 1], [], []>} : vector<8x8xf32>, vector<8x8xf32>, vector<8x8xf32> -> vector<8x8xf32>
    %c0_18 = arith.constant 0 : index
    %c0_19 = arith.constant 0 : index
    %28 = vector.load %arg19[%c0_18, %c0_19] : memref<8x32xf32, #tpu.memory_space<vmem>>, vector<8x8xf32>
    tpu.vector_store %arg19[%c0_18, %c0_19], %27 {strides = array<i32>} : memref<8x32xf32, #tpu.memory_space<vmem>>, vector<8x8xf32>,
    %c0_20 = arith.constant 0 : index
    %c8 = arith.constant 8 : index
    %29 = vector.load %arg18[%c0_20, %c8] : memref<8x128xf32, #tpu.memory_space<vmem>>, vector<8x8xf32>
    %c0_21 = arith.constant 0 : index
    %c40 = arith.constant 40 : index
    %30 = vector.load %arg18[%c0_21, %c40] : memref<8x128xf32, #tpu.memory_space<vmem>>, vector<8x8xf32>
    %c0_22 = arith.constant 0 : index
    %c72 = arith.constant 72 : index
    %31 = vector.load %arg18[%c0_22, %c72] : memref<8x128xf32, #tpu.memory_space<vmem>>, vector<8x8xf32>
    %cst_23 = arith.constant dense<0.000000e+00> : vector<8x8xf32>
    %32 = tpu.matmul %29, %30, %cst_23 {dimension_numbers = #tpu.dot_dimension_numbers<[1], [1], [0], [0], [0, 0, 1, 0], [], []>} : vector<8x8xf32>, vector<8x8xf32>, vector<8x8xf32> -> vector<8x8xf32>
    %cst_24 = arith.constant dense<0xFF800000> : vector<8xf32>
    %33 = vector.multi_reduction <maximumf>, %32, %cst_24 [1] : vector<8x8xf32> to vector<8xf32>
    %34 = vector.shape_cast %33 : vector<8xf32> to vector<8x1xf32>
    %35 = vector.broadcast %34 : vector<8x1xf32> to vector<8x8xf32>
    %36 = arith.subf %32, %35 : vector<8x8xf32>
    %37 = math.exp %36 : vector<8x8xf32>
    %cst_25 = arith.constant dense<0.000000e+00> : vector<8xf32>
    %38 = vector.multi_reduction <add>, %37, %cst_25 [1] : vector<8x8xf32> to vector<8xf32>
    %39 = vector.shape_cast %38 : vector<8xf32> to vector<8x1xf32>
    %40 = tpu.reciprocal %39 {approx = true} : vector<8x1xf32> -> vector<8x1xf32>
    %41 = vector.broadcast %40 : vector<8x1xf32> to vector<8x8xf32>
    %42 = arith.mulf %37, %41 : vector<8x8xf32>
    %cst_26 = arith.constant dense<0.000000e+00> : vector<8x8xf32>
    %43 = tpu.matmul %42, %31, %cst_26 {dimension_numbers = #tpu.dot_dimension_numbers<[1], [0], [0], [1], [0, 0, 1, 1], [], []>} : vector<8x8xf32>, vector<8x8xf32>, vector<8x8xf32> -> vector<8x8xf32>
    %c0_27 = arith.constant 0 : index
    %c8_28 = arith.constant 8 : index
    %44 = vector.load %arg19[%c0_27, %c8_28] : memref<8x32xf32, #tpu.memory_space<vmem>>, vector<8x8xf32>
    tpu.vector_store %arg19[%c0_27, %c8_28], %43 {strides = array<i32>} : memref<8x32xf32, #tpu.memory_space<vmem>>, vector<8x8xf32>,
    %c0_29 = arith.constant 0 : index
    %c16 = arith.constant 16 : index
    %45 = vector.load %arg18[%c0_29, %c16] : memref<8x128xf32, #tpu.memory_space<vmem>>, vector<8x8xf32>
    %c0_30 = arith.constant 0 : index
    %c48 = arith.constant 48 : index
    %46 = vector.load %arg18[%c0_30, %c48] : memref<8x128xf32, #tpu.memory_space<vmem>>, vector<8x8xf32>
    %c0_31 = arith.constant 0 : index
    %c80 = arith.constant 80 : index
    %47 = vector.load %arg18[%c0_31, %c80] : memref<8x128xf32, #tpu.memory_space<vmem>>, vector<8x8xf32>
    %cst_32 = arith.constant dense<0.000000e+00> : vector<8x8xf32>
    %48 = tpu.matmul %45, %46, %cst_32 {dimension_numbers = #tpu.dot_dimension_numbers<[1], [1], [0], [0], [0, 0, 1, 0], [], []>} : vector<8x8xf32>, vector<8x8xf32>, vector<8x8xf32> -> vector<8x8xf32>
    %cst_33 = arith.constant dense<0xFF800000> : vector<8xf32>
    %49 = vector.multi_reduction <maximumf>, %48, %cst_33 [1] : vector<8x8xf32> to vector<8xf32>
    %50 = vector.shape_cast %49 : vector<8xf32> to vector<8x1xf32>
    %51 = vector.broadcast %50 : vector<8x1xf32> to vector<8x8xf32>
    %52 = arith.subf %48, %51 : vector<8x8xf32>
    %53 = math.exp %52 : vector<8x8xf32>
    %cst_34 = arith.constant dense<0.000000e+00> : vector<8xf32>
    %54 = vector.multi_reduction <add>, %53, %cst_34 [1] : vector<8x8xf32> to vector<8xf32>
    %55 = vector.shape_cast %54 : vector<8xf32> to vector<8x1xf32>
    %56 = tpu.reciprocal %55 {approx = true} : vector<8x1xf32> -> vector<8x1xf32>
    %57 = vector.broadcast %56 : vector<8x1xf32> to vector<8x8xf32>
    %58 = arith.mulf %53, %57 : vector<8x8xf32>
    %cst_35 = arith.constant dense<0.000000e+00> : vector<8x8xf32>
    %59 = tpu.matmul %58, %47, %cst_35 {dimension_numbers = #tpu.dot_dimension_numbers<[1], [0], [0], [1], [0, 0, 1, 1], [], []>} : vector<8x8xf32>, vector<8x8xf32>, vector<8x8xf32> -> vector<8x8xf32>
    %c0_36 = arith.constant 0 : index
    %c16_37 = arith.constant 16 : index
    %60 = vector.load %arg19[%c0_36, %c16_37] : memref<8x32xf32, #tpu.memory_space<vmem>>, vector<8x8xf32>
    tpu.vector_store %arg19[%c0_36, %c16_37], %59 {strides = array<i32>} : memref<8x32xf32, #tpu.memory_space<vmem>>, vector<8x8xf32>,
    %c0_38 = arith.constant 0 : index
    %c24 = arith.constant 24 : index
    %61 = vector.load %arg18[%c0_38, %c24] : memref<8x128xf32, #tpu.memory_space<vmem>>, vector<8x8xf32>
    %c0_39 = arith.constant 0 : index
    %c56 = arith.constant 56 : index
    %62 = vector.load %arg18[%c0_39, %c56] : memref<8x128xf32, #tpu.memory_space<vmem>>, vector<8x8xf32>
    %c0_40 = arith.constant 0 : index
    %c88 = arith.constant 88 : index
    %63 = vector.load %arg18[%c0_40, %c88] : memref<8x128xf32, #tpu.memory_space<vmem>>, vector<8x8xf32>
    %cst_41 = arith.constant dense<0.000000e+00> : vector<8x8xf32>
    %64 = tpu.matmul %61, %62, %cst_41 {dimension_numbers = #tpu.dot_dimension_numbers<[1], [1], [0], [0], [0, 0, 1, 0], [], []>} : vector<8x8xf32>, vector<8x8xf32>, vector<8x8xf32> -> vector<8x8xf32>
    %cst_42 = arith.constant dense<0xFF800000> : vector<8xf32>
    %65 = vector.multi_reduction <maximumf>, %64, %cst_42 [1] : vector<8x8xf32> to vector<8xf32>
    %66 = vector.shape_cast %65 : vector<8xf32> to vector<8x1xf32>
    %67 = vector.broadcast %66 : vector<8x1xf32> to vector<8x8xf32>
    %68 = arith.subf %64, %67 : vector<8x8xf32>
    %69 = math.exp %68 : vector<8x8xf32>
    %cst_43 = arith.constant dense<0.000000e+00> : vector<8xf32>
    %70 = vector.multi_reduction <add>, %69, %cst_43 [1] : vector<8x8xf32> to vector<8xf32>
    %71 = vector.shape_cast %70 : vector<8xf32> to vector<8x1xf32>
    %72 = tpu.reciprocal %71 {approx = true} : vector<8x1xf32> -> vector<8x1xf32>
    %73 = vector.broadcast %72 : vector<8x1xf32> to vector<8x8xf32>
    %74 = arith.mulf %69, %73 : vector<8x8xf32>
    %cst_44 = arith.constant dense<0.000000e+00> : vector<8x8xf32>
    %75 = tpu.matmul %74, %63, %cst_44 {dimension_numbers = #tpu.dot_dimension_numbers<[1], [0], [0], [1], [0, 0, 1, 1], [], []>} : vector<8x8xf32>, vector<8x8xf32>, vector<8x8xf32> -> vector<8x8xf32>
    %c0_45 = arith.constant 0 : index
    %c24_46 = arith.constant 24 : index
    %76 = vector.load %arg19[%c0_45, %c24_46] : memref<8x32xf32, #tpu.memory_space<vmem>>, vector<8x8xf32>
    tpu.vector_store %arg19[%c0_45, %c24_46], %75 {strides = array<i32>} : memref<8x32xf32, #tpu.memory_space<vmem>>, vector<8x8xf32>,
    %c0_47 = arith.constant 0 : index
    %c0_48 = arith.constant 0 : index
    %77 = vector.load %arg19[%c0_47, %c0_48] : memref<8x32xf32, #tpu.memory_space<vmem>>, vector<8x32xf32>
    %78 = arith.truncf %77 : vector<8x32xf32> to vector<8x32xbf16>
    %c0_49 = arith.constant 0 : index
    %c0_50 = arith.constant 0 : index
    %c0_51 = arith.constant 0 : index
    %79 = vector.load %arg4[%c0_49, %c0_50, %c0_51] : memref<1x32x32xbf16, #tpu.memory_space<vmem>>, vector<1x32x32xbf16>
    %80 = vector.shape_cast %79 : vector<1x32x32xbf16> to vector<32x32xbf16>
    %cst_52 = arith.constant dense<0.000000e+00> : vector<8x32xf32>
    %81 = tpu.matmul %78, %80, %cst_52 {dimension_numbers = #tpu.dot_dimension_numbers<[1], [0], [0], [1], [0, 0, 1, 1], [], []>} : vector<8x32xbf16>, vector<32x32xbf16>, vector<8x32xf32> -> vector<8x32xf32>
    %c0_53 = arith.constant 0 : index
    %c0_54 = arith.constant 0 : index
    %c0_55 = arith.constant 0 : index
    %82 = vector.load %arg5[%c0_53, %c0_54, %c0_55] : memref<1x1x32xf32, #tpu.memory_space<vmem>>, vector<1x1x32xf32>
    %83 = vector.shape_cast %82 : vector<1x1x32xf32> to vector<1x32xf32>
    %84 = vector.broadcast %83 : vector<1x32xf32> to vector<8x32xf32>
    %85 = arith.addf %81, %84 : vector<8x32xf32>
    %86 = arith.addf %3, %85 : vector<8x32xf32>
    %c0_56 = arith.constant 0 : index
    %c0_57 = arith.constant 0 : index
    %c0_58 = arith.constant 0 : index
    %87 = vector.load %arg6[%c0_56, %c0_57, %c0_58] : memref<1x1x32xf32, #tpu.memory_space<vmem>>, vector<1x1x32xf32>
    %88 = vector.shape_cast %87 : vector<1x1x32xf32> to vector<1x32xf32>
    %c0_59 = arith.constant 0 : index
    %c0_60 = arith.constant 0 : index
    %c0_61 = arith.constant 0 : index
    %89 = vector.load %arg7[%c0_59, %c0_60, %c0_61] : memref<1x1x32xf32, #tpu.memory_space<vmem>>, vector<1x1x32xf32>
    %90 = vector.shape_cast %89 : vector<1x1x32xf32> to vector<1x32xf32>
    %cst_62 = arith.constant dense<0.000000e+00> : vector<8xf32>
    %91 = vector.multi_reduction <add>, %86, %cst_62 [1] : vector<8x32xf32> to vector<8xf32>
    %92 = vector.shape_cast %91 : vector<8xf32> to vector<8x1xf32>
    %cst_63 = arith.constant 3.200000e+01 : f32
    %93 = vector.broadcast %cst_63 : f32 to vector<8x1xf32>
    %94 = arith.divf %92, %93 : vector<8x1xf32>
    %95 = vector.broadcast %94 : vector<8x1xf32> to vector<8x32xf32>
    %96 = arith.subf %86, %95 : vector<8x32xf32>
    %97 = arith.mulf %96, %96 : vector<8x32xf32>
    %cst_64 = arith.constant dense<0.000000e+00> : vector<8xf32>
    %98 = vector.multi_reduction <add>, %97, %cst_64 [1] : vector<8x32xf32> to vector<8xf32>
    %99 = vector.shape_cast %98 : vector<8xf32> to vector<8x1xf32>
    %cst_65 = arith.constant 3.200000e+01 : f32
    %100 = vector.broadcast %cst_65 : f32 to vector<8x1xf32>
    %101 = arith.divf %99, %100 : vector<8x1xf32>
    %102 = vector.broadcast %94 : vector<8x1xf32> to vector<8x32xf32>
    %103 = arith.subf %86, %102 : vector<8x32xf32>
    %cst_66 = arith.constant 9.99999974E-6 : f32
    %104 = vector.broadcast %cst_66 : f32 to vector<8x1xf32>
    %105 = arith.addf %101, %104 : vector<8x1xf32>
    %106 = math.rsqrt %105 : vector<8x1xf32>
    %107 = vector.broadcast %106 : vector<8x1xf32> to vector<8x32xf32>
    %108 = arith.mulf %103, %107 : vector<8x32xf32>
    %109 = vector.broadcast %88 : vector<1x32xf32> to vector<8x32xf32>
    %110 = arith.mulf %108, %109 : vector<8x32xf32>
    %111 = vector.broadcast %90 : vector<1x32xf32> to vector<8x32xf32>
    %112 = arith.addf %110, %111 : vector<8x32xf32>
    %113 = arith.truncf %112 : vector<8x32xf32> to vector<8x32xbf16>
    %c0_67 = arith.constant 0 : index
    %c0_68 = arith.constant 0 : index
    %c0_69 = arith.constant 0 : index
    %114 = vector.load %arg8[%c0_67, %c0_68, %c0_69] : memref<1x32x2048xbf16, #tpu.memory_space<vmem>>, vector<1x32x2048xbf16>
    %115 = vector.shape_cast %114 : vector<1x32x2048xbf16> to vector<32x2048xbf16>
    %cst_70 = arith.constant dense<0.000000e+00> : vector<8x2048xf32>
    %116 = tpu.matmul %113, %115, %cst_70 {dimension_numbers = #tpu.dot_dimension_numbers<[1], [0], [0], [1], [0, 0, 1, 1], [], []>} : vector<8x32xbf16>, vector<32x2048xbf16>, vector<8x2048xf32> -> vector<8x2048xf32>
    %c0_71 = arith.constant 0 : index
    %c0_72 = arith.constant 0 : index
    %c0_73 = arith.constant 0 : index
    %117 = vector.load %arg9[%c0_71, %c0_72, %c0_73] : memref<1x1x2048xf32, #tpu.memory_space<vmem>>, vector<1x1x2048xf32>
    %118 = vector.shape_cast %117 : vector<1x1x2048xf32> to vector<1x2048xf32>
    %119 = vector.broadcast %118 : vector<1x2048xf32> to vector<8x2048xf32>
    %120 = arith.addf %116, %119 : vector<8x2048xf32>
    %cst_74 = arith.constant 0.000000e+00 : f32
    %121 = vector.broadcast %cst_74 : f32 to vector<8x2048xf32>
    %122 = arith.maximumf %120, %121 : vector<8x2048xf32>
    %123 = arith.truncf %122 : vector<8x2048xf32> to vector<8x2048xbf16>
    %c0_75 = arith.constant 0 : index
    %c0_76 = arith.constant 0 : index
    %c0_77 = arith.constant 0 : index
    %124 = vector.load %arg10[%c0_75, %c0_76, %c0_77] : memref<1x2048x32xbf16, #tpu.memory_space<vmem>>, vector<1x2048x32xbf16>
    %125 = vector.shape_cast %124 : vector<1x2048x32xbf16> to vector<2048x32xbf16>
    %cst_78 = arith.constant dense<0.000000e+00> : vector<8x32xf32>
    %126 = tpu.matmul %123, %125, %cst_78 {dimension_numbers = #tpu.dot_dimension_numbers<[1], [0], [0], [1], [0, 0, 1, 1], [], []>} : vector<8x2048xbf16>, vector<2048x32xbf16>, vector<8x32xf32> -> vector<8x32xf32>
    %c0_79 = arith.constant 0 : index
    %c0_80 = arith.constant 0 : index
    %c0_81 = arith.constant 0 : index
    %127 = vector.load %arg11[%c0_79, %c0_80, %c0_81] : memref<1x1x32xf32, #tpu.memory_space<vmem>>, vector<1x1x32xf32>
    %128 = vector.shape_cast %127 : vector<1x1x32xf32> to vector<1x32xf32>
    %129 = vector.broadcast %128 : vector<1x32xf32> to vector<8x32xf32>
    %130 = arith.addf %126, %129 : vector<8x32xf32>
    %131 = arith.addf %112, %130 : vector<8x32xf32>
    %c0_82 = arith.constant 0 : index
    %c0_83 = arith.constant 0 : index
    %c0_84 = arith.constant 0 : index
    %132 = vector.load %arg12[%c0_82, %c0_83, %c0_84] : memref<1x1x32xf32, #tpu.memory_space<vmem>>, vector<1x1x32xf32>
    %133 = vector.shape_cast %132 : vector<1x1x32xf32> to vector<1x32xf32>
    %c0_85 = arith.constant 0 : index
    %c0_86 = arith.constant 0 : index
    %c0_87 = arith.constant 0 : index
    %134 = vector.load %arg13[%c0_85, %c0_86, %c0_87] : memref<1x1x32xf32, #tpu.memory_space<vmem>>, vector<1x1x32xf32>
    %135 = vector.shape_cast %134 : vector<1x1x32xf32> to vector<1x32xf32>
    %cst_88 = arith.constant dense<0.000000e+00> : vector<8xf32>
    %136 = vector.multi_reduction <add>, %131, %cst_88 [1] : vector<8x32xf32> to vector<8xf32>
    %137 = vector.shape_cast %136 : vector<8xf32> to vector<8x1xf32>
    %cst_89 = arith.constant 3.200000e+01 : f32
    %138 = vector.broadcast %cst_89 : f32 to vector<8x1xf32>
    %139 = arith.divf %137, %138 : vector<8x1xf32>
    %140 = vector.broadcast %139 : vector<8x1xf32> to vector<8x32xf32>
    %141 = arith.subf %131, %140 : vector<8x32xf32>
    %142 = arith.mulf %141, %141 : vector<8x32xf32>
    %cst_90 = arith.constant dense<0.000000e+00> : vector<8xf32>
    %143 = vector.multi_reduction <add>, %142, %cst_90 [1] : vector<8x32xf32> to vector<8xf32>
    %144 = vector.shape_cast %143 : vector<8xf32> to vector<8x1xf32>
    %cst_91 = arith.constant 3.200000e+01 : f32
    %145 = vector.broadcast %cst_91 : f32 to vector<8x1xf32>
    %146 = arith.divf %144, %145 : vector<8x1xf32>
    %147 = vector.broadcast %139 : vector<8x1xf32> to vector<8x32xf32>
    %148 = arith.subf %131, %147 : vector<8x32xf32>
    %cst_92 = arith.constant 9.99999974E-6 : f32
    %149 = vector.broadcast %cst_92 : f32 to vector<8x1xf32>
    %150 = arith.addf %146, %149 : vector<8x1xf32>
    %151 = math.rsqrt %150 : vector<8x1xf32>
    %152 = vector.broadcast %151 : vector<8x1xf32> to vector<8x32xf32>
    %153 = arith.mulf %148, %152 : vector<8x32xf32>
    %154 = vector.broadcast %133 : vector<1x32xf32> to vector<8x32xf32>
    %155 = arith.mulf %153, %154 : vector<8x32xf32>
    %156 = vector.broadcast %135 : vector<1x32xf32> to vector<8x32xf32>
    %157 = arith.addf %155, %156 : vector<8x32xf32>
    %c0_93 = arith.constant 0 : index
    %c0_94 = arith.constant 0 : index
    %158 = vector.load %arg17[%c0_93, %c0_94] : memref<8x32xf32, #tpu.memory_space<vmem>>, vector<8x32xf32>
    tpu.vector_store %arg17[%c0_93, %c0_94], %157 {strides = array<i32>} : memref<8x32xf32, #tpu.memory_space<vmem>>, vector<8x32xf32>,
    %c1_i32 = arith.constant 1 : i32
    %159 = arith.cmpi eq, %arg0, %c1_i32 : i32
    %160 = arith.extui %159 : i1 to i32
    %c0_i32_95 = arith.constant 0 : i32
    %161 = arith.cmpi ne, %160, %c0_i32_95 : i32
    scf.if %161 {
      %162 = arith.truncf %157 : vector<8x32xf32> to vector<8x32xbf16>
      %c0_96 = arith.constant 0 : index
      %c0_97 = arith.constant 0 : index
      %163 = vector.load %arg14[%c0_96, %c0_97] : memref<32x128xbf16, #tpu.memory_space<vmem>>, vector<32x128xbf16>
      %cst_98 = arith.constant dense<0.000000e+00> : vector<8x128xf32>
      %164 = tpu.matmul %162, %163, %cst_98 {dimension_numbers = #tpu.dot_dimension_numbers<[1], [0], [0], [1], [0, 0, 1, 1], [], []>} : vector<8x32xbf16>, vector<32x128xbf16>, vector<8x128xf32> -> vector<8x128xf32>
      %c0_99 = arith.constant 0 : index
      %c0_100 = arith.constant 0 : index
      %165 = vector.load %arg15[%c0_99, %c0_100] : memref<1x128xf32, #tpu.memory_space<vmem>>, vector<1x128xf32>
      %166 = vector.broadcast %165 : vector<1x128xf32> to vector<8x128xf32>
      %167 = arith.addf %164, %166 : vector<8x128xf32>
      %c0_101 = arith.constant 0 : index
      %c0_102 = arith.constant 0 : index
      %168 = vector.load %arg16[%c0_101, %c0_102] : memref<8x128xf32, #tpu.memory_space<vmem>>, vector<8x128xf32>
      tpu.vector_store %arg16[%c0_101, %c0_102], %167 {strides = array<i32>} : memref<8x128xf32, #tpu.memory_space<vmem>>, vector<8x128xf32>,
    } else {
    }
    return
  }
  func.func @transform_0(%arg0: i32) -> (i32, i32) {
    %c0_i32 = arith.constant 0 : i32
    %c0_i32_0 = arith.constant 0 : i32
    %c0_i32_1 = arith.constant 0 : i32
    return %c0_i32, %c0_i32_0 : i32, i32
  }
  func.func @transform_1(%arg0: i32) -> (i32, i32, i32) {
    %c0_i32 = arith.constant 0 : i32
    %c0_i32_0 = arith.constant 0 : i32
    %c0_i32_1 = arith.constant 0 : i32
    return %arg0, %c0_i32, %c0_i32_0 : i32, i32, i32
  }
  func.func @transform_2(%arg0: i32) -> (i32, i32, i32) {
    %c0_i32 = arith.constant 0 : i32
    %c0_i32_0 = arith.constant 0 : i32
    %c0_i32_1 = arith.constant 0 : i32
    return %arg0, %c0_i32, %c0_i32_0 : i32, i32, i32
  }
  func.func @transform_3(%arg0: i32) -> (i32, i32, i32) {
    %c0_i32 = arith.constant 0 : i32
    %c0_i32_0 = arith.constant 0 : i32
    %c0_i32_1 = arith.constant 0 : i32
    return %arg0, %c0_i32, %c0_i32_0 : i32, i32, i32
  }
  func.func @transform_4(%arg0: i32) -> (i32, i32, i32) {
    %c0_i32 = arith.constant 0 : i32
    %c0_i32_0 = arith.constant 0 : i32
    %c0_i32_1 = arith.constant 0 : i32
    return %arg0, %c0_i32, %c0_i32_0 : i32, i32, i32
  }
  func.func @transform_5(%arg0: i32) -> (i32, i32, i32) {
    %c0_i32 = arith.constant 0 : i32
    %c0_i32_0 = arith.constant 0 : i32
    %c0_i32_1 = arith.constant 0 : i32
    return %arg0, %c0_i32, %c0_i32_0 : i32, i32, i32
  }
  func.func @transform_6(%arg0: i32) -> (i32, i32, i32) {
    %c0_i32 = arith.constant 0 : i32
    %c0_i32_0 = arith.constant 0 : i32
    %c0_i32_1 = arith.constant 0 : i32
    return %arg0, %c0_i32, %c0_i32_0 : i32, i32, i32
  }
  func.func @transform_7(%arg0: i32) -> (i32, i32, i32) {
    %c0_i32 = arith.constant 0 : i32
    %c0_i32_0 = arith.constant 0 : i32
    %c0_i32_1 = arith.constant 0 : i32
    return %arg0, %c0_i32, %c0_i32_0 : i32, i32, i32
  }
  func.func @transform_8(%arg0: i32) -> (i32, i32, i32) {
    %c0_i32 = arith.constant 0 : i32
    %c0_i32_0 = arith.constant 0 : i32
    %c0_i32_1 = arith.constant 0 : i32
    return %arg0, %c0_i32, %c0_i32_0 : i32, i32, i32
  }
  func.func @transform_9(%arg0: i32) -> (i32, i32, i32) {
    %c0_i32 = arith.constant 0 : i32
    %c0_i32_0 = arith.constant 0 : i32
    %c0_i32_1 = arith.constant 0 : i32
    return %arg0, %c0_i32, %c0_i32_0 : i32, i32, i32
  }
  func.func @transform_10(%arg0: i32) -> (i32, i32, i32) {
    %c0_i32 = arith.constant 0 : i32
    %c0_i32_0 = arith.constant 0 : i32
    %c0_i32_1 = arith.constant 0 : i32
    return %arg0, %c0_i32, %c0_i32_0 : i32, i32, i32
  }
  func.func @transform_11(%arg0: i32) -> (i32, i32, i32) {
    %c0_i32 = arith.constant 0 : i32
    %c0_i32_0 = arith.constant 0 : i32
    %c0_i32_1 = arith.constant 0 : i32
    return %arg0, %c0_i32, %c0_i32_0 : i32, i32, i32
  }
  func.func @transform_12(%arg0: i32) -> (i32, i32, i32) {
    %c0_i32 = arith.constant 0 : i32
    %c0_i32_0 = arith.constant 0 : i32
    %c0_i32_1 = arith.constant 0 : i32
    return %arg0, %c0_i32, %c0_i32_0 : i32, i32, i32
  }
  func.func @transform_13(%arg0: i32) -> (i32, i32) {
    %c0_i32 = arith.constant 0 : i32
    %c0_i32_0 = arith.constant 0 : i32
    %c0_i32_1 = arith.constant 0 : i32
    return %c0_i32, %c0_i32_0 : i32, i32
  }
  func.func @transform_14(%arg0: i32) -> (i32, i32) {
    %c0_i32 = arith.constant 0 : i32
    %c0_i32_0 = arith.constant 0 : i32
    %c0_i32_1 = arith.constant 0 : i32
    return %c0_i32, %c0_i32_0 : i32, i32
  }
  func.func @transform_15(%arg0: i32) -> (i32, i32) {
    %c0_i32 = arith.constant 0 : i32
    %c0_i32_0 = arith.constant 0 : i32
    %c0_i32_1 = arith.constant 0 : i32
    return %c0_i32, %c0_i32_0 : i32, i32
  }
}

</mosaic_0001>

<llo_original>
// kernel: tpu_custom_call.1
$region0: #{tpu_custom_call.1}
  #allocation0 [shape = 'u32[]', space=smem, size = 0x4, offset = 0x4, fixed_abs, tag = 'smem constant byte address 0x4 - core index']
  #allocation1 [shape = 'u32[144,128]{1,0:T(1,128)}', space=vmem, size = 0x12000, scoped, tag = 'internal scratch']
  #allocation2 [shape = 'f32[8,32]{1,0:T(8,128)}', space=vmem, size = 0x1000, scoped, tag = 'scratch operand']
  #allocation3 [shape = 'f32[8,128]{1,0:T(8,128)}', space=vmem, size = 0x1000, scoped, tag = 'scratch operand']
  #allocation4 [shape = 'f32[8,32]{1,0:T(8,128)}', space=vmem, size = 0x1000, scoped, tag = 'scratch operand']
  %s0 = inlined_call_operand.vmem [shape: f32[8,32], index: 0, kind: input, shape index: {}]
  %s1 = inlined_call_operand.vmem [shape: bf16[2,32,128], index: 1, kind: input, shape index: {}]
  %s2 = inlined_call_operand.vmem [shape: f32[2,1,128], index: 2, kind: input, shape index: {}]
  %s3 = inlined_call_operand.vmem [shape: bf16[2,32,32], index: 3, kind: input, shape index: {}]
  %s4 = inlined_call_operand.vmem [shape: f32[2,1,32], index: 4, kind: input, shape index: {}]
  %s5 = inlined_call_operand.vmem [shape: f32[2,1,32], index: 5, kind: input, shape index: {}]
  %s6 = inlined_call_operand.vmem [shape: f32[2,1,32], index: 6, kind: input, shape index: {}]
  %s7 = inlined_call_operand.vmem [shape: bf16[2,32,2048], index: 7, kind: input, shape index: {}]
  %s8 = inlined_call_operand.vmem [shape: f32[2,1,2048], index: 8, kind: input, shape index: {}]
  %s9 = inlined_call_operand.vmem [shape: bf16[2,2048,32], index: 9, kind: input, shape index: {}]
  %s10 = inlined_call_operand.vmem [shape: f32[2,1,32], index: 10, kind: input, shape index: {}]
  %s11 = inlined_call_operand.vmem [shape: f32[2,1,32], index: 11, kind: input, shape index: {}]
  %s12 = inlined_call_operand.vmem [shape: f32[2,1,32], index: 12, kind: input, shape index: {}]
  %s13 = inlined_call_operand.vmem [shape: bf16[32,128], index: 13, kind: input, shape index: {}]
  %s14 = inlined_call_operand.vmem [shape: f32[1,128], index: 14, kind: input, shape index: {}]
  %s15 = inlined_call_operand.hbm [shape: f32[8,128], index: 15, kind: output, shape index: {}]
  %s16 = sld [smem:[#allocation0]]
  $region101: #{tpu_custom_call.1} parent=0
    _
  %s18 = ssub.s32 1, %s16
  %s19 = scalar_select 0, %s18, %s16
  $region1: #{tpu_custom_call.1} parent=0
    #allocation5 [shape = 'u8[4096]{0}', space=vmem, size = 0x1000, scoped, tag = 'output window, operand 0, single buffered']
    #allocation6 [shape = 's32[2]{0}', space=sflag, size = 0x8, scoped, tag = 'scoped memory for tpu_custom_call.1']
    %20 = vsyncpa [#allocation6], 0
    loop: start=0, step=1, limit=4
    $region2: #{tpu_custom_call.1} parent=1 // loop_pre_header
      _
    $region3: #{tpu_custom_call.1} parent=1 // loop_header
      %s22 = sphi 0, %s26
      %p23 = scmp.ge.s32.totalorder %s22, 4
      %s30 = sphi 0, %s30
      %s32 = sphi 0, %s30
      %s33 = sphi 0, %s32
      %s47 = sphi 0, %s33
      %s53 = sphi 0, %s55
      %s56 = sphi 0, %s53
      %s57 = sphi 0, %s56
      %s73 = sphi 0, %s57
      %s79 = sphi 0, %s81
      %s82 = sphi 0, %s79
      %s83 = sphi 0, %s82
      %s99 = sphi 0, %s83
      %s105 = sphi 0, %s107
      %s108 = sphi 0, %s105
      %s109 = sphi 0, %s108
      %s125 = sphi 0, %s109
      %s131 = sphi 0, %s133
      %s134 = sphi 0, %s131
      %s135 = sphi 0, %s134
      %s151 = sphi 0, %s135
      %s157 = sphi 0, %s159
      %s160 = sphi 0, %s157
      %s161 = sphi 0, %s160
      %s177 = sphi 0, %s161
      %s183 = sphi 0, %s185
      %s186 = sphi 0, %s183
      %s187 = sphi 0, %s186
      %s203 = sphi 0, %s187
      %s209 = sphi 0, %s211
      %s212 = sphi 0, %s209
      %s213 = sphi 0, %s212
      %s229 = sphi 0, %s213
      %s235 = sphi 0, %s237
      %s238 = sphi 0, %s235
      %s239 = sphi 0, %s238
      %s255 = sphi 0, %s239
      %s261 = sphi 0, %s263
      %s264 = sphi 0, %s261
      %s265 = sphi 0, %s264
      %s281 = sphi 0, %s265
      %s287 = sphi 0, %s289
      %s290 = sphi 0, %s287
      %s291 = sphi 0, %s290
      %s307 = sphi 0, %s291
      %s313 = sphi 0, %s315
      %s316 = sphi 0, %s313
      %s317 = sphi 0, %s316
      %s333 = sphi 0, %s317
      %s339 = sphi 0, %s341
      %s342 = sphi 0, %s339
      %s343 = sphi 0, %s342
      %s359 = sphi 0, %s343
      %s363 = sphi 0, %s363
      %s365 = sphi 0, %s363
      %s366 = sphi 0, %s365
      %s380 = sphi 0, %s366
      %s384 = sphi 0, %s384
      %s386 = sphi 0, %s384
      %s387 = sphi 0, %s386
      %s401 = sphi 0, %s387
      %s405 = sphi 0, %s405
      %s407 = sphi 0, %s405
      %s408 = sphi 0, %s407
      %s422 = sphi 0, %s408
    $region4: #{tpu_custom_call.1} parent=1 // loop_header_branch
      %25 = sbr.rel (%p23) target = $region8
    $region5: #{tpu_custom_call.1} parent=1 // loop_body
      %s27 = ssub.s32 %s22, 1
      %s28 = ssub.s32 %s22, 2
      %s29 = sadd.s32 %s22, 1
      %s31 = sadd.s32 %s30, 1
      %p34 = scmp.eq.s32.totalorder %s22, 1
      %p35 = scmp.ne.s32.totalorder %s30, %s32
      %p36 = scmp.eq.s32.totalorder %s22, 0
      %p37 = por %p35, %p36
      %p38 = scmp.ne.s32.totalorder %s30, %s32
      %p39 = scmp.eq.s32.totalorder %s27, 1
      %p40 = por %p38, %p39
      %p41 = scmp.ne.s32.totalorder %s32, %s33
      %p42 = scmp.eq.s32.totalorder %s27, 0
      %p43 = por %p41, %p42
      %p44 = scmp.ne.s32.totalorder %s32, %s33
      %p45 = scmp.eq.s32.totalorder %s28, 1
      %p46 = por %p44, %p45
      %p48 = scmp.ne.s32.totalorder %s33, %s47
      %p49 = scmp.eq.s32.totalorder %s28, 0
      %p50 = por %p48, %p49
      %s51 = ssub.s32 %s22, %s29
      %p52 = scmp.eq.s32.totalorder %s51, 0
      %s54 = sadd.s32 %s53, 1
      %s55 = scalar_select %p52, %s53, %s54
      %p58 = pneg %p52
      %p59 = scmp.eq.s32.totalorder %s22, 1
      %p60 = por %p58, %p59
      %p61 = scmp.ne.s32.totalorder %s53, %s56
      %p62 = scmp.eq.s32.totalorder %s22, 0
      %p63 = por %p61, %p62
      %p64 = scmp.ne.s32.totalorder %s53, %s56
      %p65 = scmp.eq.s32.totalorder %s27, 1
      %p66 = por %p64, %p65
      %p67 = scmp.ne.s32.totalorder %s56, %s57
      %p68 = scmp.eq.s32.totalorder %s27, 0
      %p69 = por %p67, %p68
      %p70 = scmp.ne.s32.totalorder %s56, %s57
      %p71 = scmp.eq.s32.totalorder %s28, 1
      %p72 = por %p70, %p71
      %p74 = scmp.ne.s32.totalorder %s57, %s73
      %p75 = scmp.eq.s32.totalorder %s28, 0
      %p76 = por %p74, %p75
      %s77 = ssub.s32 %s22, %s29
      %p78 = scmp.eq.s32.totalorder %s77, 0
      %s80 = sadd.s32 %s79, 1
      %s81 = scalar_select %p78, %s79, %s80
      %p84 = pneg %p78
      %p85 = scmp.eq.s32.totalorder %s22, 1
      %p86 = por %p84, %p85
      %p87 = scmp.ne.s32.totalorder %s79, %s82
      %p88 = scmp.eq.s32.totalorder %s22, 0
      %p89 = por %p87, %p88
      %p90 = scmp.ne.s32.totalorder %s79, %s82
      %p91 = scmp.eq.s32.totalorder %s27, 1
      %p92 = por %p90, %p91
      %p93 = scmp.ne.s32.totalorder %s82, %s83
      %p94 = scmp.eq.s32.totalorder %s27, 0
      %p95 = por %p93, %p94
      %p96 = scmp.ne.s32.totalorder %s82, %s83
      %p97 = scmp.eq.s32.totalorder %s28, 1
      %p98 = por %p96, %p97
      %p100 = scmp.ne.s32.totalorder %s83, %s99
      %p101 = scmp.eq.s32.totalorder %s28, 0
      %p102 = por %p100, %p101
      %s103 = ssub.s32 %s22, %s29
      %p104 = scmp.eq.s32.totalorder %s103, 0
      %s106 = sadd.s32 %s105, 1
      %s107 = scalar_select %p104, %s105, %s106
      %p110 = pneg %p104
      %p111 = scmp.eq.s32.totalorder %s22, 1
      %p112 = por %p110, %p111
      %p113 = scmp.ne.s32.totalorder %s105, %s108
      %p114 = scmp.eq.s32.totalorder %s22, 0
      %p115 = por %p113, %p114
      %p116 = scmp.ne.s32.totalorder %s105, %s108
      %p117 = scmp.eq.s32.totalorder %s27, 1
      %p118 = por %p116, %p117
      %p119 = scmp.ne.s32.totalorder %s108, %s109
      %p120 = scmp.eq.s32.totalorder %s27, 0
      %p121 = por %p119, %p120
      %p122 = scmp.ne.s32.totalorder %s108, %s109
      %p123 = scmp.eq.s32.totalorder %s28, 1
      %p124 = por %p122, %p123
      %p126 = scmp.ne.s32.totalorder %s109, %s125
      %p127 = scmp.eq.s32.totalorder %s28, 0
      %p128 = por %p126, %p127
      %s129 = ssub.s32 %s22, %s29
      %p130 = scmp.eq.s32.totalorder %s129, 0
      %s132 = sadd.s32 %s131, 1
      %s133 = scalar_select %p130, %s131, %s132
      %p136 = pneg %p130
      %p137 = scmp.eq.s32.totalorder %s22, 1
      %p138 = por %p136, %p137
      %p139 = scmp.ne.s32.totalorder %s131, %s134
      %p140 = scmp.eq.s32.totalorder %s22, 0
      %p141 = por %p139, %p140
      %p142 = scmp.ne.s32.totalorder %s131, %s134
      %p143 = scmp.eq.s32.totalorder %s27, 1
      %p144 = por %p142, %p143
      %p145 = scmp.ne.s32.totalorder %s134, %s135
      %p146 = scmp.eq.s32.totalorder %s27, 0
      %p147 = por %p145, %p146
      %p148 = scmp.ne.s32.totalorder %s134, %s135
      %p149 = scmp.eq.s32.totalorder %s28, 1
      %p150 = por %p148, %p149
      %p152 = scmp.ne.s32.totalorder %s135, %s151
      %p153 = scmp.eq.s32.totalorder %s28, 0
      %p154 = por %p152, %p153
      %s155 = ssub.s32 %s22, %s29
      %p156 = scmp.eq.s32.totalorder %s155, 0
      %s158 = sadd.s32 %s157, 1
      %s159 = scalar_select %p156, %s157, %s158
      %p162 = pneg %p156
      %p163 = scmp.eq.s32.totalorder %s22, 1
      %p164 = por %p162, %p163
      %p165 = scmp.ne.s32.totalorder %s157, %s160
      %p166 = scmp.eq.s32.totalorder %s22, 0
      %p167 = por %p165, %p166
      %p168 = scmp.ne.s32.totalorder %s157, %s160
      %p169 = scmp.eq.s32.totalorder %s27, 1
      %p170 = por %p168, %p169
      %p171 = scmp.ne.s32.totalorder %s160, %s161
      %p172 = scmp.eq.s32.totalorder %s27, 0
      %p173 = por %p171, %p172
      %p174 = scmp.ne.s32.totalorder %s160, %s161
      %p175 = scmp.eq.s32.totalorder %s28, 1
      %p176 = por %p174, %p175
      %p178 = scmp.ne.s32.totalorder %s161, %s177
      %p179 = scmp.eq.s32.totalorder %s28, 0
      %p180 = por %p178, %p179
      %s181 = ssub.s32 %s22, %s29
      %p182 = scmp.eq.s32.totalorder %s181, 0
      %s184 = sadd.s32 %s183, 1
      %s185 = scalar_select %p182, %s183, %s184
      %p188 = pneg %p182
      %p189 = scmp.eq.s32.totalorder %s22, 1
      %p190 = por %p188, %p189
      %p191 = scmp.ne.s32.totalorder %s183, %s186
      %p192 = scmp.eq.s32.totalorder %s22, 0
      %p193 = por %p191, %p192
      %p194 = scmp.ne.s32.totalorder %s183, %s186
      %p195 = scmp.eq.s32.totalorder %s27, 1
      %p196 = por %p194, %p195
      %p197 = scmp.ne.s32.totalorder %s186, %s187
      %p198 = scmp.eq.s32.totalorder %s27, 0
      %p199 = por %p197, %p198
      %p200 = scmp.ne.s32.totalorder %s186, %s187
      %p201 = scmp.eq.s32.totalorder %s28, 1
      %p202 = por %p200, %p201
      %p204 = scmp.ne.s32.totalorder %s187, %s203
      %p205 = scmp.eq.s32.totalorder %s28, 0
      %p206 = por %p204, %p205
      %s207 = ssub.s32 %s22, %s29
      %p208 = scmp.eq.s32.totalorder %s207, 0
      %s210 = sadd.s32 %s209, 1
      %s211 = scalar_select %p208, %s209, %s210
      %p214 = pneg %p208
      %p215 = scmp.eq.s32.totalorder %s22, 1
      %p216 = por %p214, %p215
      %p217 = scmp.ne.s32.totalorder %s209, %s212
      %p218 = scmp.eq.s32.totalorder %s22, 0
      %p219 = por %p217, %p218
      %p220 = scmp.ne.s32.totalorder %s209, %s212
      %p221 = scmp.eq.s32.totalorder %s27, 1
      %p222 = por %p220, %p221
      %p223 = scmp.ne.s32.totalorder %s212, %s213
      %p224 = scmp.eq.s32.totalorder %s27, 0
      %p225 = por %p223, %p224
      %p226 = scmp.ne.s32.totalorder %s212, %s213
      %p227 = scmp.eq.s32.totalorder %s28, 1
      %p228 = por %p226, %p227
      %p230 = scmp.ne.s32.totalorder %s213, %s229
      %p231 = scmp.eq.s32.totalorder %s28, 0
      %p232 = por %p230, %p231
      %s233 = ssub.s32 %s22, %s29
      %p234 = scmp.eq.s32.totalorder %s233, 0
      %s236 = sadd.s32 %s235, 1
      %s237 = scalar_select %p234, %s235, %s236
      %p240 = pneg %p234
      %p241 = scmp.eq.s32.totalorder %s22, 1
      %p242 = por %p240, %p241
      %p243 = scmp.ne.s32.totalorder %s235, %s238
      %p244 = scmp.eq.s32.totalorder %s22, 0
      %p245 = por %p243, %p244
      %p246 = scmp.ne.s32.totalorder %s235, %s238
      %p247 = scmp.eq.s32.totalorder %s27, 1
      %p248 = por %p246, %p247
      %p249 = scmp.ne.s32.totalorder %s238, %s239
      %p250 = scmp.eq.s32.totalorder %s27, 0
      %p251 = por %p249, %p250
      %p252 = scmp.ne.s32.totalorder %s238, %s239
      %p253 = scmp.eq.s32.totalorder %s28, 1
      %p254 = por %p252, %p253
      %p256 = scmp.ne.s32.totalorder %s239, %s255
      %p257 = scmp.eq.s32.totalorder %s28, 0
      %p258 = por %p256, %p257
      %s259 = ssub.s32 %s22, %s29
      %p260 = scmp.eq.s32.totalorder %s259, 0
      %s262 = sadd.s32 %s261, 1
      %s263 = scalar_select %p260, %s261, %s262
      %p266 = pneg %p260
      %p267 = scmp.eq.s32.totalorder %s22, 1
      %p268 = por %p266, %p267
      %p269 = scmp.ne.s32.totalorder %s261, %s264
      %p270 = scmp.eq.s32.totalorder %s22, 0
      %p271 = por %p269, %p270
      %p272 = scmp.ne.s32.totalorder %s261, %s264
      %p273 = scmp.eq.s32.totalorder %s27, 1
      %p274 = por %p272, %p273
      %p275 = scmp.ne.s32.totalorder %s264, %s265
      %p276 = scmp.eq.s32.totalorder %s27, 0
      %p277 = por %p275, %p276
      %p278 = scmp.ne.s32.totalorder %s264, %s265
      %p279 = scmp.eq.s32.totalorder %s28, 1
      %p280 = por %p278, %p279
      %p282 = scmp.ne.s32.totalorder %s265, %s281
      %p283 = scmp.eq.s32.totalorder %s28, 0
      %p284 = por %p282, %p283
      %s285 = ssub.s32 %s22, %s29
      %p286 = scmp.eq.s32.totalorder %s285, 0
      %s288 = sadd.s32 %s287, 1
      %s289 = scalar_select %p286, %s287, %s288
      %p292 = pneg %p286
      %p293 = scmp.eq.s32.totalorder %s22, 1
      %p294 = por %p292, %p293
      %p295 = scmp.ne.s32.totalorder %s287, %s290
      %p296 = scmp.eq.s32.totalorder %s22, 0
      %p297 = por %p295, %p296
      %p298 = scmp.ne.s32.totalorder %s287, %s290
      %p299 = scmp.eq.s32.totalorder %s27, 1
      %p300 = por %p298, %p299
      %p301 = scmp.ne.s32.totalorder %s290, %s291
      %p302 = scmp.eq.s32.totalorder %s27, 0
      %p303 = por %p301, %p302
      %p304 = scmp.ne.s32.totalorder %s290, %s291
      %p305 = scmp.eq.s32.totalorder %s28, 1
      %p306 = por %p304, %p305
      %p308 = scmp.ne.s32.totalorder %s291, %s307
      %p309 = scmp.eq.s32.totalorder %s28, 0
      %p310 = por %p308, %p309
      %s311 = ssub.s32 %s22, %s29
      %p312 = scmp.eq.s32.totalorder %s311, 0
      %s314 = sadd.s32 %s313, 1
      %s315 = scalar_select %p312, %s313, %s314
      %p318 = pneg %p312
      %p319 = scmp.eq.s32.totalorder %s22, 1
      %p320 = por %p318, %p319
      %p321 = scmp.ne.s32.totalorder %s313, %s316
      %p322 = scmp.eq.s32.totalorder %s22, 0
      %p323 = por %p321, %p322
      %p324 = scmp.ne.s32.totalorder %s313, %s316
      %p325 = scmp.eq.s32.totalorder %s27, 1
      %p326 = por %p324, %p325
      %p327 = scmp.ne.s32.totalorder %s316, %s317
      %p328 = scmp.eq.s32.totalorder %s27, 0
      %p329 = por %p327, %p328
      %p330 = scmp.ne.s32.totalorder %s316, %s317
      %p331 = scmp.eq.s32.totalorder %s28, 1
      %p332 = por %p330, %p331
      %p334 = scmp.ne.s32.totalorder %s317, %s333
      %p335 = scmp.eq.s32.totalorder %s28, 0
      %p336 = por %p334, %p335
      %s337 = ssub.s32 %s22, %s29
      %p338 = scmp.eq.s32.totalorder %s337, 0
      %s340 = sadd.s32 %s339, 1
      %s341 = scalar_select %p338, %s339, %s340
      %p344 = pneg %p338
      %p345 = scmp.eq.s32.totalorder %s22, 1
      %p346 = por %p344, %p345
      %p347 = scmp.ne.s32.totalorder %s339, %s342
      %p348 = scmp.eq.s32.totalorder %s22, 0
      %p349 = por %p347, %p348
      %p350 = scmp.ne.s32.totalorder %s339, %s342
      %p351 = scmp.eq.s32.totalorder %s27, 1
      %p352 = por %p350, %p351
      %p353 = scmp.ne.s32.totalorder %s342, %s343
      %p354 = scmp.eq.s32.totalorder %s27, 0
      %p355 = por %p353, %p354
      %p356 = scmp.ne.s32.totalorder %s342, %s343
      %p357 = scmp.eq.s32.totalorder %s28, 1
      %p358 = por %p356, %p357
      %p360 = scmp.ne.s32.totalorder %s343, %s359
      %p361 = scmp.eq.s32.totalorder %s28, 0
      %p362 = por %p360, %p361
      %s364 = sadd.s32 %s363, 1
      %p367 = scmp.eq.s32.totalorder %s22, 1
      %p368 = scmp.ne.s32.totalorder %s363, %s365
      %p369 = scmp.eq.s32.totalorder %s22, 0
      %p370 = por %p368, %p369
      %p371 = scmp.ne.s32.totalorder %s363, %s365
      %p372 = scmp.eq.s32.totalorder %s27, 1
      %p373 = por %p371, %p372
      %p374 = scmp.ne.s32.totalorder %s365, %s366
      %p375 = scmp.eq.s32.totalorder %s27, 0
      %p376 = por %p374, %p375
      %p377 = scmp.ne.s32.totalorder %s365, %s366
      %p378 = scmp.eq.s32.totalorder %s28, 1
      %p379 = por %p377, %p378
      %p381 = scmp.ne.s32.totalorder %s366, %s380
      %p382 = scmp.eq.s32.totalorder %s28, 0
      %p383 = por %p381, %p382
      %s385 = sadd.s32 %s384, 1
      %p388 = scmp.eq.s32.totalorder %s22, 1
      %p389 = scmp.ne.s32.totalorder %s384, %s386
      %p390 = scmp.eq.s32.totalorder %s22, 0
      %p391 = por %p389, %p390
      %p392 = scmp.ne.s32.totalorder %s384, %s386
      %p393 = scmp.eq.s32.totalorder %s27, 1
      %p394 = por %p392, %p393
      %p395 = scmp.ne.s32.totalorder %s386, %s387
      %p396 = scmp.eq.s32.totalorder %s27, 0
      %p397 = por %p395, %p396
      %p398 = scmp.ne.s32.totalorder %s386, %s387
      %p399 = scmp.eq.s32.totalorder %s28, 1
      %p400 = por %p398, %p399
      %p402 = scmp.ne.s32.totalorder %s387, %s401
      %p403 = scmp.eq.s32.totalorder %s28, 0
      %p404 = por %p402, %p403
      %s406 = sadd.s32 %s405, 1
      %p409 = scmp.eq.s32.totalorder %s22, 1
      %p410 = scmp.ne.s32.totalorder %s405, %s407
      %p411 = scmp.eq.s32.totalorder %s22, 0
      %p412 = por %p410, %p411
      %p413 = scmp.ne.s32.totalorder %s405, %s407
      %p414 = scmp.eq.s32.totalorder %s27, 1
      %p415 = por %p413, %p414
      %p416 = scmp.ne.s32.totalorder %s407, %s408
      %p417 = scmp.eq.s32.totalorder %s27, 0
      %p418 = por %p416, %p417
      %p419 = scmp.ne.s32.totalorder %s407, %s408
      %p420 = scmp.eq.s32.totalorder %s28, 1
      %p421 = por %p419, %p420
      %p423 = scmp.ne.s32.totalorder %s408, %s422
      %p424 = scmp.eq.s32.totalorder %s28, 0
      %p425 = por %p423, %p424
      %p426 = scmp.le.s32.totalorder 1, %s22
      %p427 = scmp.lt.s32.totalorder %s22, 3
      %p428 = pnand %p426, %p427
      %p429 = pneg %p428
      // Predicated region
      $region9: #{tpu_custom_call.1} parent=5 // pred_check
        _
      $region10: #{tpu_custom_call.1} parent=5 // pred_check_branch
        %431 = sbr.rel (%p428) target = $region12
      $region11: #{tpu_custom_call.1} parent=5 // pred_region
        %s432 = ssub.s32 %s22, 1
        // Predicated region
        $region13: #{tpu_custom_call.1} parent=11 // pred_check
          %p433 = pneg %p43
        $region14: #{tpu_custom_call.1} parent=11 // pred_check_branch
          %435 = sbr.rel (%p433) target = $region16
        $region15: #{tpu_custom_call.1} parent=11 // pred_region
          _
        $region16: #{tpu_custom_call.1} parent=11 // pred_fallthru
          _
        // Predicated region
        $region17: #{tpu_custom_call.1} parent=11 // pred_check
          %p436 = pneg %p376
        $region18: #{tpu_custom_call.1} parent=11 // pred_check_branch
          %438 = sbr.rel (%p436) target = $region20
        $region19: #{tpu_custom_call.1} parent=11 // pred_region
          _
        $region20: #{tpu_custom_call.1} parent=11 // pred_fallthru
          _
        // Predicated region
        $region21: #{tpu_custom_call.1} parent=11 // pred_check
          %p439 = pneg %p397
        $region22: #{tpu_custom_call.1} parent=11 // pred_check_branch
          %441 = sbr.rel (%p439) target = $region24
        $region23: #{tpu_custom_call.1} parent=11 // pred_region
          _
        $region24: #{tpu_custom_call.1} parent=11 // pred_fallthru
          _
      $region12: #{tpu_custom_call.1} parent=5 // pred_fallthru
        _
      %p442 = scmp.lt.s32.totalorder %s22, 2
      // Predicated region
      $region25: #{tpu_custom_call.1} parent=5 // pred_check
        %p443 = pneg %p442
      $region26: #{tpu_custom_call.1} parent=5 // pred_check_branch
        %445 = sbr.rel (%p443) target = $region28
      $region27: #{tpu_custom_call.1} parent=5 // pred_region
        // Predicated region
        $region29: #{tpu_custom_call.1} parent=27 // pred_check
          %p446 = pneg %p63
        $region30: #{tpu_custom_call.1} parent=27 // pred_check_branch
          %448 = sbr.rel (%p446) target = $region32
        $region31: #{tpu_custom_call.1} parent=27 // pred_region
          %p449 = scmp.lt.s32.totalorder %s22, 1
          %s450 = scalar_select %p449, %s22, 1
          %s451 = smul.addr %s450, 4
          %s452 = smul.addr %s451, 4
          %s453 = scalar_lea.vmem %s1, %s452
        $region32: #{tpu_custom_call.1} parent=27 // pred_fallthru
          _
        // Predicated region
        $region33: #{tpu_custom_call.1} parent=27 // pred_check
          %p454 = pneg %p89
        $region34: #{tpu_custom_call.1} parent=27 // pred_check_branch
          %456 = sbr.rel (%p454) target = $region36
        $region35: #{tpu_custom_call.1} parent=27 // pred_region
          %p457 = scmp.lt.s32.totalorder %s22, 1
          %s458 = scalar_select %p457, %s22, 1
          %s459 = scalar_lea.vmem %s2, %s458
        $region36: #{tpu_custom_call.1} parent=27 // pred_fallthru
          _
        // Predicated region
        $region37: #{tpu_custom_call.1} parent=27 // pred_check
          %p460 = pneg %p115
        $region38: #{tpu_custom_call.1} parent=27 // pred_check_branch
          %462 = sbr.rel (%p460) target = $region40
        $region39: #{tpu_custom_call.1} parent=27 // pred_region
          %p463 = scmp.lt.s32.totalorder %s22, 1
          %s464 = scalar_select %p463, %s22, 1
          %s465 = smul.addr %s464, 4
          %s466 = smul.addr %s465, 4
          %s467 = scalar_lea.vmem %s3, %s466
        $region40: #{tpu_custom_call.1} parent=27 // pred_fallthru
          _
        // Predicated region
        $region41: #{tpu_custom_call.1} parent=27 // pred_check
          %p468 = pneg %p141
        $region42: #{tpu_custom_call.1} parent=27 // pred_check_branch
          %470 = sbr.rel (%p468) target = $region44
        $region43: #{tpu_custom_call.1} parent=27 // pred_region
          %p471 = scmp.lt.s32.totalorder %s22, 1
          %s472 = scalar_select %p471, %s22, 1
          %s473 = scalar_lea.vmem %s4, %s472
        $region44: #{tpu_custom_call.1} parent=27 // pred_fallthru
          _
        // Predicated region
        $region45: #{tpu_custom_call.1} parent=27 // pred_check
          %p474 = pneg %p167
        $region46: #{tpu_custom_call.1} parent=27 // pred_check_branch
          %476 = sbr.rel (%p474) target = $region48
        $region47: #{tpu_custom_call.1} parent=27 // pred_region
          %p477 = scmp.lt.s32.totalorder %s22, 1
          %s478 = scalar_select %p477, %s22, 1
          %s479 = scalar_lea.vmem %s5, %s478
        $region48: #{tpu_custom_call.1} parent=27 // pred_fallthru
          _
        // Predicated region
        $region49: #{tpu_custom_call.1} parent=27 // pred_check
          %p480 = pneg %p193
        $region50: #{tpu_custom_call.1} parent=27 // pred_check_branch
          %482 = sbr.rel (%p480) target = $region52
        $region51: #{tpu_custom_call.1} parent=27 // pred_region
          %p483 = scmp.lt.s32.totalorder %s22, 1
          %s484 = scalar_select %p483, %s22, 1
          %s485 = scalar_lea.vmem %s6, %s484
        $region52: #{tpu_custom_call.1} parent=27 // pred_fallthru
          _
        // Predicated region
        $region53: #{tpu_custom_call.1} parent=27 // pred_check
          %p486 = pneg %p219
        $region54: #{tpu_custom_call.1} parent=27 // pred_check_branch
          %488 = sbr.rel (%p486) target = $region56
        $region55: #{tpu_custom_call.1} parent=27 // pred_region
          %p489 = scmp.lt.s32.totalorder %s22, 1
          %s490 = scalar_select %p489, %s22, 1
          %s491 = smul.addr %s490, 64
          %s492 = smul.addr %s491, 4
          %s493 = scalar_lea.vmem %s7, %s492
        $region56: #{tpu_custom_call.1} parent=27 // pred_fallthru
          _
        // Predicated region
        $region57: #{tpu_custom_call.1} parent=27 // pred_check
          %p494 = pneg %p245
        $region58: #{tpu_custom_call.1} parent=27 // pred_check_branch
          %496 = sbr.rel (%p494) target = $region60
        $region59: #{tpu_custom_call.1} parent=27 // pred_region
          %p497 = scmp.lt.s32.totalorder %s22, 1
          %s498 = scalar_select %p497, %s22, 1
          %s499 = smul.addr %s498, 16
          %s500 = scalar_lea.vmem %s8, %s499
        $region60: #{tpu_custom_call.1} parent=27 // pred_fallthru
          _
        // Predicated region
        $region61: #{tpu_custom_call.1} parent=27 // pred_check
          %p501 = pneg %p271
        $region62: #{tpu_custom_call.1} parent=27 // pred_check_branch
          %503 = sbr.rel (%p501) target = $region64
        $region63: #{tpu_custom_call.1} parent=27 // pred_region
          %p504 = scmp.lt.s32.totalorder %s22, 1
          %s505 = scalar_select %p504, %s22, 1
          %s506 = smul.addr %s505, 256
          %s507 = smul.addr %s506, 4
          %s508 = scalar_lea.vmem %s9, %s507
        $region64: #{tpu_custom_call.1} parent=27 // pred_fallthru
          _
        // Predicated region
        $region65: #{tpu_custom_call.1} parent=27 // pred_check
          %p509 = pneg %p297
        $region66: #{tpu_custom_call.1} parent=27 // pred_check_branch
          %511 = sbr.rel (%p509) target = $region68
        $region67: #{tpu_custom_call.1} parent=27 // pred_region
          %p512 = scmp.lt.s32.totalorder %s22, 1
          %s513 = scalar_select %p512, %s22, 1
          %s514 = scalar_lea.vmem %s10, %s513
        $region68: #{tpu_custom_call.1} parent=27 // pred_fallthru
          _
        // Predicated region
        $region69: #{tpu_custom_call.1} parent=27 // pred_check
          %p515 = pneg %p323
        $region70: #{tpu_custom_call.1} parent=27 // pred_check_branch
          %517 = sbr.rel (%p515) target = $region72
        $region71: #{tpu_custom_call.1} parent=27 // pred_region
          %p518 = scmp.lt.s32.totalorder %s22, 1
          %s519 = scalar_select %p518, %s22, 1
          %s520 = scalar_lea.vmem %s11, %s519
        $region72: #{tpu_custom_call.1} parent=27 // pred_fallthru
          _
        // Predicated region
        $region73: #{tpu_custom_call.1} parent=27 // pred_check
          %p521 = pneg %p349
        $region74: #{tpu_custom_call.1} parent=27 // pred_check_branch
          %523 = sbr.rel (%p521) target = $region76
        $region75: #{tpu_custom_call.1} parent=27 // pred_region
          %p524 = scmp.lt.s32.totalorder %s22, 1
          %s525 = scalar_select %p524, %s22, 1
          %s526 = scalar_lea.vmem %s12, %s525
        $region76: #{tpu_custom_call.1} parent=27 // pred_fallthru
          _
      $region28: #{tpu_custom_call.1} parent=5 // pred_fallthru
        _
      %p527 = scmp.le.s32.totalorder 1, %s22
      %p528 = scmp.lt.s32.totalorder %s22, 3
      %p529 = pnand %p527, %p528
      %p530 = pneg %p529
      // Predicated region
      $region77: #{tpu_custom_call.1} parent=5 // pred_check
        _
      $region78: #{tpu_custom_call.1} parent=5 // pred_check_branch
        %532 = sbr.rel (%p529) target = $region80
      $region79: #{tpu_custom_call.1} parent=5 // pred_region
        %s533 = ssub.s32 %s22, 1
        %p534 = pneg %p43
        %p535 = pneg %p40
        %p536 = scmp.lt.s32.totalorder %s27, 1
        %s537 = scalar_select %p536, %s27, 1
        %s538 = smul.addr %s537, 4
        %s539 = smul.addr %s538, 4
        %s540 = scalar_lea.vmem %s1, %s539
        %p541 = pneg %p69
        %p542 = pneg %p66
        %p543 = scmp.lt.s32.totalorder %s27, 1
        %s544 = scalar_select %p543, %s27, 1
        %s545 = scalar_lea.vmem %s2, %s544
        %p546 = pneg %p95
        %p547 = pneg %p92
        %p548 = scmp.lt.s32.totalorder %s27, 1
        %s549 = scalar_select %p548, %s27, 1
        %s550 = smul.addr %s549, 4
        %s551 = smul.addr %s550, 4
        %s552 = scalar_lea.vmem %s3, %s551
        %p553 = pneg %p121
        %p554 = pneg %p118
        %p555 = scmp.lt.s32.totalorder %s27, 1
        %s556 = scalar_select %p555, %s27, 1
        %s557 = scalar_lea.vmem %s4, %s556
        %p558 = pneg %p147
        %p559 = pneg %p144
        %p560 = scmp.lt.s32.totalorder %s27, 1
        %s561 = scalar_select %p560, %s27, 1
        %s562 = scalar_lea.vmem %s5, %s561
        %p563 = pneg %p173
        %p564 = pneg %p170
        %p565 = scmp.lt.s32.totalorder %s27, 1
        %s566 = scalar_select %p565, %s27, 1
        %s567 = scalar_lea.vmem %s6, %s566
        %p568 = pneg %p199
        %p569 = pneg %p196
        %p570 = scmp.lt.s32.totalorder %s27, 1
        %s571 = scalar_select %p570, %s27, 1
        %s572 = smul.addr %s571, 64
        %s573 = smul.addr %s572, 4
        %s574 = scalar_lea.vmem %s7, %s573
        %p575 = pneg %p225
        %p576 = pneg %p222
        %p577 = scmp.lt.s32.totalorder %s27, 1
        %s578 = scalar_select %p577, %s27, 1
        %s579 = smul.addr %s578, 16
        %s580 = scalar_lea.vmem %s8, %s579
        %p581 = pneg %p251
        %p582 = pneg %p248
        %p583 = scmp.lt.s32.totalorder %s27, 1
        %s584 = scalar_select %p583, %s27, 1
        %s585 = smul.addr %s584, 256
        %s586 = smul.addr %s585, 4
        %s587 = scalar_lea.vmem %s9, %s586
        %p588 = pneg %p277
        %p589 = pneg %p274
        %p590 = scmp.lt.s32.totalorder %s27, 1
        %s591 = scalar_select %p590, %s27, 1
        %s592 = scalar_lea.vmem %s10, %s591
        %p593 = pneg %p303
        %p594 = pneg %p300
        %p595 = scmp.lt.s32.totalorder %s27, 1
        %s596 = scalar_select %p595, %s27, 1
        %s597 = scalar_lea.vmem %s11, %s596
        %p598 = pneg %p329
        %p599 = pneg %p326
        %p600 = scmp.lt.s32.totalorder %s27, 1
        %s601 = scalar_select %p600, %s27, 1
        %s602 = scalar_lea.vmem %s12, %s601
        %p603 = pneg %p355
        %p604 = pneg %p352
        %p605 = pneg %p376
        %p606 = pneg %p373
        %p607 = pneg %p397
        %p608 = pneg %p394
        %p609 = pneg %p418
        %p610 = pneg %p415
        %p611 = scmp.lt.s32.totalorder %s27, 1
        %s612 = scalar_select %p611, %s27, 1
        %s613 = smul.addr %s612, 4
        %s614 = smul.addr %s613, 4
        %s615 = scalar_lea.vmem %s1, %s614
        %p616 = scmp.lt.s32.totalorder %s27, 1
        %s617 = scalar_select %p616, %s27, 1
        %s618 = scalar_lea.vmem %s2, %s617
        %p619 = scmp.lt.s32.totalorder %s27, 1
        %s620 = scalar_select %p619, %s27, 1
        %s621 = smul.addr %s620, 4
        %s622 = smul.addr %s621, 4
        %s623 = scalar_lea.vmem %s3, %s622
        %p624 = scmp.lt.s32.totalorder %s27, 1
        %s625 = scalar_select %p624, %s27, 1
        %s626 = scalar_lea.vmem %s4, %s625
        %p627 = scmp.lt.s32.totalorder %s27, 1
        %s628 = scalar_select %p627, %s27, 1
        %s629 = scalar_lea.vmem %s5, %s628
        %p630 = scmp.lt.s32.totalorder %s27, 1
        %s631 = scalar_select %p630, %s27, 1
        %s632 = scalar_lea.vmem %s6, %s631
        %p633 = scmp.lt.s32.totalorder %s27, 1
        %s634 = scalar_select %p633, %s27, 1
        %s635 = smul.addr %s634, 64
        %s636 = smul.addr %s635, 4
        %s637 = scalar_lea.vmem %s7, %s636
        %p638 = scmp.lt.s32.totalorder %s27, 1
        %s639 = scalar_select %p638, %s27, 1
        %s640 = smul.addr %s639, 16
        %s641 = scalar_lea.vmem %s8, %s640
        %p642 = scmp.lt.s32.totalorder %s27, 1
        %s643 = scalar_select %p642, %s27, 1
        %s644 = smul.addr %s643, 256
        %s645 = smul.addr %s644, 4
        %s646 = scalar_lea.vmem %s9, %s645
        %p647 = scmp.lt.s32.totalorder %s27, 1
        %s648 = scalar_select %p647, %s27, 1
        %s649 = scalar_lea.vmem %s10, %s648
        %p650 = scmp.lt.s32.totalorder %s27, 1
        %s651 = scalar_select %p650, %s27, 1
        %s652 = scalar_lea.vmem %s11, %s651
        %p653 = scmp.lt.s32.totalorder %s27, 1
        %s654 = scalar_select %p653, %s27, 1
        %s655 = scalar_lea.vmem %s12, %s654
        %p657 = scmp.eq.s32.totalorder %s27, 0
        // Predicated region
        $region81: #{tpu_custom_call.1} parent=79 // pred_check
          %p658 = pneg %p657
        $region82: #{tpu_custom_call.1} parent=79 // pred_check_branch
          %660 = sbr.rel (%p658) target = $region84
        $region83: #{tpu_custom_call.1} parent=79 // pred_region
          %v661 = vld [vmem:[%s0] sm:$0xff]
          %vm662 = vcmask 261120
          %663 = vst.msk [vmem:[#allocation2] sm:$0xff] %vm662, %v661
        $region84: #{tpu_custom_call.1} parent=79 // pred_fallthru
          _
        %v664 = vld [vmem:[#allocation2] sm:$0xff]
        %v665 = vpack.c.bf16 %v664, %v664
        %v666 = vld [vmem:[%s615] sm:$0xf]
        %v667 = vld [vmem:[%s615 + $0x4] sm:$0xf]
        %v668 = vld [vmem:[%s615 + $0x8] sm:$0xf]
        %v669 = vld [vmem:[%s615 + $0xc] sm:$0xf]
        %v670 = vld [vmem:[%s618] sm:$0x1]
        %v672 = vlaneseq
        %v673 = vshrl.u32 %v672, 7
        %v674 = vsub.s32 0, %v673
        %v675 = vrot.slane %v670, %v674
        %v681 = vunpack.c.l.b16 %v666
        %v682 = vunpack.c.l.b16 %v667
        %v683 = vunpack.c.l.b16 %v668
        %v684 = vunpack.c.l.b16 %v669
        %v685 = vpack.c.b16 %v682, %v681
        %v686 = vpack.c.b16 %v684, %v683
        %vm689 = vcmask 261120
        %v691 = vsel %vm689, %v665, 0
        %693 = vmatprep.subr.bf16.mxu0 0
        %694 = vmatpush1.bf16.msra.mxu0 %v685
        %695 = vmatprep.subr.bf16.mxu0 0
        %696 = vmatpush1.bf16.msra.mxu0 %v686
        %697 = vmatprep.subr.bf16.mxu0 0
        %698 = vmatpush1.bf16.msra.mxu0 0
        %699 = vmatprep.subr.bf16.mxu0 0
        %700 = vmatpush1.bf16.msra.mxu0 0
        %701 = vmatprep.subr.bf16.mxu0 0
        %702 = vmatpush1.bf16.msra.mxu0 0
        %703 = vmatprep.subr.bf16.mxu0 0
        %704 = vmatpush1.bf16.msra.mxu0 0
        %705 = vmatprep.subr.bf16.mxu0 0
        %706 = vmatpush1.bf16.msra.mxu0 0
        %707 = vmatprep.subr.bf16.mxu0 0
        %708 = vmatpush1.bf16.msra.mxu0 0
        %709 = vmatprep.subr.bf16.mxu0 0
        %710 = vmatpush1.bf16.msra.mxu0 0
        %711 = vmatprep.subr.bf16.mxu0 0
        %712 = vmatpush1.bf16.msra.mxu0 0
        %713 = vmatprep.subr.bf16.mxu0 0
        %714 = vmatpush1.bf16.msra.mxu0 0
        %715 = vmatprep.subr.bf16.mxu0 0
        %716 = vmatpush1.bf16.msra.mxu0 0
        %717 = vmatprep.subr.bf16.mxu0 0
        %718 = vmatpush1.bf16.msra.mxu0 0
        %719 = vmatprep.subr.bf16.mxu0 0
        %720 = vmatpush1.bf16.msra.mxu0 0
        %721 = vmatprep.subr.bf16.mxu0 0
        %722 = vmatpush1.bf16.msra.mxu0 0
        %723 = vmatprep.subr.bf16.mxu0 0
        %724 = vmatpush1.bf16.msra.mxu0 0
        %725 = vmatprep.mubr.bf16.mxu0 0
        %726 = vmatmul.mubr.bf16.gmra.mrb[0].mxu0 %v691
        %v727 = vpop.f32.mrb[0].mxu0
        %v728 = vadd.f32 %v675, %v727
        %v729 = vpop.f32.mrb[0].mxu0
        %v730 = vpop.f32.mrb[0].mxu0
        %v731 = vpop.f32.mrb[0].mxu0
        %732 = vdwg.mxu0
        %733 = vst [vmem:[#allocation3] sm:$0xff] %v728
        %v734 = vld [vmem:[#allocation3] sm:$0xff]
        %736 = vrot.lane.b32.xlu0 %v734, 96
        %v737 = vpop.permute.xlu0 %736
        %vm738 = vcmask 64512
        %v739 = vsel %vm738, %v734, 0
        %v741 = vsel %vm738, %v737, 0
        %743 = vmatprep.subr.mxu0 0.0
        %744 = vmatpush1.xpose.msra.mxu0 %v741
        %745 = vmatprep.subr.mxu0 0.0
        %746 = vmatpush1.xpose.msra.mxu0 0.0
        %747 = vmatprep.subr.mxu0 0.0
        %748 = vmatpush1.xpose.msra.mxu0 0.0
        %749 = vmatprep.subr.mxu0 0.0
        %750 = vmatpush1.xpose.msra.mxu0 0.0
        %751 = vmatprep.subr.mxu0 0.0
        %752 = vmatpush1.xpose.msra.mxu0 0.0
        %753 = vmatprep.subr.mxu0 0.0
        %754 = vmatpush1.xpose.msra.mxu0 0.0
        %755 = vmatprep.subr.mxu0 0.0
        %756 = vmatpush1.xpose.msra.mxu0 0.0
        %757 = vmatprep.subr.mxu0 0.0
        %758 = vmatpush1.xpose.msra.mxu0 0.0
        %759 = vmatprep.subr.mxu0 0.0
        %760 = vmatpush1.xpose.msra.mxu0 0.0
        %761 = vmatprep.subr.mxu0 0.0
        %762 = vmatpush1.xpose.msra.mxu0 0.0
        %763 = vmatprep.subr.mxu0 0.0
        %764 = vmatpush1.xpose.msra.mxu0 0.0
        %765 = vmatprep.subr.mxu0 0.0
        %766 = vmatpush1.xpose.msra.mxu0 0.0
        %767 = vmatprep.subr.mxu0 0.0
        %768 = vmatpush1.xpose.msra.mxu0 0.0
        %769 = vmatprep.subr.mxu0 0.0
        %770 = vmatpush1.xpose.msra.mxu0 0.0
        %771 = vmatprep.subr.mxu0 0.0
        %772 = vmatpush1.xpose.msra.mxu0 0.0
        %773 = vmatprep.subr.mxu0 0.0
        %774 = vmatpush1.xpose.msra.mxu0 0.0
        %775 = vmatprep.subr.mxu0 0.0
        %776 = vmatpush1.xpose.msra.mxu0 0.0
        %777 = vmatprep.subr.mxu0 0.0
        %778 = vmatpush1.xpose.msra.mxu0 0.0
        %779 = vmatprep.subr.mxu0 0.0
        %780 = vmatpush1.xpose.msra.mxu0 0.0
        %781 = vmatprep.subr.mxu0 0.0
        %782 = vmatpush1.xpose.msra.mxu0 0.0
        %783 = vmatprep.subr.mxu0 0.0
        %784 = vmatpush1.xpose.msra.mxu0 0.0
        %785 = vmatprep.subr.mxu0 0.0
        %786 = vmatpush1.xpose.msra.mxu0 0.0
        %787 = vmatprep.subr.mxu0 0.0
        %788 = vmatpush1.xpose.msra.mxu0 0.0
        %789 = vmatprep.subr.mxu0 0.0
        %790 = vmatpush1.xpose.msra.mxu0 0.0
        %791 = vmatprep.subr.mxu0 0.0
        %792 = vmatpush1.xpose.msra.mxu0 0.0
        %793 = vmatprep.subr.mxu0 0.0
        %794 = vmatpush1.xpose.msra.mxu0 0.0
        %795 = vmatprep.subr.mxu0 0.0
        %796 = vmatpush1.xpose.msra.mxu0 0.0
        %797 = vmatprep.subr.mxu0 0.0
        %798 = vmatpush1.xpose.msra.mxu0 0.0
        %799 = vmatprep.subr.mxu0 0.0
        %800 = vmatpush1.xpose.msra.mxu0 0.0
        %801 = vmatprep.subr.mxu0 0.0
        %802 = vmatpush1.xpose.msra.mxu0 0.0
        %803 = vmatprep.subr.mxu0 0.0
        %804 = vmatpush1.xpose.msra.mxu0 0.0
        %805 = vmatprep.subr.mxu0 0.0
        %806 = vmatpush1.xpose.msra.mxu0 0.0
        %807 = vmatprep.mubr.f32.mxu0 0.0
        %808 = vmatmul.mubr.f32.gmra.mrb[0].mxu0 %v739
        %v809 = vpop.f32.mrb[0].mxu0
        %v810 = vadd.f32 0.0, %v809
        %v811 = vpop.f32.mrb[0].mxu0
        %812 = vdwg.mxu0
        %v813 = vsel %vm738, %v810, -inf
        %814 = vmax.xlane.f32.xlu0 %v813
        %v815 = vpop.xlane.xlu0 %814
        %v816 = vsub.f32 %v810, %v815
        %v817 = vmul.f32 %v816, 1.442695
        %v818 = vpow.pop %v817
        %v819 = vsel %vm738, %v818, 0.0
        %820 = vadd.xlane.f32.xlu0 %v819
        %v821 = vpop.xlane.xlu0 %820
        %v822 = vrcp.pop %v821
        %v823 = vmul.f32 %v818, %v822
        %824 = vrot.lane.b32.xlu0 %v734, 64
        %v825 = vpop.permute.xlu0 %824
        %v828 = vsel %vm738, %v823, 0
        %830 = vmatprep.subr.mxu0 0.0
        %831 = vmatpush1.msra.mxu0 %v825
        %832 = vmatprep.subr.mxu0 0.0
        %833 = vmatpush1.msra.mxu0 0.0
        %834 = vmatprep.subr.mxu0 0.0
        %835 = vmatpush1.msra.mxu0 0.0
        %836 = vmatprep.subr.mxu0 0.0
        %837 = vmatpush1.msra.mxu0 0.0
        %838 = vmatprep.subr.mxu0 0.0
        %839 = vmatpush1.msra.mxu0 0.0
        %840 = vmatprep.subr.mxu0 0.0
        %841 = vmatpush1.msra.mxu0 0.0
        %842 = vmatprep.subr.mxu0 0.0
        %843 = vmatpush1.msra.mxu0 0.0
        %844 = vmatprep.subr.mxu0 0.0
        %845 = vmatpush1.msra.mxu0 0.0
        %846 = vmatprep.subr.mxu0 0.0
        %847 = vmatpush1.msra.mxu0 0.0
        %848 = vmatprep.subr.mxu0 0.0
        %849 = vmatpush1.msra.mxu0 0.0
        %850 = vmatprep.subr.mxu0 0.0
        %851 = vmatpush1.msra.mxu0 0.0
        %852 = vmatprep.subr.mxu0 0.0
        %853 = vmatpush1.msra.mxu0 0.0
        %854 = vmatprep.subr.mxu0 0.0
        %855 = vmatpush1.msra.mxu0 0.0
        %856 = vmatprep.subr.mxu0 0.0
        %857 = vmatpush1.msra.mxu0 0.0
        %858 = vmatprep.subr.mxu0 0.0
        %859 = vmatpush1.msra.mxu0 0.0
        %860 = vmatprep.subr.mxu0 0.0
        %861 = vmatpush1.msra.mxu0 0.0
        %862 = vmatprep.subr.mxu0 0.0
        %863 = vmatpush1.msra.mxu0 0.0
        %864 = vmatprep.subr.mxu0 0.0
        %865 = vmatpush1.msra.mxu0 0.0
        %866 = vmatprep.subr.mxu0 0.0
        %867 = vmatpush1.msra.mxu0 0.0
        %868 = vmatprep.subr.mxu0 0.0
        %869 = vmatpush1.msra.mxu0 0.0
        %870 = vmatprep.subr.mxu0 0.0
        %871 = vmatpush1.msra.mxu0 0.0
        %872 = vmatprep.subr.mxu0 0.0
        %873 = vmatpush1.msra.mxu0 0.0
        %874 = vmatprep.subr.mxu0 0.0
        %875 = vmatpush1.msra.mxu0 0.0
        %876 = vmatprep.subr.mxu0 0.0
        %877 = vmatpush1.msra.mxu0 0.0
        %878 = vmatprep.subr.mxu0 0.0
        %879 = vmatpush1.msra.mxu0 0.0
        %880 = vmatprep.subr.mxu0 0.0
        %881 = vmatpush1.msra.mxu0 0.0
        %882 = vmatprep.subr.mxu0 0.0
        %883 = vmatpush1.msra.mxu0 0.0
        %884 = vmatprep.subr.mxu0 0.0
        %885 = vmatpush1.msra.mxu0 0.0
        %886 = vmatprep.subr.mxu0 0.0
        %887 = vmatpush1.msra.mxu0 0.0
        %888 = vmatprep.subr.mxu0 0.0
        %889 = vmatpush1.msra.mxu0 0.0
        %890 = vmatprep.subr.mxu0 0.0
        %891 = vmatpush1.msra.mxu0 0.0
        %892 = vmatprep.subr.mxu0 0.0
        %893 = vmatpush1.msra.mxu0 0.0
        %894 = vmatprep.mubr.f32.mxu0 0.0
        %895 = vmatmul.mubr.f32.gmra.mrb[0].mxu0 %v828
        %v896 = vpop.f32.mrb[0].mxu0
        %v897 = vadd.f32 0.0, %v896
        %v898 = vpop.f32.mrb[0].mxu0
        %899 = vdwg.mxu0
        %900 = vst.msk [vmem:[#allocation4] sm:$0xff] %vm738, %v897
        %v901 = vld [vmem:[#allocation3] sm:$0xff]
        %903 = vrot.lane.b32.xlu0 %v901, 120
        %v904 = vpop.permute.xlu0 %903
        %905 = vrot.lane.b32.xlu0 %v901, 88
        %v906 = vpop.permute.xlu0 %905
        %v907 = vsel %vm738, %v904, 0
        %v909 = vsel %vm738, %v906, 0
        %911 = vmatprep.subr.mxu0 0.0
        %912 = vmatpush1.xpose.msra.mxu0 %v909
        %913 = vmatprep.subr.mxu0 0.0
        %914 = vmatpush1.xpose.msra.mxu0 0.0
        %915 = vmatprep.subr.mxu0 0.0
        %916 = vmatpush1.xpose.msra.mxu0 0.0
        %917 = vmatprep.subr.mxu0 0.0
        %918 = vmatpush1.xpose.msra.mxu0 0.0
        %919 = vmatprep.subr.mxu0 0.0
        %920 = vmatpush1.xpose.msra.mxu0 0.0
        %921 = vmatprep.subr.mxu0 0.0
        %922 = vmatpush1.xpose.msra.mxu0 0.0
        %923 = vmatprep.subr.mxu0 0.0
        %924 = vmatpush1.xpose.msra.mxu0 0.0
        %925 = vmatprep.subr.mxu0 0.0
        %926 = vmatpush1.xpose.msra.mxu0 0.0
        %927 = vmatprep.subr.mxu0 0.0
        %928 = vmatpush1.xpose.msra.mxu0 0.0
        %929 = vmatprep.subr.mxu0 0.0
        %930 = vmatpush1.xpose.msra.mxu0 0.0
        %931 = vmatprep.subr.mxu0 0.0
        %932 = vmatpush1.xpose.msra.mxu0 0.0
        %933 = vmatprep.subr.mxu0 0.0
        %934 = vmatpush1.xpose.msra.mxu0 0.0
        %935 = vmatprep.subr.mxu0 0.0
        %936 = vmatpush1.xpose.msra.mxu0 0.0
        %937 = vmatprep.subr.mxu0 0.0
        %938 = vmatpush1.xpose.msra.mxu0 0.0
        %939 = vmatprep.subr.mxu0 0.0
        %940 = vmatpush1.xpose.msra.mxu0 0.0
        %941 = vmatprep.subr.mxu0 0.0
        %942 = vmatpush1.xpose.msra.mxu0 0.0
        %943 = vmatprep.subr.mxu0 0.0
        %944 = vmatpush1.xpose.msra.mxu0 0.0
        %945 = vmatprep.subr.mxu0 0.0
        %946 = vmatpush1.xpose.msra.mxu0 0.0
        %947 = vmatprep.subr.mxu0 0.0
        %948 = vmatpush1.xpose.msra.mxu0 0.0
        %949 = vmatprep.subr.mxu0 0.0
        %950 = vmatpush1.xpose.msra.mxu0 0.0
        %951 = vmatprep.subr.mxu0 0.0
        %952 = vmatpush1.xpose.msra.mxu0 0.0
        %953 = vmatprep.subr.mxu0 0.0
        %954 = vmatpush1.xpose.msra.mxu0 0.0
        %955 = vmatprep.subr.mxu0 0.0
        %956 = vmatpush1.xpose.msra.mxu0 0.0
        %957 = vmatprep.subr.mxu0 0.0
        %958 = vmatpush1.xpose.msra.mxu0 0.0
        %959 = vmatprep.subr.mxu0 0.0
        %960 = vmatpush1.xpose.msra.mxu0 0.0
        %961 = vmatprep.subr.mxu0 0.0
        %962 = vmatpush1.xpose.msra.mxu0 0.0
        %963 = vmatprep.subr.mxu0 0.0
        %964 = vmatpush1.xpose.msra.mxu0 0.0
        %965 = vmatprep.subr.mxu0 0.0
        %966 = vmatpush1.xpose.msra.mxu0 0.0
        %967 = vmatprep.subr.mxu0 0.0
        %968 = vmatpush1.xpose.msra.mxu0 0.0
        %969 = vmatprep.subr.mxu0 0.0
        %970 = vmatpush1.xpose.msra.mxu0 0.0
        %971 = vmatprep.subr.mxu0 0.0
        %972 = vmatpush1.xpose.msra.mxu0 0.0
        %973 = vmatprep.subr.mxu0 0.0
        %974 = vmatpush1.xpose.msra.mxu0 0.0
        %975 = vmatprep.mubr.f32.mxu0 0.0
        %976 = vmatmul.mubr.f32.gmra.mrb[0].mxu0 %v907
        %v977 = vpop.f32.mrb[0].mxu0
        %v978 = vadd.f32 0.0, %v977
        %v979 = vpop.f32.mrb[0].mxu0
        %980 = vdwg.mxu0
        %v981 = vsel %vm738, %v978, -inf
        %982 = vmax.xlane.f32.xlu0 %v981
        %v983 = vpop.xlane.xlu0 %982
        %v984 = vsub.f32 %v978, %v983
        %v985 = vmul.f32 %v984, 1.442695
        %v986 = vpow.pop %v985
        %v987 = vsel %vm738, %v986, 0.0
        %988 = vadd.xlane.f32.xlu0 %v987
        %v989 = vpop.xlane.xlu0 %988
        %v990 = vrcp.pop %v989
        %v991 = vmul.f32 %v986, %v990
        %992 = vrot.lane.b32.xlu0 %v901, 56
        %v993 = vpop.permute.xlu0 %992
        %v996 = vsel %vm738, %v991, 0
        %998 = vmatprep.subr.mxu0 0.0
        %999 = vmatpush1.msra.mxu0 %v993
        %1000 = vmatprep.subr.mxu0 0.0
        %1001 = vmatpush1.msra.mxu0 0.0
        %1002 = vmatprep.subr.mxu0 0.0
        %1003 = vmatpush1.msra.mxu0 0.0
        %1004 = vmatprep.subr.mxu0 0.0
        %1005 = vmatpush1.msra.mxu0 0.0
        %1006 = vmatprep.subr.mxu0 0.0
        %1007 = vmatpush1.msra.mxu0 0.0
        %1008 = vmatprep.subr.mxu0 0.0
        %1009 = vmatpush1.msra.mxu0 0.0
        %1010 = vmatprep.subr.mxu0 0.0
        %1011 = vmatpush1.msra.mxu0 0.0
        %1012 = vmatprep.subr.mxu0 0.0
        %1013 = vmatpush1.msra.mxu0 0.0
        %1014 = vmatprep.subr.mxu0 0.0
        %1015 = vmatpush1.msra.mxu0 0.0
        %1016 = vmatprep.subr.mxu0 0.0
        %1017 = vmatpush1.msra.mxu0 0.0
        %1018 = vmatprep.subr.mxu0 0.0
        %1019 = vmatpush1.msra.mxu0 0.0
        %1020 = vmatprep.subr.mxu0 0.0
        %1021 = vmatpush1.msra.mxu0 0.0
        %1022 = vmatprep.subr.mxu0 0.0
        %1023 = vmatpush1.msra.mxu0 0.0
        %1024 = vmatprep.subr.mxu0 0.0
        %1025 = vmatpush1.msra.mxu0 0.0
        %1026 = vmatprep.subr.mxu0 0.0
        %1027 = vmatpush1.msra.mxu0 0.0
        %1028 = vmatprep.subr.mxu0 0.0
        %1029 = vmatpush1.msra.mxu0 0.0
        %1030 = vmatprep.subr.mxu0 0.0
        %1031 = vmatpush1.msra.mxu0 0.0
        %1032 = vmatprep.subr.mxu0 0.0
        %1033 = vmatpush1.msra.mxu0 0.0
        %1034 = vmatprep.subr.mxu0 0.0
        %1035 = vmatpush1.msra.mxu0 0.0
        %1036 = vmatprep.subr.mxu0 0.0
        %1037 = vmatpush1.msra.mxu0 0.0
        %1038 = vmatprep.subr.mxu0 0.0
        %1039 = vmatpush1.msra.mxu0 0.0
        %1040 = vmatprep.subr.mxu0 0.0
        %1041 = vmatpush1.msra.mxu0 0.0
        %1042 = vmatprep.subr.mxu0 0.0
        %1043 = vmatpush1.msra.mxu0 0.0
        %1044 = vmatprep.subr.mxu0 0.0
        %1045 = vmatpush1.msra.mxu0 0.0
        %1046 = vmatprep.subr.mxu0 0.0
        %1047 = vmatpush1.msra.mxu0 0.0
        %1048 = vmatprep.subr.mxu0 0.0
        %1049 = vmatpush1.msra.mxu0 0.0
        %1050 = vmatprep.subr.mxu0 0.0
        %1051 = vmatpush1.msra.mxu0 0.0
        %1052 = vmatprep.subr.mxu0 0.0
        %1053 = vmatpush1.msra.mxu0 0.0
        %1054 = vmatprep.subr.mxu0 0.0
        %1055 = vmatpush1.msra.mxu0 0.0
        %1056 = vmatprep.subr.mxu0 0.0
        %1057 = vmatpush1.msra.mxu0 0.0
        %1058 = vmatprep.subr.mxu0 0.0
        %1059 = vmatpush1.msra.mxu0 0.0
        %1060 = vmatprep.subr.mxu0 0.0
        %1061 = vmatpush1.msra.mxu0 0.0
        %1062 = vmatprep.mubr.f32.mxu0 0.0
        %1063 = vmatmul.mubr.f32.gmra.mrb[0].mxu0 %v996
        %v1064 = vpop.f32.mrb[0].mxu0
        %v1065 = vadd.f32 0.0, %v1064
        %v1066 = vpop.f32.mrb[0].mxu0
        %1067 = vdwg.mxu0
        %1069 = vrot.lane.b32.xlu0 %v1065, 8
        %v1070 = vpop.permute.xlu0 %1069
        %vm1072 = vcmask 130112
        %1073 = vst.msk [vmem:[#allocation4] sm:$0xff] %vm1072, %v1070
        %v1074 = vld [vmem:[#allocation3] sm:$0xff]
        %1076 = vrot.lane.b32.xlu0 %v1074, 112
        %v1077 = vpop.permute.xlu0 %1076
        %1078 = vrot.lane.b32.xlu0 %v1074, 80
        %v1079 = vpop.permute.xlu0 %1078
        %v1080 = vsel %vm738, %v1077, 0
        %v1082 = vsel %vm738, %v1079, 0
        %1084 = vmatprep.subr.mxu0 0.0
        %1085 = vmatpush1.xpose.msra.mxu0 %v1082
        %1086 = vmatprep.subr.mxu0 0.0
        %1087 = vmatpush1.xpose.msra.mxu0 0.0
        %1088 = vmatprep.subr.mxu0 0.0
        %1089 = vmatpush1.xpose.msra.mxu0 0.0
        %1090 = vmatprep.subr.mxu0 0.0
        %1091 = vmatpush1.xpose.msra.mxu0 0.0
        %1092 = vmatprep.subr.mxu0 0.0
        %1093 = vmatpush1.xpose.msra.mxu0 0.0
        %1094 = vmatprep.subr.mxu0 0.0
        %1095 = vmatpush1.xpose.msra.mxu0 0.0
        %1096 = vmatprep.subr.mxu0 0.0
        %1097 = vmatpush1.xpose.msra.mxu0 0.0
        %1098 = vmatprep.subr.mxu0 0.0
        %1099 = vmatpush1.xpose.msra.mxu0 0.0
        %1100 = vmatprep.subr.mxu0 0.0
        %1101 = vmatpush1.xpose.msra.mxu0 0.0
        %1102 = vmatprep.subr.mxu0 0.0
        %1103 = vmatpush1.xpose.msra.mxu0 0.0
        %1104 = vmatprep.subr.mxu0 0.0
        %1105 = vmatpush1.xpose.msra.mxu0 0.0
        %1106 = vmatprep.subr.mxu0 0.0
        %1107 = vmatpush1.xpose.msra.mxu0 0.0
        %1108 = vmatprep.subr.mxu0 0.0
        %1109 = vmatpush1.xpose.msra.mxu0 0.0
        %1110 = vmatprep.subr.mxu0 0.0
        %1111 = vmatpush1.xpose.msra.mxu0 0.0
        %1112 = vmatprep.subr.mxu0 0.0
        %1113 = vmatpush1.xpose.msra.mxu0 0.0
        %1114 = vmatprep.subr.mxu0 0.0
        %1115 = vmatpush1.xpose.msra.mxu0 0.0
        %1116 = vmatprep.subr.mxu0 0.0
        %1117 = vmatpush1.xpose.msra.mxu0 0.0
        %1118 = vmatprep.subr.mxu0 0.0
        %1119 = vmatpush1.xpose.msra.mxu0 0.0
        %1120 = vmatprep.subr.mxu0 0.0
        %1121 = vmatpush1.xpose.msra.mxu0 0.0
        %1122 = vmatprep.subr.mxu0 0.0
        %1123 = vmatpush1.xpose.msra.mxu0 0.0
        %1124 = vmatprep.subr.mxu0 0.0
        %1125 = vmatpush1.xpose.msra.mxu0 0.0
        %1126 = vmatprep.subr.mxu0 0.0
        %1127 = vmatpush1.xpose.msra.mxu0 0.0
        %1128 = vmatprep.subr.mxu0 0.0
        %1129 = vmatpush1.xpose.msra.mxu0 0.0
        %1130 = vmatprep.subr.mxu0 0.0
        %1131 = vmatpush1.xpose.msra.mxu0 0.0
        %1132 = vmatprep.subr.mxu0 0.0
        %1133 = vmatpush1.xpose.msra.mxu0 0.0
        %1134 = vmatprep.subr.mxu0 0.0
        %1135 = vmatpush1.xpose.msra.mxu0 0.0
        %1136 = vmatprep.subr.mxu0 0.0
        %1137 = vmatpush1.xpose.msra.mxu0 0.0
        %1138 = vmatprep.subr.mxu0 0.0
        %1139 = vmatpush1.xpose.msra.mxu0 0.0
        %1140 = vmatprep.subr.mxu0 0.0
        %1141 = vmatpush1.xpose.msra.mxu0 0.0
        %1142 = vmatprep.subr.mxu0 0.0
        %1143 = vmatpush1.xpose.msra.mxu0 0.0
        %1144 = vmatprep.subr.mxu0 0.0
        %1145 = vmatpush1.xpose.msra.mxu0 0.0
        %1146 = vmatprep.subr.mxu0 0.0
        %1147 = vmatpush1.xpose.msra.mxu0 0.0
        %1148 = vmatprep.mubr.f32.mxu0 0.0
        %1149 = vmatmul.mubr.f32.gmra.mrb[0].mxu0 %v1080
        %v1150 = vpop.f32.mrb[0].mxu0
        %v1151 = vadd.f32 0.0, %v1150
        %v1152 = vpop.f32.mrb[0].mxu0
        %1153 = vdwg.mxu0
        %v1154 = vsel %vm738, %v1151, -inf
        %1155 = vmax.xlane.f32.xlu0 %v1154
        %v1156 = vpop.xlane.xlu0 %1155
        %v1157 = vsub.f32 %v1151, %v1156
        %v1158 = vmul.f32 %v1157, 1.442695
        %v1159 = vpow.pop %v1158
        %v1160 = vsel %vm738, %v1159, 0.0
        %1161 = vadd.xlane.f32.xlu0 %v1160
        %v1162 = vpop.xlane.xlu0 %1161
        %v1163 = vrcp.pop %v1162
        %v1164 = vmul.f32 %v1159, %v1163
        %1165 = vrot.lane.b32.xlu0 %v1074, 48
        %v1166 = vpop.permute.xlu0 %1165
        %v1169 = vsel %vm738, %v1164, 0
        %1171 = vmatprep.subr.mxu0 0.0
        %1172 = vmatpush1.msra.mxu0 %v1166
        %1173 = vmatprep.subr.mxu0 0.0
        %1174 = vmatpush1.msra.mxu0 0.0
        %1175 = vmatprep.subr.mxu0 0.0
        %1176 = vmatpush1.msra.mxu0 0.0
        %1177 = vmatprep.subr.mxu0 0.0
        %1178 = vmatpush1.msra.mxu0 0.0
        %1179 = vmatprep.subr.mxu0 0.0
        %1180 = vmatpush1.msra.mxu0 0.0
        %1181 = vmatprep.subr.mxu0 0.0
        %1182 = vmatpush1.msra.mxu0 0.0
        %1183 = vmatprep.subr.mxu0 0.0
        %1184 = vmatpush1.msra.mxu0 0.0
        %1185 = vmatprep.subr.mxu0 0.0
        %1186 = vmatpush1.msra.mxu0 0.0
        %1187 = vmatprep.subr.mxu0 0.0
        %1188 = vmatpush1.msra.mxu0 0.0
        %1189 = vmatprep.subr.mxu0 0.0
        %1190 = vmatpush1.msra.mxu0 0.0
        %1191 = vmatprep.subr.mxu0 0.0
        %1192 = vmatpush1.msra.mxu0 0.0
        %1193 = vmatprep.subr.mxu0 0.0
        %1194 = vmatpush1.msra.mxu0 0.0
        %1195 = vmatprep.subr.mxu0 0.0
        %1196 = vmatpush1.msra.mxu0 0.0
        %1197 = vmatprep.subr.mxu0 0.0
        %1198 = vmatpush1.msra.mxu0 0.0
        %1199 = vmatprep.subr.mxu0 0.0
        %1200 = vmatpush1.msra.mxu0 0.0
        %1201 = vmatprep.subr.mxu0 0.0
        %1202 = vmatpush1.msra.mxu0 0.0
        %1203 = vmatprep.subr.mxu0 0.0
        %1204 = vmatpush1.msra.mxu0 0.0
        %1205 = vmatprep.subr.mxu0 0.0
        %1206 = vmatpush1.msra.mxu0 0.0
        %1207 = vmatprep.subr.mxu0 0.0
        %1208 = vmatpush1.msra.mxu0 0.0
        %1209 = vmatprep.subr.mxu0 0.0
        %1210 = vmatpush1.msra.mxu0 0.0
        %1211 = vmatprep.subr.mxu0 0.0
        %1212 = vmatpush1.msra.mxu0 0.0
        %1213 = vmatprep.subr.mxu0 0.0
        %1214 = vmatpush1.msra.mxu0 0.0
        %1215 = vmatprep.subr.mxu0 0.0
        %1216 = vmatpush1.msra.mxu0 0.0
        %1217 = vmatprep.subr.mxu0 0.0
        %1218 = vmatpush1.msra.mxu0 0.0
        %1219 = vmatprep.subr.mxu0 0.0
        %1220 = vmatpush1.msra.mxu0 0.0
        %1221 = vmatprep.subr.mxu0 0.0
        %1222 = vmatpush1.msra.mxu0 0.0
        %1223 = vmatprep.subr.mxu0 0.0
        %1224 = vmatpush1.msra.mxu0 0.0
        %1225 = vmatprep.subr.mxu0 0.0
        %1226 = vmatpush1.msra.mxu0 0.0
        %1227 = vmatprep.subr.mxu0 0.0
        %1228 = vmatpush1.msra.mxu0 0.0
        %1229 = vmatprep.subr.mxu0 0.0
        %1230 = vmatpush1.msra.mxu0 0.0
        %1231 = vmatprep.subr.mxu0 0.0
        %1232 = vmatpush1.msra.mxu0 0.0
        %1233 = vmatprep.subr.mxu0 0.0
        %1234 = vmatpush1.msra.mxu0 0.0
        %1235 = vmatprep.mubr.f32.mxu0 0.0
        %1236 = vmatmul.mubr.f32.gmra.mrb[0].mxu0 %v1169
        %v1237 = vpop.f32.mrb[0].mxu0
        %v1238 = vadd.f32 0.0, %v1237
        %v1239 = vpop.f32.mrb[0].mxu0
        %1240 = vdwg.mxu0
        %1242 = vrot.lane.b32.xlu0 %v1238, 16
        %v1243 = vpop.permute.xlu0 %1242
        %vm1245 = vcmask 195712
        %1246 = vst.msk [vmem:[#allocation4] sm:$0xff] %vm1245, %v1243
        %v1247 = vld [vmem:[#allocation3] sm:$0xff]
        %1249 = vrot.lane.b32.xlu0 %v1247, 104
        %v1250 = vpop.permute.xlu0 %1249
        %1251 = vrot.lane.b32.xlu0 %v1247, 72
        %v1252 = vpop.permute.xlu0 %1251
        %v1253 = vsel %vm738, %v1250, 0
        %v1255 = vsel %vm738, %v1252, 0
        %1257 = vmatprep.subr.mxu0 0.0
        %1258 = vmatpush1.xpose.msra.mxu0 %v1255
        %1259 = vmatprep.subr.mxu0 0.0
        %1260 = vmatpush1.xpose.msra.mxu0 0.0
        %1261 = vmatprep.subr.mxu0 0.0
        %1262 = vmatpush1.xpose.msra.mxu0 0.0
        %1263 = vmatprep.subr.mxu0 0.0
        %1264 = vmatpush1.xpose.msra.mxu0 0.0
        %1265 = vmatprep.subr.mxu0 0.0
        %1266 = vmatpush1.xpose.msra.mxu0 0.0
        %1267 = vmatprep.subr.mxu0 0.0
        %1268 = vmatpush1.xpose.msra.mxu0 0.0
        %1269 = vmatprep.subr.mxu0 0.0
        %1270 = vmatpush1.xpose.msra.mxu0 0.0
        %1271 = vmatprep.subr.mxu0 0.0
        %1272 = vmatpush1.xpose.msra.mxu0 0.0
        %1273 = vmatprep.subr.mxu0 0.0
        %1274 = vmatpush1.xpose.msra.mxu0 0.0
        %1275 = vmatprep.subr.mxu0 0.0
        %1276 = vmatpush1.xpose.msra.mxu0 0.0
        %1277 = vmatprep.subr.mxu0 0.0
        %1278 = vmatpush1.xpose.msra.mxu0 0.0
        %1279 = vmatprep.subr.mxu0 0.0
        %1280 = vmatpush1.xpose.msra.mxu0 0.0
        %1281 = vmatprep.subr.mxu0 0.0
        %1282 = vmatpush1.xpose.msra.mxu0 0.0
        %1283 = vmatprep.subr.mxu0 0.0
        %1284 = vmatpush1.xpose.msra.mxu0 0.0
        %1285 = vmatprep.subr.mxu0 0.0
        %1286 = vmatpush1.xpose.msra.mxu0 0.0
        %1287 = vmatprep.subr.mxu0 0.0
        %1288 = vmatpush1.xpose.msra.mxu0 0.0
        %1289 = vmatprep.subr.mxu0 0.0
        %1290 = vmatpush1.xpose.msra.mxu0 0.0
        %1291 = vmatprep.subr.mxu0 0.0
        %1292 = vmatpush1.xpose.msra.mxu0 0.0
        %1293 = vmatprep.subr.mxu0 0.0
        %1294 = vmatpush1.xpose.msra.mxu0 0.0
        %1295 = vmatprep.subr.mxu0 0.0
        %1296 = vmatpush1.xpose.msra.mxu0 0.0
        %1297 = vmatprep.subr.mxu0 0.0
        %1298 = vmatpush1.xpose.msra.mxu0 0.0
        %1299 = vmatprep.subr.mxu0 0.0
        %1300 = vmatpush1.xpose.msra.mxu0 0.0
        %1301 = vmatprep.subr.mxu0 0.0
        %1302 = vmatpush1.xpose.msra.mxu0 0.0
        %1303 = vmatprep.subr.mxu0 0.0
        %1304 = vmatpush1.xpose.msra.mxu0 0.0
        %1305 = vmatprep.subr.mxu0 0.0
        %1306 = vmatpush1.xpose.msra.mxu0 0.0
        %1307 = vmatprep.subr.mxu0 0.0
        %1308 = vmatpush1.xpose.msra.mxu0 0.0
        %1309 = vmatprep.subr.mxu0 0.0
        %1310 = vmatpush1.xpose.msra.mxu0 0.0
        %1311 = vmatprep.subr.mxu0 0.0
        %1312 = vmatpush1.xpose.msra.mxu0 0.0
        %1313 = vmatprep.subr.mxu0 0.0
        %1314 = vmatpush1.xpose.msra.mxu0 0.0
        %1315 = vmatprep.subr.mxu0 0.0
        %1316 = vmatpush1.xpose.msra.mxu0 0.0
        %1317 = vmatprep.subr.mxu0 0.0
        %1318 = vmatpush1.xpose.msra.mxu0 0.0
        %1319 = vmatprep.subr.mxu0 0.0
        %1320 = vmatpush1.xpose.msra.mxu0 0.0
        %1321 = vmatprep.mubr.f32.mxu0 0.0
        %1322 = vmatmul.mubr.f32.gmra.mrb[0].mxu0 %v1253
        %v1323 = vpop.f32.mrb[0].mxu0
        %v1324 = vadd.f32 0.0, %v1323
        %v1325 = vpop.f32.mrb[0].mxu0
        %1326 = vdwg.mxu0
        %v1327 = vsel %vm738, %v1324, -inf
        %1328 = vmax.xlane.f32.xlu0 %v1327
        %v1329 = vpop.xlane.xlu0 %1328
        %v1330 = vsub.f32 %v1324, %v1329
        %v1331 = vmul.f32 %v1330, 1.442695
        %v1332 = vpow.pop %v1331
        %v1333 = vsel %vm738, %v1332, 0.0
        %1334 = vadd.xlane.f32.xlu0 %v1333
        %v1335 = vpop.xlane.xlu0 %1334
        %v1336 = vrcp.pop %v1335
        %v1337 = vmul.f32 %v1332, %v1336
        %1338 = vrot.lane.b32.xlu0 %v1247, 40
        %v1339 = vpop.permute.xlu0 %1338
        %v1342 = vsel %vm738, %v1337, 0
        %1344 = vmatprep.subr.mxu0 0.0
        %1345 = vmatpush1.msra.mxu0 %v1339
        %1346 = vmatprep.subr.mxu0 0.0
        %1347 = vmatpush1.msra.mxu0 0.0
        %1348 = vmatprep.subr.mxu0 0.0
        %1349 = vmatpush1.msra.mxu0 0.0
        %1350 = vmatprep.subr.mxu0 0.0
        %1351 = vmatpush1.msra.mxu0 0.0
        %1352 = vmatprep.subr.mxu0 0.0
        %1353 = vmatpush1.msra.mxu0 0.0
        %1354 = vmatprep.subr.mxu0 0.0
        %1355 = vmatpush1.msra.mxu0 0.0
        %1356 = vmatprep.subr.mxu0 0.0
        %1357 = vmatpush1.msra.mxu0 0.0
        %1358 = vmatprep.subr.mxu0 0.0
        %1359 = vmatpush1.msra.mxu0 0.0
        %1360 = vmatprep.subr.mxu0 0.0
        %1361 = vmatpush1.msra.mxu0 0.0
        %1362 = vmatprep.subr.mxu0 0.0
        %1363 = vmatpush1.msra.mxu0 0.0
        %1364 = vmatprep.subr.mxu0 0.0
        %1365 = vmatpush1.msra.mxu0 0.0
        %1366 = vmatprep.subr.mxu0 0.0
        %1367 = vmatpush1.msra.mxu0 0.0
        %1368 = vmatprep.subr.mxu0 0.0
        %1369 = vmatpush1.msra.mxu0 0.0
        %1370 = vmatprep.subr.mxu0 0.0
        %1371 = vmatpush1.msra.mxu0 0.0
        %1372 = vmatprep.subr.mxu0 0.0
        %1373 = vmatpush1.msra.mxu0 0.0
        %1374 = vmatprep.subr.mxu0 0.0
        %1375 = vmatpush1.msra.mxu0 0.0
        %1376 = vmatprep.subr.mxu0 0.0
        %1377 = vmatpush1.msra.mxu0 0.0
        %1378 = vmatprep.subr.mxu0 0.0
        %1379 = vmatpush1.msra.mxu0 0.0
        %1380 = vmatprep.subr.mxu0 0.0
        %1381 = vmatpush1.msra.mxu0 0.0
        %1382 = vmatprep.subr.mxu0 0.0
        %1383 = vmatpush1.msra.mxu0 0.0
        %1384 = vmatprep.subr.mxu0 0.0
        %1385 = vmatpush1.msra.mxu0 0.0
        %1386 = vmatprep.subr.mxu0 0.0
        %1387 = vmatpush1.msra.mxu0 0.0
        %1388 = vmatprep.subr.mxu0 0.0
        %1389 = vmatpush1.msra.mxu0 0.0
        %1390 = vmatprep.subr.mxu0 0.0
        %1391 = vmatpush1.msra.mxu0 0.0
        %1392 = vmatprep.subr.mxu0 0.0
        %1393 = vmatpush1.msra.mxu0 0.0
        %1394 = vmatprep.subr.mxu0 0.0
        %1395 = vmatpush1.msra.mxu0 0.0
        %1396 = vmatprep.subr.mxu0 0.0
        %1397 = vmatpush1.msra.mxu0 0.0
        %1398 = vmatprep.subr.mxu0 0.0
        %1399 = vmatpush1.msra.mxu0 0.0
        %1400 = vmatprep.subr.mxu0 0.0
        %1401 = vmatpush1.msra.mxu0 0.0
        %1402 = vmatprep.subr.mxu0 0.0
        %1403 = vmatpush1.msra.mxu0 0.0
        %1404 = vmatprep.subr.mxu0 0.0
        %1405 = vmatpush1.msra.mxu0 0.0
        %1406 = vmatprep.subr.mxu0 0.0
        %1407 = vmatpush1.msra.mxu0 0.0
        %1408 = vmatprep.mubr.f32.mxu0 0.0
        %1409 = vmatmul.mubr.f32.gmra.mrb[0].mxu0 %v1342
        %v1410 = vpop.f32.mrb[0].mxu0
        %v1411 = vadd.f32 0.0, %v1410
        %v1412 = vpop.f32.mrb[0].mxu0
        %1413 = vdwg.mxu0
        %1415 = vrot.lane.b32.xlu0 %v1411, 24
        %v1416 = vpop.permute.xlu0 %1415
        %vm1418 = vcmask 261312
        %1419 = vst.msk [vmem:[#allocation4] sm:$0xff] %vm1418, %v1416
        %v1420 = vld [vmem:[#allocation4] sm:$0xff]
        %v1421 = vpack.c.bf16 %v1420, %v1420
        %v1422 = vld [vmem:[%s623] sm:$0xf]
        %v1423 = vld [vmem:[%s623 + $0x4] sm:$0xf]
        %v1424 = vld [vmem:[%s623 + $0x8] sm:$0xf]
        %v1425 = vld [vmem:[%s623 + $0xc] sm:$0xf]
        %v1426 = vld [vmem:[%s626] sm:$0x1]
        %v1428 = vlaneseq
        %v1429 = vshrl.u32 %v1428, 7
        %v1430 = vsub.s32 0, %v1429
        %v1431 = vrot.slane %v1426, %v1430
        %v1437 = vunpack.c.l.b16 %v1422
        %v1438 = vunpack.c.l.b16 %v1423
        %v1439 = vunpack.c.l.b16 %v1424
        %v1440 = vunpack.c.l.b16 %v1425
        %v1441 = vpack.c.b16 %v1438, %v1437
        %v1442 = vpack.c.b16 %v1440, %v1439
        %v1446 = vsel %vm689, %v1421, 0
        %1448 = vmatprep.subr.bf16.mxu0 0
        %1449 = vmatpush1.bf16.msra.mxu0 %v1441
        %1450 = vmatprep.subr.bf16.mxu0 0
        %1451 = vmatpush1.bf16.msra.mxu0 %v1442
        %1452 = vmatprep.subr.bf16.mxu0 0
        %1453 = vmatpush1.bf16.msra.mxu0 0
        %1454 = vmatprep.subr.bf16.mxu0 0
        %1455 = vmatpush1.bf16.msra.mxu0 0
        %1456 = vmatprep.subr.bf16.mxu0 0
        %1457 = vmatpush1.bf16.msra.mxu0 0
        %1458 = vmatprep.subr.bf16.mxu0 0
        %1459 = vmatpush1.bf16.msra.mxu0 0
        %1460 = vmatprep.subr.bf16.mxu0 0
        %1461 = vmatpush1.bf16.msra.mxu0 0
        %1462 = vmatprep.subr.bf16.mxu0 0
        %1463 = vmatpush1.bf16.msra.mxu0 0
        %1464 = vmatprep.subr.bf16.mxu0 0
        %1465 = vmatpush1.bf16.msra.mxu0 0
        %1466 = vmatprep.subr.bf16.mxu0 0
        %1467 = vmatpush1.bf16.msra.mxu0 0
        %1468 = vmatprep.subr.bf16.mxu0 0
        %1469 = vmatpush1.bf16.msra.mxu0 0
        %1470 = vmatprep.subr.bf16.mxu0 0
        %1471 = vmatpush1.bf16.msra.mxu0 0
        %1472 = vmatprep.subr.bf16.mxu0 0
        %1473 = vmatpush1.bf16.msra.mxu0 0
        %1474 = vmatprep.subr.bf16.mxu0 0
        %1475 = vmatpush1.bf16.msra.mxu0 0
        %1476 = vmatprep.subr.bf16.mxu0 0
        %1477 = vmatpush1.bf16.msra.mxu0 0
        %1478 = vmatprep.subr.bf16.mxu0 0
        %1479 = vmatpush1.bf16.msra.mxu0 0
        %1480 = vmatprep.mubr.bf16.mxu0 0
        %1481 = vmatmul.mubr.bf16.gmra.mrb[0].mxu0 %v1446
        %v1482 = vpop.f32.mrb[0].mxu0
        %v1483 = vadd.f32 %v1431, %v1482
        %v1484 = vpop.f32.mrb[0].mxu0
        %v1485 = vpop.f32.mrb[0].mxu0
        %v1486 = vpop.f32.mrb[0].mxu0
        %1487 = vdwg.mxu0
        %v1488 = vadd.f32 %v664, %v1483
        %v1489 = vld [vmem:[%s629] sm:$0x1]
        %v1490 = vld [vmem:[%s632] sm:$0x1]
        %v1491 = vsel %vm689, %v1488, 0.0
        %1492 = vadd.xlane.f32.xlu0 %v1491
        %v1493 = vpop.xlane.xlu0 %1492
        %v1494 = vrcp.pop 32.0
        %v1495 = vmul.f32 %v1493, %v1494
        %v1496 = vsub.f32 %v1488, %v1495
        %v1497 = vmul.f32 %v1496, %v1496
        %v1498 = vsel %vm689, %v1497, 0.0
        %1499 = vadd.xlane.f32.xlu0 %v1498
        %v1500 = vpop.xlane.xlu0 %1499
        %v1501 = vmul.f32 %v1500, %v1494
        %v1502 = vadd.f32 %v1501, 1e-05
        %v1503 = vrsqrt.pop %v1502
        %v1504 = vmul.f32 %v1496, %v1503
        %v1506 = vlaneseq
        %v1507 = vshrl.u32 %v1506, 7
        %v1508 = vsub.s32 0, %v1507
        %v1509 = vrot.slane %v1489, %v1508
        %v1511 = vmul.f32 %v1504, %v1509
        %v1513 = vlaneseq
        %v1514 = vshrl.u32 %v1513, 7
        %v1515 = vsub.s32 0, %v1514
        %v1516 = vrot.slane %v1490, %v1515
        %v1518 = vadd.f32 %v1511, %v1516
        %v1519 = vpack.c.bf16 %v1518, %v1518
        %v1520 = vld [vmem:[%s637] sm:$0xff]
        %v1521 = vld [vmem:[%s637 + $0x8] sm:$0xff]
        %v1522 = vld [vmem:[%s637 + $0x10] sm:$0xff]
        %v1523 = vld [vmem:[%s637 + $0x18] sm:$0xff]
        %v1524 = vld [vmem:[%s637 + $0x20] sm:$0xff]
        %v1525 = vld [vmem:[%s637 + $0x28] sm:$0xff]
        %v1526 = vld [vmem:[%s637 + $0x30] sm:$0xff]
        %v1527 = vld [vmem:[%s637 + $0x38] sm:$0xff]
        %v1528 = vld [vmem:[%s637 + $0x40] sm:$0xff]
        %v1529 = vld [vmem:[%s637 + $0x48] sm:$0xff]
        %v1530 = vld [vmem:[%s637 + $0x50] sm:$0xff]
        %v1531 = vld [vmem:[%s637 + $0x58] sm:$0xff]
        %v1532 = vld [vmem:[%s637 + $0x60] sm:$0xff]
        %v1533 = vld [vmem:[%s637 + $0x68] sm:$0xff]
        %v1534 = vld [vmem:[%s637 + $0x70] sm:$0xff]
        %v1535 = vld [vmem:[%s637 + $0x78] sm:$0xff]
        %v1536 = vld [vmem:[%s637 + $0x80] sm:$0xff]
        %v1537 = vld [vmem:[%s637 + $0x88] sm:$0xff]
        %v1538 = vld [vmem:[%s637 + $0x90] sm:$0xff]
        %v1539 = vld [vmem:[%s637 + $0x98] sm:$0xff]
        %v1540 = vld [vmem:[%s637 + $0xa0] sm:$0xff]
        %v1541 = vld [vmem:[%s637 + $0xa8] sm:$0xff]
        %v1542 = vld [vmem:[%s637 + $0xb0] sm:$0xff]
        %v1543 = vld [vmem:[%s637 + $0xb8] sm:$0xff]
        %v1544 = vld [vmem:[%s637 + $0xc0] sm:$0xff]
        %v1545 = vld [vmem:[%s637 + $0xc8] sm:$0xff]
        %v1546 = vld [vmem:[%s637 + $0xd0] sm:$0xff]
        %v1547 = vld [vmem:[%s637 + $0xd8] sm:$0xff]
        %v1548 = vld [vmem:[%s637 + $0xe0] sm:$0xff]
        %v1549 = vld [vmem:[%s637 + $0xe8] sm:$0xff]
        %v1550 = vld [vmem:[%s637 + $0xf0] sm:$0xff]
        %v1551 = vld [vmem:[%s637 + $0xf8] sm:$0xff]
        %v1552 = vld [vmem:[%s641] sm:$0xff]
        %v1553 = vld [vmem:[%s641 + $0x8] sm:$0xff]
        %v1556 = vlaneseq
        %v1557 = vshrl.u32 %v1556, 7
        %v1558 = vsub.s32 0, %v1557
        %v1559 = vrot.slane %v1552, %v1558
        %v1560 = vlaneseq
        %v1561 = vshrl.u32 %v1560, 7
        %v1562 = vsub.s32 1, %v1561
        %v1563 = vrot.slane %v1552, %v1562
        %v1564 = vlaneseq
        %v1565 = vshrl.u32 %v1564, 7
        %v1566 = vsub.s32 2, %v1565
        %v1567 = vrot.slane %v1552, %v1566
        %v1568 = vlaneseq
        %v1569 = vshrl.u32 %v1568, 7
        %v1570 = vsub.s32 3, %v1569
        %v1571 = vrot.slane %v1552, %v1570
        %v1572 = vlaneseq
        %v1573 = vshrl.u32 %v1572, 7
        %v1574 = vsub.s32 4, %v1573
        %v1575 = vrot.slane %v1552, %v1574
        %v1576 = vlaneseq
        %v1577 = vshrl.u32 %v1576, 7
        %v1578 = vsub.s32 5, %v1577
        %v1579 = vrot.slane %v1552, %v1578
        %v1580 = vlaneseq
        %v1581 = vshrl.u32 %v1580, 7
        %v1582 = vsub.s32 6, %v1581
        %v1583 = vrot.slane %v1552, %v1582
        %v1584 = vlaneseq
        %v1585 = vshrl.u32 %v1584, 7
        %v1586 = vsub.s32 7, %v1585
        %v1587 = vrot.slane %v1552, %v1586
        %v1588 = vlaneseq
        %v1589 = vshrl.u32 %v1588, 7
        %v1590 = vsub.s32 0, %v1589
        %v1591 = vrot.slane %v1553, %v1590
        %v1592 = vlaneseq
        %v1593 = vshrl.u32 %v1592, 7
        %v1594 = vsub.s32 1, %v1593
        %v1595 = vrot.slane %v1553, %v1594
        %v1596 = vlaneseq
        %v1597 = vshrl.u32 %v1596, 7
        %v1598 = vsub.s32 2, %v1597
        %v1599 = vrot.slane %v1553, %v1598
        %v1600 = vlaneseq
        %v1601 = vshrl.u32 %v1600, 7
        %v1602 = vsub.s32 3, %v1601
        %v1603 = vrot.slane %v1553, %v1602
        %v1604 = vlaneseq
        %v1605 = vshrl.u32 %v1604, 7
        %v1606 = vsub.s32 4, %v1605
        %v1607 = vrot.slane %v1553, %v1606
        %v1608 = vlaneseq
        %v1609 = vshrl.u32 %v1608, 7
        %v1610 = vsub.s32 5, %v1609
        %v1611 = vrot.slane %v1553, %v1610
        %v1612 = vlaneseq
        %v1613 = vshrl.u32 %v1612, 7
        %v1614 = vsub.s32 6, %v1613
        %v1615 = vrot.slane %v1553, %v1614
        %v1616 = vlaneseq
        %v1617 = vshrl.u32 %v1616, 7
        %v1618 = vsub.s32 7, %v1617
        %v1619 = vrot.slane %v1553, %v1618
        %v1668 = vunpack.c.l.b16 %v1520
        %v1669 = vunpack.c.h.b16 %v1520
        %v1670 = vunpack.c.l.b16 %v1521
        %v1671 = vunpack.c.h.b16 %v1521
        %v1672 = vunpack.c.l.b16 %v1522
        %v1673 = vunpack.c.h.b16 %v1522
        %v1674 = vunpack.c.l.b16 %v1523
        %v1675 = vunpack.c.h.b16 %v1523
        %v1676 = vunpack.c.l.b16 %v1524
        %v1677 = vunpack.c.h.b16 %v1524
        %v1678 = vunpack.c.l.b16 %v1525
        %v1679 = vunpack.c.h.b16 %v1525
        %v1680 = vunpack.c.l.b16 %v1526
        %v1681 = vunpack.c.h.b16 %v1526
        %v1682 = vunpack.c.l.b16 %v1527
        %v1683 = vunpack.c.h.b16 %v1527
        %v1684 = vunpack.c.l.b16 %v1528
        %v1685 = vunpack.c.h.b16 %v1528
        %v1686 = vunpack.c.l.b16 %v1529
        %v1687 = vunpack.c.h.b16 %v1529
        %v1688 = vunpack.c.l.b16 %v1530
        %v1689 = vunpack.c.h.b16 %v1530
        %v1690 = vunpack.c.l.b16 %v1531
        %v1691 = vunpack.c.h.b16 %v1531
        %v1692 = vunpack.c.l.b16 %v1532
        %v1693 = vunpack.c.h.b16 %v1532
        %v1694 = vunpack.c.l.b16 %v1533
        %v1695 = vunpack.c.h.b16 %v1533
        %v1696 = vunpack.c.l.b16 %v1534
        %v1697 = vunpack.c.h.b16 %v1534
        %v1698 = vunpack.c.l.b16 %v1535
        %v1699 = vunpack.c.h.b16 %v1535
        %v1700 = vunpack.c.l.b16 %v1536
        %v1701 = vunpack.c.h.b16 %v1536
        %v1702 = vunpack.c.l.b16 %v1537
        %v1703 = vunpack.c.h.b16 %v1537
        %v1704 = vunpack.c.l.b16 %v1538
        %v1705 = vunpack.c.h.b16 %v1538
        %v1706 = vunpack.c.l.b16 %v1539
        %v1707 = vunpack.c.h.b16 %v1539
        %v1708 = vunpack.c.l.b16 %v1540
        %v1709 = vunpack.c.h.b16 %v1540
        %v1710 = vunpack.c.l.b16 %v1541
        %v1711 = vunpack.c.h.b16 %v1541
        %v1712 = vunpack.c.l.b16 %v1542
        %v1713 = vunpack.c.h.b16 %v1542
        %v1714 = vunpack.c.l.b16 %v1543
        %v1715 = vunpack.c.h.b16 %v1543
        %v1716 = vunpack.c.l.b16 %v1544
        %v1717 = vunpack.c.h.b16 %v1544
        %v1718 = vunpack.c.l.b16 %v1545
        %v1719 = vunpack.c.h.b16 %v1545
        %v1720 = vunpack.c.l.b16 %v1546
        %v1721 = vunpack.c.h.b16 %v1546
        %v1722 = vunpack.c.l.b16 %v1547
        %v1723 = vunpack.c.h.b16 %v1547
        %v1724 = vunpack.c.l.b16 %v1548
        %v1725 = vunpack.c.h.b16 %v1548
        %v1726 = vunpack.c.l.b16 %v1549
        %v1727 = vunpack.c.h.b16 %v1549
        %v1728 = vunpack.c.l.b16 %v1550
        %v1729 = vunpack.c.h.b16 %v1550
        %v1730 = vunpack.c.l.b16 %v1551
        %v1731 = vunpack.c.h.b16 %v1551
        %v1732 = vpack.c.b16 %v1684, %v1668
        %v1733 = vpack.c.b16 %v1685, %v1669
        %v1734 = vpack.c.b16 %v1686, %v1670
        %v1735 = vpack.c.b16 %v1687, %v1671
        %v1736 = vpack.c.b16 %v1688, %v1672
        %v1737 = vpack.c.b16 %v1689, %v1673
        %v1738 = vpack.c.b16 %v1690, %v1674
        %v1739 = vpack.c.b16 %v1691, %v1675
        %v1740 = vpack.c.b16 %v1692, %v1676
        %v1741 = vpack.c.b16 %v1693, %v1677
        %v1742 = vpack.c.b16 %v1694, %v1678
        %v1743 = vpack.c.b16 %v1695, %v1679
        %v1744 = vpack.c.b16 %v1696, %v1680
        %v1745 = vpack.c.b16 %v1697, %v1681
        %v1746 = vpack.c.b16 %v1698, %v1682
        %v1747 = vpack.c.b16 %v1699, %v1683
        %v1748 = vpack.c.b16 %v1716, %v1700
        %v1749 = vpack.c.b16 %v1717, %v1701
        %v1750 = vpack.c.b16 %v1718, %v1702
        %v1751 = vpack.c.b16 %v1719, %v1703
        %v1752 = vpack.c.b16 %v1720, %v1704
        %v1753 = vpack.c.b16 %v1721, %v1705
        %v1754 = vpack.c.b16 %v1722, %v1706
        %v1755 = vpack.c.b16 %v1723, %v1707
        %v1756 = vpack.c.b16 %v1724, %v1708
        %v1757 = vpack.c.b16 %v1725, %v1709
        %v1758 = vpack.c.b16 %v1726, %v1710
        %v1759 = vpack.c.b16 %v1727, %v1711
        %v1760 = vpack.c.b16 %v1728, %v1712
        %v1761 = vpack.c.b16 %v1729, %v1713
        %v1762 = vpack.c.b16 %v1730, %v1714
        %v1763 = vpack.c.b16 %v1731, %v1715
        %v1797 = vsel %vm689, %v1519, 0
        %1799 = vmatprep.subr.bf16.mxu0 %v1733
        %1800 = vmatpush1.bf16.msra.mxu0 %v1732
        %1801 = vmatprep.subr.bf16.mxu0 %v1749
        %1802 = vmatpush1.bf16.msra.mxu0 %v1748
        %1803 = vmatprep.subr.bf16.mxu0 0
        %1804 = vmatpush1.bf16.msra.mxu0 0
        %1805 = vmatprep.subr.bf16.mxu0 0
        %1806 = vmatpush1.bf16.msra.mxu0 0
        %1807 = vmatprep.subr.bf16.mxu0 0
        %1808 = vmatpush1.bf16.msra.mxu0 0
        %1809 = vmatprep.subr.bf16.mxu0 0
        %1810 = vmatpush1.bf16.msra.mxu0 0
        %1811 = vmatprep.subr.bf16.mxu0 0
        %1812 = vmatpush1.bf16.msra.mxu0 0
        %1813 = vmatprep.subr.bf16.mxu0 0
        %1814 = vmatpush1.bf16.msra.mxu0 0
        %1815 = vmatprep.subr.bf16.mxu0 0
        %1816 = vmatpush1.bf16.msra.mxu0 0
        %1817 = vmatprep.subr.bf16.mxu0 0
        %1818 = vmatpush1.bf16.msra.mxu0 0
        %1819 = vmatprep.subr.bf16.mxu0 0
        %1820 = vmatpush1.bf16.msra.mxu0 0
        %1821 = vmatprep.subr.bf16.mxu0 0
        %1822 = vmatpush1.bf16.msra.mxu0 0
        %1823 = vmatprep.subr.bf16.mxu0 0
        %1824 = vmatpush1.bf16.msra.mxu0 0
        %1825 = vmatprep.subr.bf16.mxu0 0
        %1826 = vmatpush1.bf16.msra.mxu0 0
        %1827 = vmatprep.subr.bf16.mxu0 0
        %1828 = vmatpush1.bf16.msra.mxu0 0
        %1829 = vmatprep.subr.bf16.mxu0 0
        %1830 = vmatpush1.bf16.msra.mxu0 0
        %1831 = vmatprep.mubr.bf16.mxu0 0
        %1832 = vmatmul.mubr.bf16.gmra.mrb[0].mxu0 %v1797
        %v1833 = vpop.f32.mrb[0].mxu0
        %v1834 = vadd.f32 %v1559, %v1833
        %v1835 = vpop.f32.mrb[0].mxu0
        %v1836 = vadd.f32 %v1563, %v1835
        %v1837 = vpop.f32.mrb[0].mxu0
        %v1838 = vpop.f32.mrb[0].mxu0
        %1839 = vdwg.mxu0
        %1840 = vmatprep.subr.bf16.mxu0 %v1735
        %1841 = vmatpush1.bf16.msra.mxu0 %v1734
        %1842 = vmatprep.subr.bf16.mxu0 %v1751
        %1843 = vmatpush1.bf16.msra.mxu0 %v1750
        %1844 = vmatprep.subr.bf16.mxu0 0
        %1845 = vmatpush1.bf16.msra.mxu0 0
        %1846 = vmatprep.subr.bf16.mxu0 0
        %1847 = vmatpush1.bf16.msra.mxu0 0
        %1848 = vmatprep.subr.bf16.mxu0 0
        %1849 = vmatpush1.bf16.msra.mxu0 0
        %1850 = vmatprep.subr.bf16.mxu0 0
        %1851 = vmatpush1.bf16.msra.mxu0 0
        %1852 = vmatprep.subr.bf16.mxu0 0
        %1853 = vmatpush1.bf16.msra.mxu0 0
        %1854 = vmatprep.subr.bf16.mxu0 0
        %1855 = vmatpush1.bf16.msra.mxu0 0
        %1856 = vmatprep.subr.bf16.mxu0 0
        %1857 = vmatpush1.bf16.msra.mxu0 0
        %1858 = vmatprep.subr.bf16.mxu0 0
        %1859 = vmatpush1.bf16.msra.mxu0 0
        %1860 = vmatprep.subr.bf16.mxu0 0
        %1861 = vmatpush1.bf16.msra.mxu0 0
        %1862 = vmatprep.subr.bf16.mxu0 0
        %1863 = vmatpush1.bf16.msra.mxu0 0
        %1864 = vmatprep.subr.bf16.mxu0 0
        %1865 = vmatpush1.bf16.msra.mxu0 0
        %1866 = vmatprep.subr.bf16.mxu0 0
        %1867 = vmatpush1.bf16.msra.mxu0 0
        %1868 = vmatprep.subr.bf16.mxu0 0
        %1869 = vmatpush1.bf16.msra.mxu0 0
        %1870 = vmatprep.subr.bf16.mxu0 0
        %1871 = vmatpush1.bf16.msra.mxu0 0
        %1872 = vmatprep.mubr.bf16.mxu0 0
        %1873 = vmatmul.mubr.bf16.gmra.mrb[0].mxu0 %v1797
        %v1874 = vpop.f32.mrb[0].mxu0
        %v1875 = vadd.f32 %v1567, %v1874
        %v1876 = vpop.f32.mrb[0].mxu0
        %v1877 = vadd.f32 %v1571, %v1876
        %v1878 = vpop.f32.mrb[0].mxu0
        %v1879 = vpop.f32.mrb[0].mxu0
        %1880 = vdwg.mxu0
        %1881 = vmatprep.subr.bf16.mxu0 %v1737
        %1882 = vmatpush1.bf16.msra.mxu0 %v1736
        %1883 = vmatprep.subr.bf16.mxu0 %v1753
        %1884 = vmatpush1.bf16.msra.mxu0 %v1752
        %1885 = vmatprep.subr.bf16.mxu0 0
        %1886 = vmatpush1.bf16.msra.mxu0 0
        %1887 = vmatprep.subr.bf16.mxu0 0
        %1888 = vmatpush1.bf16.msra.mxu0 0
        %1889 = vmatprep.subr.bf16.mxu0 0
        %1890 = vmatpush1.bf16.msra.mxu0 0
        %1891 = vmatprep.subr.bf16.mxu0 0
        %1892 = vmatpush1.bf16.msra.mxu0 0
        %1893 = vmatprep.subr.bf16.mxu0 0
        %1894 = vmatpush1.bf16.msra.mxu0 0
        %1895 = vmatprep.subr.bf16.mxu0 0
        %1896 = vmatpush1.bf16.msra.mxu0 0
        %1897 = vmatprep.subr.bf16.mxu0 0
        %1898 = vmatpush1.bf16.msra.mxu0 0
        %1899 = vmatprep.subr.bf16.mxu0 0
        %1900 = vmatpush1.bf16.msra.mxu0 0
        %1901 = vmatprep.subr.bf16.mxu0 0
        %1902 = vmatpush1.bf16.msra.mxu0 0
        %1903 = vmatprep.subr.bf16.mxu0 0
        %1904 = vmatpush1.bf16.msra.mxu0 0
        %1905 = vmatprep.subr.bf16.mxu0 0
        %1906 = vmatpush1.bf16.msra.mxu0 0
        %1907 = vmatprep.subr.bf16.mxu0 0
        %1908 = vmatpush1.bf16.msra.mxu0 0
        %1909 = vmatprep.subr.bf16.mxu0 0
        %1910 = vmatpush1.bf16.msra.mxu0 0
        %1911 = vmatprep.subr.bf16.mxu0 0
        %1912 = vmatpush1.bf16.msra.mxu0 0
        %1913 = vmatprep.mubr.bf16.mxu0 0
        %1914 = vmatmul.mubr.bf16.gmra.mrb[0].mxu0 %v1797
        %v1915 = vpop.f32.mrb[0].mxu0
        %v1916 = vadd.f32 %v1575, %v1915
        %v1917 = vpop.f32.mrb[0].mxu0
        %v1918 = vadd.f32 %v1579, %v1917
        %v1919 = vpop.f32.mrb[0].mxu0
        %v1920 = vpop.f32.mrb[0].mxu0
        %1921 = vdwg.mxu0
        %1922 = vmatprep.subr.bf16.mxu0 %v1739
        %1923 = vmatpush1.bf16.msra.mxu0 %v1738
        %1924 = vmatprep.subr.bf16.mxu0 %v1755
        %1925 = vmatpush1.bf16.msra.mxu0 %v1754
        %1926 = vmatprep.subr.bf16.mxu0 0
        %1927 = vmatpush1.bf16.msra.mxu0 0
        %1928 = vmatprep.subr.bf16.mxu0 0
        %1929 = vmatpush1.bf16.msra.mxu0 0
        %1930 = vmatprep.subr.bf16.mxu0 0
        %1931 = vmatpush1.bf16.msra.mxu0 0
        %1932 = vmatprep.subr.bf16.mxu0 0
        %1933 = vmatpush1.bf16.msra.mxu0 0
        %1934 = vmatprep.subr.bf16.mxu0 0
        %1935 = vmatpush1.bf16.msra.mxu0 0
        %1936 = vmatprep.subr.bf16.mxu0 0
        %1937 = vmatpush1.bf16.msra.mxu0 0
        %1938 = vmatprep.subr.bf16.mxu0 0
        %1939 = vmatpush1.bf16.msra.mxu0 0
        %1940 = vmatprep.subr.bf16.mxu0 0
        %1941 = vmatpush1.bf16.msra.mxu0 0
        %1942 = vmatprep.subr.bf16.mxu0 0
        %1943 = vmatpush1.bf16.msra.mxu0 0
        %1944 = vmatprep.subr.bf16.mxu0 0
        %1945 = vmatpush1.bf16.msra.mxu0 0
        %1946 = vmatprep.subr.bf16.mxu0 0
        %1947 = vmatpush1.bf16.msra.mxu0 0
        %1948 = vmatprep.subr.bf16.mxu0 0
        %1949 = vmatpush1.bf16.msra.mxu0 0
        %1950 = vmatprep.subr.bf16.mxu0 0
        %1951 = vmatpush1.bf16.msra.mxu0 0
        %1952 = vmatprep.subr.bf16.mxu0 0
        %1953 = vmatpush1.bf16.msra.mxu0 0
        %1954 = vmatprep.mubr.bf16.mxu0 0
        %1955 = vmatmul.mubr.bf16.gmra.mrb[0].mxu0 %v1797
        %v1956 = vpop.f32.mrb[0].mxu0
        %v1957 = vadd.f32 %v1583, %v1956
        %v1958 = vpop.f32.mrb[0].mxu0
        %v1959 = vadd.f32 %v1587, %v1958
        %v1960 = vpop.f32.mrb[0].mxu0
        %v1961 = vpop.f32.mrb[0].mxu0
        %1962 = vdwg.mxu0
        %1963 = vmatprep.subr.bf16.mxu0 %v1741
        %1964 = vmatpush1.bf16.msra.mxu0 %v1740
        %1965 = vmatprep.subr.bf16.mxu0 %v1757
        %1966 = vmatpush1.bf16.msra.mxu0 %v1756
        %1967 = vmatprep.subr.bf16.mxu0 0
        %1968 = vmatpush1.bf16.msra.mxu0 0
        %1969 = vmatprep.subr.bf16.mxu0 0
        %1970 = vmatpush1.bf16.msra.mxu0 0
        %1971 = vmatprep.subr.bf16.mxu0 0
        %1972 = vmatpush1.bf16.msra.mxu0 0
        %1973 = vmatprep.subr.bf16.mxu0 0
        %1974 = vmatpush1.bf16.msra.mxu0 0
        %1975 = vmatprep.subr.bf16.mxu0 0
        %1976 = vmatpush1.bf16.msra.mxu0 0
        %1977 = vmatprep.subr.bf16.mxu0 0
        %1978 = vmatpush1.bf16.msra.mxu0 0
        %1979 = vmatprep.subr.bf16.mxu0 0
        %1980 = vmatpush1.bf16.msra.mxu0 0
        %1981 = vmatprep.subr.bf16.mxu0 0
        %1982 = vmatpush1.bf16.msra.mxu0 0
        %1983 = vmatprep.subr.bf16.mxu0 0
        %1984 = vmatpush1.bf16.msra.mxu0 0
        %1985 = vmatprep.subr.bf16.mxu0 0
        %1986 = vmatpush1.bf16.msra.mxu0 0
        %1987 = vmatprep.subr.bf16.mxu0 0
        %1988 = vmatpush1.bf16.msra.mxu0 0
        %1989 = vmatprep.subr.bf16.mxu0 0
        %1990 = vmatpush1.bf16.msra.mxu0 0
        %1991 = vmatprep.subr.bf16.mxu0 0
        %1992 = vmatpush1.bf16.msra.mxu0 0
        %1993 = vmatprep.subr.bf16.mxu0 0
        %1994 = vmatpush1.bf16.msra.mxu0 0
        %1995 = vmatprep.mubr.bf16.mxu0 0
        %1996 = vmatmul.mubr.bf16.gmra.mrb[0].mxu0 %v1797
        %v1997 = vpop.f32.mrb[0].mxu0
        %v1998 = vadd.f32 %v1591, %v1997
        %v1999 = vpop.f32.mrb[0].mxu0
        %v2000 = vadd.f32 %v1595, %v1999
        %v2001 = vpop.f32.mrb[0].mxu0
        %v2002 = vpop.f32.mrb[0].mxu0
        %2003 = vdwg.mxu0
        %2004 = vmatprep.subr.bf16.mxu0 %v1743
        %2005 = vmatpush1.bf16.msra.mxu0 %v1742
        %2006 = vmatprep.subr.bf16.mxu0 %v1759
        %2007 = vmatpush1.bf16.msra.mxu0 %v1758
        %2008 = vmatprep.subr.bf16.mxu0 0
        %2009 = vmatpush1.bf16.msra.mxu0 0
        %2010 = vmatprep.subr.bf16.mxu0 0
        %2011 = vmatpush1.bf16.msra.mxu0 0
        %2012 = vmatprep.subr.bf16.mxu0 0
        %2013 = vmatpush1.bf16.msra.mxu0 0
        %2014 = vmatprep.subr.bf16.mxu0 0
        %2015 = vmatpush1.bf16.msra.mxu0 0
        %2016 = vmatprep.subr.bf16.mxu0 0
        %2017 = vmatpush1.bf16.msra.mxu0 0
        %2018 = vmatprep.subr.bf16.mxu0 0
        %2019 = vmatpush1.bf16.msra.mxu0 0
        %2020 = vmatprep.subr.bf16.mxu0 0
        %2021 = vmatpush1.bf16.msra.mxu0 0
        %2022 = vmatprep.subr.bf16.mxu0 0
        %2023 = vmatpush1.bf16.msra.mxu0 0
        %2024 = vmatprep.subr.bf16.mxu0 0
        %2025 = vmatpush1.bf16.msra.mxu0 0
        %2026 = vmatprep.subr.bf16.mxu0 0
        %2027 = vmatpush1.bf16.msra.mxu0 0
        %2028 = vmatprep.subr.bf16.mxu0 0
        %2029 = vmatpush1.bf16.msra.mxu0 0
        %2030 = vmatprep.subr.bf16.mxu0 0
        %2031 = vmatpush1.bf16.msra.mxu0 0
        %2032 = vmatprep.subr.bf16.mxu0 0
        %2033 = vmatpush1.bf16.msra.mxu0 0
        %2034 = vmatprep.subr.bf16.mxu0 0
        %2035 = vmatpush1.bf16.msra.mxu0 0
        %2036 = vmatprep.mubr.bf16.mxu0 0
        %2037 = vmatmul.mubr.bf16.gmra.mrb[0].mxu0 %v1797
        %v2038 = vpop.f32.mrb[0].mxu0
        %v2039 = vadd.f32 %v1599, %v2038
        %v2040 = vpop.f32.mrb[0].mxu0
        %v2041 = vadd.f32 %v1603, %v2040
        %v2042 = vpop.f32.mrb[0].mxu0
        %v2043 = vpop.f32.mrb[0].mxu0
        %2044 = vdwg.mxu0
        %2045 = vmatprep.subr.bf16.mxu0 %v1745
        %2046 = vmatpush1.bf16.msra.mxu0 %v1744
        %2047 = vmatprep.subr.bf16.mxu0 %v1761
        %2048 = vmatpush1.bf16.msra.mxu0 %v1760
        %2049 = vmatprep.subr.bf16.mxu0 0
        %2050 = vmatpush1.bf16.msra.mxu0 0
        %2051 = vmatprep.subr.bf16.mxu0 0
        %2052 = vmatpush1.bf16.msra.mxu0 0
        %2053 = vmatprep.subr.bf16.mxu0 0
        %2054 = vmatpush1.bf16.msra.mxu0 0
        %2055 = vmatprep.subr.bf16.mxu0 0
        %2056 = vmatpush1.bf16.msra.mxu0 0
        %2057 = vmatprep.subr.bf16.mxu0 0
        %2058 = vmatpush1.bf16.msra.mxu0 0
        %2059 = vmatprep.subr.bf16.mxu0 0
        %2060 = vmatpush1.bf16.msra.mxu0 0
        %2061 = vmatprep.subr.bf16.mxu0 0
        %2062 = vmatpush1.bf16.msra.mxu0 0
        %2063 = vmatprep.subr.bf16.mxu0 0
        %2064 = vmatpush1.bf16.msra.mxu0 0
        %2065 = vmatprep.subr.bf16.mxu0 0
        %2066 = vmatpush1.bf16.msra.mxu0 0
        %2067 = vmatprep.subr.bf16.mxu0 0
        %2068 = vmatpush1.bf16.msra.mxu0 0
        %2069 = vmatprep.subr.bf16.mxu0 0
        %2070 = vmatpush1.bf16.msra.mxu0 0
        %2071 = vmatprep.subr.bf16.mxu0 0
        %2072 = vmatpush1.bf16.msra.mxu0 0
        %2073 = vmatprep.subr.bf16.mxu0 0
        %2074 = vmatpush1.bf16.msra.mxu0 0
        %2075 = vmatprep.subr.bf16.mxu0 0
        %2076 = vmatpush1.bf16.msra.mxu0 0
        %2077 = vmatprep.mubr.bf16.mxu0 0
        %2078 = vmatmul.mubr.bf16.gmra.mrb[0].mxu0 %v1797
        %v2079 = vpop.f32.mrb[0].mxu0
        %v2080 = vadd.f32 %v1607, %v2079
        %v2081 = vpop.f32.mrb[0].mxu0
        %v2082 = vadd.f32 %v1611, %v2081
        %v2083 = vpop.f32.mrb[0].mxu0
        %v2084 = vpop.f32.mrb[0].mxu0
        %2085 = vdwg.mxu0
        %2086 = vmatprep.subr.bf16.mxu0 %v1747
        %2087 = vmatpush1.bf16.msra.mxu0 %v1746
        %2088 = vmatprep.subr.bf16.mxu0 %v1763
        %2089 = vmatpush1.bf16.msra.mxu0 %v1762
        %2090 = vmatprep.subr.bf16.mxu0 0
        %2091 = vmatpush1.bf16.msra.mxu0 0
        %2092 = vmatprep.subr.bf16.mxu0 0
        %2093 = vmatpush1.bf16.msra.mxu0 0
        %2094 = vmatprep.subr.bf16.mxu0 0
        %2095 = vmatpush1.bf16.msra.mxu0 0
        %2096 = vmatprep.subr.bf16.mxu0 0
        %2097 = vmatpush1.bf16.msra.mxu0 0
        %2098 = vmatprep.subr.bf16.mxu0 0
        %2099 = vmatpush1.bf16.msra.mxu0 0
        %2100 = vmatprep.subr.bf16.mxu0 0
        %2101 = vmatpush1.bf16.msra.mxu0 0
        %2102 = vmatprep.subr.bf16.mxu0 0
        %2103 = vmatpush1.bf16.msra.mxu0 0
        %2104 = vmatprep.subr.bf16.mxu0 0
        %2105 = vmatpush1.bf16.msra.mxu0 0
        %2106 = vmatprep.subr.bf16.mxu0 0
        %2107 = vmatpush1.bf16.msra.mxu0 0
        %2108 = vmatprep.subr.bf16.mxu0 0
        %2109 = vmatpush1.bf16.msra.mxu0 0
        %2110 = vmatprep.subr.bf16.mxu0 0
        %2111 = vmatpush1.bf16.msra.mxu0 0
        %2112 = vmatprep.subr.bf16.mxu0 0
        %2113 = vmatpush1.bf16.msra.mxu0 0
        %2114 = vmatprep.subr.bf16.mxu0 0
        %2115 = vmatpush1.bf16.msra.mxu0 0
        %2116 = vmatprep.subr.bf16.mxu0 0
        %2117 = vmatpush1.bf16.msra.mxu0 0
        %2118 = vmatprep.mubr.bf16.mxu0 0
        %2119 = vmatmul.mubr.bf16.gmra.mrb[0].mxu0 %v1797
        %v2120 = vpop.f32.mrb[0].mxu0
        %v2121 = vadd.f32 %v1615, %v2120
        %v2122 = vpop.f32.mrb[0].mxu0
        %v2123 = vadd.f32 %v1619, %v2122
        %v2124 = vpop.f32.mrb[0].mxu0
        %v2125 = vpop.f32.mrb[0].mxu0
        %2126 = vdwg.mxu0
        %v2127 = vmax.f32 %v1834, 0.0
        %v2128 = vmax.f32 %v1836, 0.0
        %v2129 = vmax.f32 %v1875, 0.0
        %v2130 = vmax.f32 %v1877, 0.0
        %v2131 = vmax.f32 %v1916, 0.0
        %v2132 = vmax.f32 %v1918, 0.0
        %v2133 = vmax.f32 %v1957, 0.0
        %v2134 = vmax.f32 %v1959, 0.0
        %v2135 = vmax.f32 %v1998, 0.0
        %v2136 = vmax.f32 %v2000, 0.0
        %v2137 = vmax.f32 %v2039, 0.0
        %v2138 = vmax.f32 %v2041, 0.0
        %v2139 = vmax.f32 %v2080, 0.0
        %v2140 = vmax.f32 %v2082, 0.0
        %v2141 = vmax.f32 %v2121, 0.0
        %v2142 = vmax.f32 %v2123, 0.0
        %v2143 = vpack.c.bf16 %v2127, %v2127
        %v2144 = vpack.c.bf16 %v2128, %v2128
        %v2145 = vpack.c.bf16 %v2129, %v2129
        %v2146 = vpack.c.bf16 %v2130, %v2130
        %v2147 = vpack.c.bf16 %v2131, %v2131
        %v2148 = vpack.c.bf16 %v2132, %v2132
        %v2149 = vpack.c.bf16 %v2133, %v2133
        %v2150 = vpack.c.bf16 %v2134, %v2134
        %v2151 = vpack.c.bf16 %v2135, %v2135
        %v2152 = vpack.c.bf16 %v2136, %v2136
        %v2153 = vpack.c.bf16 %v2137, %v2137
        %v2154 = vpack.c.bf16 %v2138, %v2138
        %v2155 = vpack.c.bf16 %v2139, %v2139
        %v2156 = vpack.c.bf16 %v2140, %v2140
        %v2157 = vpack.c.bf16 %v2141, %v2141
        %v2158 = vpack.c.bf16 %v2142, %v2142
        %v2159 = vld [vmem:[%s646] sm:$0xf]
        %v2160 = vld [vmem:[%s646 + $0x4] sm:$0xf]
        %v2161 = vld [vmem:[%s646 + $0x8] sm:$0xf]
        %v2162 = vld [vmem:[%s646 + $0xc] sm:$0xf]
        %v2163 = vld [vmem:[%s646 + $0x10] sm:$0xf]
        %v2164 = vld [vmem:[%s646 + $0x14] sm:$0xf]
        %v2165 = vld [vmem:[%s646 + $0x18] sm:$0xf]
        %v2166 = vld [vmem:[%s646 + $0x1c] sm:$0xf]
        %v2167 = vld [vmem:[%s646 + $0x20] sm:$0xf]
        %v2168 = vld [vmem:[%s646 + $0x24] sm:$0xf]
        %v2169 = vld [vmem:[%s646 + $0x28] sm:$0xf]
        %v2170 = vld [vmem:[%s646 + $0x2c] sm:$0xf]
        %v2171 = vld [vmem:[%s646 + $0x30] sm:$0xf]
        %v2172 = vld [vmem:[%s646 + $0x34] sm:$0xf]
        %v2173 = vld [vmem:[%s646 + $0x38] sm:$0xf]
        %v2174 = vld [vmem:[%s646 + $0x3c] sm:$0xf]
        %v2175 = vld [vmem:[%s646 + $0x40] sm:$0xf]
        %v2176 = vld [vmem:[%s646 + $0x44] sm:$0xf]
        %v2177 = vld [vmem:[%s646 + $0x48] sm:$0xf]
        %v2178 = vld [vmem:[%s646 + $0x4c] sm:$0xf]
        %v2179 = vld [vmem:[%s646 + $0x50] sm:$0xf]
        %v2180 = vld [vmem:[%s646 + $0x54] sm:$0xf]
        %v2181 = vld [vmem:[%s646 + $0x58] sm:$0xf]
        %v2182 = vld [vmem:[%s646 + $0x5c] sm:$0xf]
        %v2183 = vld [vmem:[%s646 + $0x60] sm:$0xf]
        %v2184 = vld [vmem:[%s646 + $0x64] sm:$0xf]
        %v2185 = vld [vmem:[%s646 + $0x68] sm:$0xf]
        %v2186 = vld [vmem:[%s646 + $0x6c] sm:$0xf]
        %v2187 = vld [vmem:[%s646 + $0x70] sm:$0xf]
        %v2188 = vld [vmem:[%s646 + $0x74] sm:$0xf]
        %v2189 = vld [vmem:[%s646 + $0x78] sm:$0xf]
        %v2190 = vld [vmem:[%s646 + $0x7c] sm:$0xf]
        %v2191 = vld [vmem:[%s646 + $0x80] sm:$0xf]
        %v2192 = vld [vmem:[%s646 + $0x84] sm:$0xf]
        %v2193 = vld [vmem:[%s646 + $0x88] sm:$0xf]
        %v2194 = vld [vmem:[%s646 + $0x8c] sm:$0xf]
        %v2195 = vld [vmem:[%s646 + $0x90] sm:$0xf]
        %v2196 = vld [vmem:[%s646 + $0x94] sm:$0xf]
        %v2197 = vld [vmem:[%s646 + $0x98] sm:$0xf]
        %v2198 = vld [vmem:[%s646 + $0x9c] sm:$0xf]
        %v2199 = vld [vmem:[%s646 + $0xa0] sm:$0xf]
        %v2200 = vld [vmem:[%s646 + $0xa4] sm:$0xf]
        %v2201 = vld [vmem:[%s646 + $0xa8] sm:$0xf]
        %v2202 = vld [vmem:[%s646 + $0xac] sm:$0xf]
        %v2203 = vld [vmem:[%s646 + $0xb0] sm:$0xf]
        %v2204 = vld [vmem:[%s646 + $0xb4] sm:$0xf]
        %v2205 = vld [vmem:[%s646 + $0xb8] sm:$0xf]
        %v2206 = vld [vmem:[%s646 + $0xbc] sm:$0xf]
        %v2207 = vld [vmem:[%s646 + $0xc0] sm:$0xf]
        %v2208 = vld [vmem:[%s646 + $0xc4] sm:$0xf]
        %v2209 = vld [vmem:[%s646 + $0xc8] sm:$0xf]
        %v2210 = vld [vmem:[%s646 + $0xcc] sm:$0xf]
        %v2211 = vld [vmem:[%s646 + $0xd0] sm:$0xf]
        %v2212 = vld [vmem:[%s646 + $0xd4] sm:$0xf]
        %v2213 = vld [vmem:[%s646 + $0xd8] sm:$0xf]
        %v2214 = vld [vmem:[%s646 + $0xdc] sm:$0xf]
        %v2215 = vld [vmem:[%s646 + $0xe0] sm:$0xf]
        %v2216 = vld [vmem:[%s646 + $0xe4] sm:$0xf]
        %v2217 = vld [vmem:[%s646 + $0xe8] sm:$0xf]
        %v2218 = vld [vmem:[%s646 + $0xec] sm:$0xf]
        %v2219 = vld [vmem:[%s646 + $0xf0] sm:$0xf]
        %v2220 = vld [vmem:[%s646 + $0xf4] sm:$0xf]
        %v2221 = vld [vmem:[%s646 + $0xf8] sm:$0xf]
        %v2222 = vld [vmem:[%s646 + $0xfc] sm:$0xf]
        %v2223 = vld [vmem:[%s646 + $0x100] sm:$0xf]
        %v2224 = vld [vmem:[%s646 + $0x104] sm:$0xf]
        %v2225 = vld [vmem:[%s646 + $0x108] sm:$0xf]
        %v2226 = vld [vmem:[%s646 + $0x10c] sm:$0xf]
        %v2227 = vld [vmem:[%s646 + $0x110] sm:$0xf]
        %v2228 = vld [vmem:[%s646 + $0x114] sm:$0xf]
        %v2229 = vld [vmem:[%s646 + $0x118] sm:$0xf]
        %v2230 = vld [vmem:[%s646 + $0x11c] sm:$0xf]
        %v2231 = vld [vmem:[%s646 + $0x120] sm:$0xf]
        %v2232 = vld [vmem:[%s646 + $0x124] sm:$0xf]
        %v2233 = vld [vmem:[%s646 + $0x128] sm:$0xf]
        %v2234 = vld [vmem:[%s646 + $0x12c] sm:$0xf]
        %v2235 = vld [vmem:[%s646 + $0x130] sm:$0xf]
        %v2236 = vld [vmem:[%s646 + $0x134] sm:$0xf]
        %v2237 = vld [vmem:[%s646 + $0x138] sm:$0xf]
        %v2238 = vld [vmem:[%s646 + $0x13c] sm:$0xf]
        %v2239 = vld [vmem:[%s646 + $0x140] sm:$0xf]
        %v2240 = vld [vmem:[%s646 + $0x144] sm:$0xf]
        %v2241 = vld [vmem:[%s646 + $0x148] sm:$0xf]
        %v2242 = vld [vmem:[%s646 + $0x14c] sm:$0xf]
        %v2243 = vld [vmem:[%s646 + $0x150] sm:$0xf]
        %v2244 = vld [vmem:[%s646 + $0x154] sm:$0xf]
        %v2245 = vld [vmem:[%s646 + $0x158] sm:$0xf]
        %v2246 = vld [vmem:[%s646 + $0x15c] sm:$0xf]
        %v2247 = vld [vmem:[%s646 + $0x160] sm:$0xf]
        %v2248 = vld [vmem:[%s646 + $0x164] sm:$0xf]
        %v2249 = vld [vmem:[%s646 + $0x168] sm:$0xf]
        %v2250 = vld [vmem:[%s646 + $0x16c] sm:$0xf]
        %v2251 = vld [vmem:[%s646 + $0x170] sm:$0xf]
        %v2252 = vld [vmem:[%s646 + $0x174] sm:$0xf]
        %v2253 = vld [vmem:[%s646 + $0x178] sm:$0xf]
        %v2254 = vld [vmem:[%s646 + $0x17c] sm:$0xf]
        %v2255 = vld [vmem:[%s646 + $0x180] sm:$0xf]
        %v2256 = vld [vmem:[%s646 + $0x184] sm:$0xf]
        %v2257 = vld [vmem:[%s646 + $0x188] sm:$0xf]
        %v2258 = vld [vmem:[%s646 + $0x18c] sm:$0xf]
        %v2259 = vld [vmem:[%s646 + $0x190] sm:$0xf]
        %v2260 = vld [vmem:[%s646 + $0x194] sm:$0xf]
        %v2261 = vld [vmem:[%s646 + $0x198] sm:$0xf]
        %v2262 = vld [vmem:[%s646 + $0x19c] sm:$0xf]
        %v2263 = vld [vmem:[%s646 + $0x1a0] sm:$0xf]
        %v2264 = vld [vmem:[%s646 + $0x1a4] sm:$0xf]
        %v2265 = vld [vmem:[%s646 + $0x1a8] sm:$0xf]
        %v2266 = vld [vmem:[%s646 + $0x1ac] sm:$0xf]
        %v2267 = vld [vmem:[%s646 + $0x1b0] sm:$0xf]
        %v2268 = vld [vmem:[%s646 + $0x1b4] sm:$0xf]
        %v2269 = vld [vmem:[%s646 + $0x1b8] sm:$0xf]
        %v2270 = vld [vmem:[%s646 + $0x1bc] sm:$0xf]
        %v2271 = vld [vmem:[%s646 + $0x1c0] sm:$0xf]
        %v2272 = vld [vmem:[%s646 + $0x1c4] sm:$0xf]
        %v2273 = vld [vmem:[%s646 + $0x1c8] sm:$0xf]
        %v2274 = vld [vmem:[%s646 + $0x1cc] sm:$0xf]
        %v2275 = vld [vmem:[%s646 + $0x1d0] sm:$0xf]
        %v2276 = vld [vmem:[%s646 + $0x1d4] sm:$0xf]
        %v2277 = vld [vmem:[%s646 + $0x1d8] sm:$0xf]
        %v2278 = vld [vmem:[%s646 + $0x1dc] sm:$0xf]
        %v2279 = vld [vmem:[%s646 + $0x1e0] sm:$0xf]
        %v2280 = vld [vmem:[%s646 + $0x1e4] sm:$0xf]
        %v2281 = vld [vmem:[%s646 + $0x1e8] sm:$0xf]
        %v2282 = vld [vmem:[%s646 + $0x1ec] sm:$0xf]
        %v2283 = vld [vmem:[%s646 + $0x1f0] sm:$0xf]
        %v2284 = vld [vmem:[%s646 + $0x1f4] sm:$0xf]
        %v2285 = vld [vmem:[%s646 + $0x1f8] sm:$0xf]
        %v2286 = vld [vmem:[%s646 + $0x1fc] sm:$0xf]
        %v2287 = vld [vmem:[%s646 + $0x200] sm:$0xf]
        %v2288 = vld [vmem:[%s646 + $0x204] sm:$0xf]
        %v2289 = vld [vmem:[%s646 + $0x208] sm:$0xf]
        %v2290 = vld [vmem:[%s646 + $0x20c] sm:$0xf]
        %v2291 = vld [vmem:[%s646 + $0x210] sm:$0xf]
        %v2292 = vld [vmem:[%s646 + $0x214] sm:$0xf]
        %v2293 = vld [vmem:[%s646 + $0x218] sm:$0xf]
        %v2294 = vld [vmem:[%s646 + $0x21c] sm:$0xf]
        %v2295 = vld [vmem:[%s646 + $0x220] sm:$0xf]
        %v2296 = vld [vmem:[%s646 + $0x224] sm:$0xf]
        %v2297 = vld [vmem:[%s646 + $0x228] sm:$0xf]
        %v2298 = vld [vmem:[%s646 + $0x22c] sm:$0xf]
        %v2299 = vld [vmem:[%s646 + $0x230] sm:$0xf]
        %v2300 = vld [vmem:[%s646 + $0x234] sm:$0xf]
        %v2301 = vld [vmem:[%s646 + $0x238] sm:$0xf]
        %v2302 = vld [vmem:[%s646 + $0x23c] sm:$0xf]
        %v2303 = vld [vmem:[%s646 + $0x240] sm:$0xf]
        %v2304 = vld [vmem:[%s646 + $0x244] sm:$0xf]
        %v2305 = vld [vmem:[%s646 + $0x248] sm:$0xf]
        %v2306 = vld [vmem:[%s646 + $0x24c] sm:$0xf]
        %v2307 = vld [vmem:[%s646 + $0x250] sm:$0xf]
        %v2308 = vld [vmem:[%s646 + $0x254] sm:$0xf]
        %v2309 = vld [vmem:[%s646 + $0x258] sm:$0xf]
        %v2310 = vld [vmem:[%s646 + $0x25c] sm:$0xf]
        %v2311 = vld [vmem:[%s646 + $0x260] sm:$0xf]
        %v2312 = vld [vmem:[%s646 + $0x264] sm:$0xf]
        %v2313 = vld [vmem:[%s646 + $0x268] sm:$0xf]
        %v2314 = vld [vmem:[%s646 + $0x26c] sm:$0xf]
        %v2315 = vld [vmem:[%s646 + $0x270] sm:$0xf]
        %v2316 = vld [vmem:[%s646 + $0x274] sm:$0xf]
        %v2317 = vld [vmem:[%s646 + $0x278] sm:$0xf]
        %v2318 = vld [vmem:[%s646 + $0x27c] sm:$0xf]
        %v2319 = vld [vmem:[%s646 + $0x280] sm:$0xf]
        %v2320 = vld [vmem:[%s646 + $0x284] sm:$0xf]
        %v2321 = vld [vmem:[%s646 + $0x288] sm:$0xf]
        %v2322 = vld [vmem:[%s646 + $0x28c] sm:$0xf]
        %v2323 = vld [vmem:[%s646 + $0x290] sm:$0xf]
        %v2324 = vld [vmem:[%s646 + $0x294] sm:$0xf]
        %v2325 = vld [vmem:[%s646 + $0x298] sm:$0xf]
        %v2326 = vld [vmem:[%s646 + $0x29c] sm:$0xf]
        %v2327 = vld [vmem:[%s646 + $0x2a0] sm:$0xf]
        %v2328 = vld [vmem:[%s646 + $0x2a4] sm:$0xf]
        %v2329 = vld [vmem:[%s646 + $0x2a8] sm:$0xf]
        %v2330 = vld [vmem:[%s646 + $0x2ac] sm:$0xf]
        %v2331 = vld [vmem:[%s646 + $0x2b0] sm:$0xf]
        %v2332 = vld [vmem:[%s646 + $0x2b4] sm:$0xf]
        %v2333 = vld [vmem:[%s646 + $0x2b8] sm:$0xf]
        %v2334 = vld [vmem:[%s646 + $0x2bc] sm:$0xf]
        %v2335 = vld [vmem:[%s646 + $0x2c0] sm:$0xf]
        %v2336 = vld [vmem:[%s646 + $0x2c4] sm:$0xf]
        %v2337 = vld [vmem:[%s646 + $0x2c8] sm:$0xf]
        %v2338 = vld [vmem:[%s646 + $0x2cc] sm:$0xf]
        %v2339 = vld [vmem:[%s646 + $0x2d0] sm:$0xf]
        %v2340 = vld [vmem:[%s646 + $0x2d4] sm:$0xf]
        %v2341 = vld [vmem:[%s646 + $0x2d8] sm:$0xf]
        %v2342 = vld [vmem:[%s646 + $0x2dc] sm:$0xf]
        %v2343 = vld [vmem:[%s646 + $0x2e0] sm:$0xf]
        %v2344 = vld [vmem:[%s646 + $0x2e4] sm:$0xf]
        %v2345 = vld [vmem:[%s646 + $0x2e8] sm:$0xf]
        %v2346 = vld [vmem:[%s646 + $0x2ec] sm:$0xf]
        %v2347 = vld [vmem:[%s646 + $0x2f0] sm:$0xf]
        %v2348 = vld [vmem:[%s646 + $0x2f4] sm:$0xf]
        %v2349 = vld [vmem:[%s646 + $0x2f8] sm:$0xf]
        %v2350 = vld [vmem:[%s646 + $0x2fc] sm:$0xf]
        %v2351 = vld [vmem:[%s646 + $0x300] sm:$0xf]
        %v2352 = vld [vmem:[%s646 + $0x304] sm:$0xf]
        %v2353 = vld [vmem:[%s646 + $0x308] sm:$0xf]
        %v2354 = vld [vmem:[%s646 + $0x30c] sm:$0xf]
        %v2355 = vld [vmem:[%s646 + $0x310] sm:$0xf]
        %v2356 = vld [vmem:[%s646 + $0x314] sm:$0xf]
        %v2357 = vld [vmem:[%s646 + $0x318] sm:$0xf]
        %v2358 = vld [vmem:[%s646 + $0x31c] sm:$0xf]
        %v2359 = vld [vmem:[%s646 + $0x320] sm:$0xf]
        %v2360 = vld [vmem:[%s646 + $0x324] sm:$0xf]
        %v2361 = vld [vmem:[%s646 + $0x328] sm:$0xf]
        %v2362 = vld [vmem:[%s646 + $0x32c] sm:$0xf]
        %v2363 = vld [vmem:[%s646 + $0x330] sm:$0xf]
        %v2364 = vld [vmem:[%s646 + $0x334] sm:$0xf]
        %v2365 = vld [vmem:[%s646 + $0x338] sm:$0xf]
        %v2366 = vld [vmem:[%s646 + $0x33c] sm:$0xf]
        %v2367 = vld [vmem:[%s646 + $0x340] sm:$0xf]
        %v2368 = vld [vmem:[%s646 + $0x344] sm:$0xf]
        %v2369 = vld [vmem:[%s646 + $0x348] sm:$0xf]
        %v2370 = vld [vmem:[%s646 + $0x34c] sm:$0xf]
        %v2371 = vld [vmem:[%s646 + $0x350] sm:$0xf]
        %v2372 = vld [vmem:[%s646 + $0x354] sm:$0xf]
        %v2373 = vld [vmem:[%s646 + $0x358] sm:$0xf]
        %v2374 = vld [vmem:[%s646 + $0x35c] sm:$0xf]
        %v2375 = vld [vmem:[%s646 + $0x360] sm:$0xf]
        %v2376 = vld [vmem:[%s646 + $0x364] sm:$0xf]
        %v2377 = vld [vmem:[%s646 + $0x368] sm:$0xf]
        %v2378 = vld [vmem:[%s646 + $0x36c] sm:$0xf]
        %v2379 = vld [vmem:[%s646 + $0x370] sm:$0xf]
        %v2380 = vld [vmem:[%s646 + $0x374] sm:$0xf]
        %v2381 = vld [vmem:[%s646 + $0x378] sm:$0xf]
        %v2382 = vld [vmem:[%s646 + $0x37c] sm:$0xf]
        %v2383 = vld [vmem:[%s646 + $0x380] sm:$0xf]
        %v2384 = vld [vmem:[%s646 + $0x384] sm:$0xf]
        %v2385 = vld [vmem:[%s646 + $0x388] sm:$0xf]
        %v2386 = vld [vmem:[%s646 + $0x38c] sm:$0xf]
        %v2387 = vld [vmem:[%s646 + $0x390] sm:$0xf]
        %v2388 = vld [vmem:[%s646 + $0x394] sm:$0xf]
        %v2389 = vld [vmem:[%s646 + $0x398] sm:$0xf]
        %v2390 = vld [vmem:[%s646 + $0x39c] sm:$0xf]
        %v2391 = vld [vmem:[%s646 + $0x3a0] sm:$0xf]
        %v2392 = vld [vmem:[%s646 + $0x3a4] sm:$0xf]
        %v2393 = vld [vmem:[%s646 + $0x3a8] sm:$0xf]
        %v2394 = vld [vmem:[%s646 + $0x3ac] sm:$0xf]
        %v2395 = vld [vmem:[%s646 + $0x3b0] sm:$0xf]
        %v2396 = vld [vmem:[%s646 + $0x3b4] sm:$0xf]
        %v2397 = vld [vmem:[%s646 + $0x3b8] sm:$0xf]
        %v2398 = vld [vmem:[%s646 + $0x3bc] sm:$0xf]
        %v2399 = vld [vmem:[%s646 + $0x3c0] sm:$0xf]
        %v2400 = vld [vmem:[%s646 + $0x3c4] sm:$0xf]
        %v2401 = vld [vmem:[%s646 + $0x3c8] sm:$0xf]
        %v2402 = vld [vmem:[%s646 + $0x3cc] sm:$0xf]
        %v2403 = vld [vmem:[%s646 + $0x3d0] sm:$0xf]
        %v2404 = vld [vmem:[%s646 + $0x3d4] sm:$0xf]
        %v2405 = vld [vmem:[%s646 + $0x3d8] sm:$0xf]
        %v2406 = vld [vmem:[%s646 + $0x3dc] sm:$0xf]
        %v2407 = vld [vmem:[%s646 + $0x3e0] sm:$0xf]
        %v2408 = vld [vmem:[%s646 + $0x3e4] sm:$0xf]
        %v2409 = vld [vmem:[%s646 + $0x3e8] sm:$0xf]
        %v2410 = vld [vmem:[%s646 + $0x3ec] sm:$0xf]
        %v2411 = vld [vmem:[%s646 + $0x3f0] sm:$0xf]
        %v2412 = vld [vmem:[%s646 + $0x3f4] sm:$0xf]
        %v2413 = vld [vmem:[%s646 + $0x3f8] sm:$0xf]
        %v2414 = vld [vmem:[%s646 + $0x3fc] sm:$0xf]
        %v2415 = vld [vmem:[%s649] sm:$0x1]
        %v2417 = vlaneseq
        %v2418 = vshrl.u32 %v2417, 7
        %v2419 = vsub.s32 0, %v2418
        %v2420 = vrot.slane %v2415, %v2419
        %v2678 = vunpack.c.l.b16 %v2159
        %v2679 = vunpack.c.l.b16 %v2160
        %v2680 = vunpack.c.l.b16 %v2161
        %v2681 = vunpack.c.l.b16 %v2162
        %v2682 = vunpack.c.l.b16 %v2163
        %v2683 = vunpack.c.l.b16 %v2164
        %v2684 = vunpack.c.l.b16 %v2165
        %v2685 = vunpack.c.l.b16 %v2166
        %v2686 = vunpack.c.l.b16 %v2167
        %v2687 = vunpack.c.l.b16 %v2168
        %v2688 = vunpack.c.l.b16 %v2169
        %v2689 = vunpack.c.l.b16 %v2170
        %v2690 = vunpack.c.l.b16 %v2171
        %v2691 = vunpack.c.l.b16 %v2172
        %v2692 = vunpack.c.l.b16 %v2173
        %v2693 = vunpack.c.l.b16 %v2174
        %v2694 = vunpack.c.l.b16 %v2175
        %v2695 = vunpack.c.l.b16 %v2176
        %v2696 = vunpack.c.l.b16 %v2177
        %v2697 = vunpack.c.l.b16 %v2178
        %v2698 = vunpack.c.l.b16 %v2179
        %v2699 = vunpack.c.l.b16 %v2180
        %v2700 = vunpack.c.l.b16 %v2181
        %v2701 = vunpack.c.l.b16 %v2182
        %v2702 = vunpack.c.l.b16 %v2183
        %v2703 = vunpack.c.l.b16 %v2184
        %v2704 = vunpack.c.l.b16 %v2185
        %v2705 = vunpack.c.l.b16 %v2186
        %v2706 = vunpack.c.l.b16 %v2187
        %v2707 = vunpack.c.l.b16 %v2188
        %v2708 = vunpack.c.l.b16 %v2189
        %v2709 = vunpack.c.l.b16 %v2190
        %v2710 = vunpack.c.l.b16 %v2191
        %v2711 = vunpack.c.l.b16 %v2192
        %v2712 = vunpack.c.l.b16 %v2193
        %v2713 = vunpack.c.l.b16 %v2194
        %v2714 = vunpack.c.l.b16 %v2195
        %v2715 = vunpack.c.l.b16 %v2196
        %v2716 = vunpack.c.l.b16 %v2197
        %v2717 = vunpack.c.l.b16 %v2198
        %v2718 = vunpack.c.l.b16 %v2199
        %v2719 = vunpack.c.l.b16 %v2200
        %v2720 = vunpack.c.l.b16 %v2201
        %v2721 = vunpack.c.l.b16 %v2202
        %v2722 = vunpack.c.l.b16 %v2203
        %v2723 = vunpack.c.l.b16 %v2204
        %v2724 = vunpack.c.l.b16 %v2205
        %v2725 = vunpack.c.l.b16 %v2206
        %v2726 = vunpack.c.l.b16 %v2207
        %v2727 = vunpack.c.l.b16 %v2208
        %v2728 = vunpack.c.l.b16 %v2209
        %v2729 = vunpack.c.l.b16 %v2210
        %v2730 = vunpack.c.l.b16 %v2211
        %v2731 = vunpack.c.l.b16 %v2212
        %v2732 = vunpack.c.l.b16 %v2213
        %v2733 = vunpack.c.l.b16 %v2214
        %v2734 = vunpack.c.l.b16 %v2215
        %v2735 = vunpack.c.l.b16 %v2216
        %v2736 = vunpack.c.l.b16 %v2217
        %v2737 = vunpack.c.l.b16 %v2218
        %v2738 = vunpack.c.l.b16 %v2219
        %v2739 = vunpack.c.l.b16 %v2220
        %v2740 = vunpack.c.l.b16 %v2221
        %v2741 = vunpack.c.l.b16 %v2222
        %v2742 = vunpack.c.l.b16 %v2223
        %v2743 = vunpack.c.l.b16 %v2224
        %v2744 = vunpack.c.l.b16 %v2225
        %v2745 = vunpack.c.l.b16 %v2226
        %v2746 = vunpack.c.l.b16 %v2227
        %v2747 = vunpack.c.l.b16 %v2228
        %v2748 = vunpack.c.l.b16 %v2229
        %v2749 = vunpack.c.l.b16 %v2230
        %v2750 = vunpack.c.l.b16 %v2231
        %v2751 = vunpack.c.l.b16 %v2232
        %v2752 = vunpack.c.l.b16 %v2233
        %v2753 = vunpack.c.l.b16 %v2234
        %v2754 = vunpack.c.l.b16 %v2235
        %v2755 = vunpack.c.l.b16 %v2236
        %v2756 = vunpack.c.l.b16 %v2237
        %v2757 = vunpack.c.l.b16 %v2238
        %v2758 = vunpack.c.l.b16 %v2239
        %v2759 = vunpack.c.l.b16 %v2240
        %v2760 = vunpack.c.l.b16 %v2241
        %v2761 = vunpack.c.l.b16 %v2242
        %v2762 = vunpack.c.l.b16 %v2243
        %v2763 = vunpack.c.l.b16 %v2244
        %v2764 = vunpack.c.l.b16 %v2245
        %v2765 = vunpack.c.l.b16 %v2246
        %v2766 = vunpack.c.l.b16 %v2247
        %v2767 = vunpack.c.l.b16 %v2248
        %v2768 = vunpack.c.l.b16 %v2249
        %v2769 = vunpack.c.l.b16 %v2250
        %v2770 = vunpack.c.l.b16 %v2251
        %v2771 = vunpack.c.l.b16 %v2252
        %v2772 = vunpack.c.l.b16 %v2253
        %v2773 = vunpack.c.l.b16 %v2254
        %v2774 = vunpack.c.l.b16 %v2255
        %v2775 = vunpack.c.l.b16 %v2256
        %v2776 = vunpack.c.l.b16 %v2257
        %v2777 = vunpack.c.l.b16 %v2258
        %v2778 = vunpack.c.l.b16 %v2259
        %v2779 = vunpack.c.l.b16 %v2260
        %v2780 = vunpack.c.l.b16 %v2261
        %v2781 = vunpack.c.l.b16 %v2262
        %v2782 = vunpack.c.l.b16 %v2263
        %v2783 = vunpack.c.l.b16 %v2264
        %v2784 = vunpack.c.l.b16 %v2265
        %v2785 = vunpack.c.l.b16 %v2266
        %v2786 = vunpack.c.l.b16 %v2267
        %v2787 = vunpack.c.l.b16 %v2268
        %v2788 = vunpack.c.l.b16 %v2269
        %v2789 = vunpack.c.l.b16 %v2270
        %v2790 = vunpack.c.l.b16 %v2271
        %v2791 = vunpack.c.l.b16 %v2272
        %v2792 = vunpack.c.l.b16 %v2273
        %v2793 = vunpack.c.l.b16 %v2274
        %v2794 = vunpack.c.l.b16 %v2275
        %v2795 = vunpack.c.l.b16 %v2276
        %v2796 = vunpack.c.l.b16 %v2277
        %v2797 = vunpack.c.l.b16 %v2278
        %v2798 = vunpack.c.l.b16 %v2279
        %v2799 = vunpack.c.l.b16 %v2280
        %v2800 = vunpack.c.l.b16 %v2281
        %v2801 = vunpack.c.l.b16 %v2282
        %v2802 = vunpack.c.l.b16 %v2283
        %v2803 = vunpack.c.l.b16 %v2284
        %v2804 = vunpack.c.l.b16 %v2285
        %v2805 = vunpack.c.l.b16 %v2286
        %v2806 = vunpack.c.l.b16 %v2287
        %v2807 = vunpack.c.l.b16 %v2288
        %v2808 = vunpack.c.l.b16 %v2289
        %v2809 = vunpack.c.l.b16 %v2290
        %v2810 = vunpack.c.l.b16 %v2291
        %v2811 = vunpack.c.l.b16 %v2292
        %v2812 = vunpack.c.l.b16 %v2293
        %v2813 = vunpack.c.l.b16 %v2294
        %v2814 = vunpack.c.l.b16 %v2295
        %v2815 = vunpack.c.l.b16 %v2296
        %v2816 = vunpack.c.l.b16 %v2297
        %v2817 = vunpack.c.l.b16 %v2298
        %v2818 = vunpack.c.l.b16 %v2299
        %v2819 = vunpack.c.l.b16 %v2300
        %v2820 = vunpack.c.l.b16 %v2301
        %v2821 = vunpack.c.l.b16 %v2302
        %v2822 = vunpack.c.l.b16 %v2303
        %v2823 = vunpack.c.l.b16 %v2304
        %v2824 = vunpack.c.l.b16 %v2305
        %v2825 = vunpack.c.l.b16 %v2306
        %v2826 = vunpack.c.l.b16 %v2307
        %v2827 = vunpack.c.l.b16 %v2308
        %v2828 = vunpack.c.l.b16 %v2309
        %v2829 = vunpack.c.l.b16 %v2310
        %v2830 = vunpack.c.l.b16 %v2311
        %v2831 = vunpack.c.l.b16 %v2312
        %v2832 = vunpack.c.l.b16 %v2313
        %v2833 = vunpack.c.l.b16 %v2314
        %v2834 = vunpack.c.l.b16 %v2315
        %v2835 = vunpack.c.l.b16 %v2316
        %v2836 = vunpack.c.l.b16 %v2317
        %v2837 = vunpack.c.l.b16 %v2318
        %v2838 = vunpack.c.l.b16 %v2319
        %v2839 = vunpack.c.l.b16 %v2320
        %v2840 = vunpack.c.l.b16 %v2321
        %v2841 = vunpack.c.l.b16 %v2322
        %v2842 = vunpack.c.l.b16 %v2323
        %v2843 = vunpack.c.l.b16 %v2324
        %v2844 = vunpack.c.l.b16 %v2325
        %v2845 = vunpack.c.l.b16 %v2326
        %v2846 = vunpack.c.l.b16 %v2327
        %v2847 = vunpack.c.l.b16 %v2328
        %v2848 = vunpack.c.l.b16 %v2329
        %v2849 = vunpack.c.l.b16 %v2330
        %v2850 = vunpack.c.l.b16 %v2331
        %v2851 = vunpack.c.l.b16 %v2332
        %v2852 = vunpack.c.l.b16 %v2333
        %v2853 = vunpack.c.l.b16 %v2334
        %v2854 = vunpack.c.l.b16 %v2335
        %v2855 = vunpack.c.l.b16 %v2336
        %v2856 = vunpack.c.l.b16 %v2337
        %v2857 = vunpack.c.l.b16 %v2338
        %v2858 = vunpack.c.l.b16 %v2339
        %v2859 = vunpack.c.l.b16 %v2340
        %v2860 = vunpack.c.l.b16 %v2341
        %v2861 = vunpack.c.l.b16 %v2342
        %v2862 = vunpack.c.l.b16 %v2343
        %v2863 = vunpack.c.l.b16 %v2344
        %v2864 = vunpack.c.l.b16 %v2345
        %v2865 = vunpack.c.l.b16 %v2346
        %v2866 = vunpack.c.l.b16 %v2347
        %v2867 = vunpack.c.l.b16 %v2348
        %v2868 = vunpack.c.l.b16 %v2349
        %v2869 = vunpack.c.l.b16 %v2350
        %v2870 = vunpack.c.l.b16 %v2351
        %v2871 = vunpack.c.l.b16 %v2352
        %v2872 = vunpack.c.l.b16 %v2353
        %v2873 = vunpack.c.l.b16 %v2354
        %v2874 = vunpack.c.l.b16 %v2355
        %v2875 = vunpack.c.l.b16 %v2356
        %v2876 = vunpack.c.l.b16 %v2357
        %v2877 = vunpack.c.l.b16 %v2358
        %v2878 = vunpack.c.l.b16 %v2359
        %v2879 = vunpack.c.l.b16 %v2360
        %v2880 = vunpack.c.l.b16 %v2361
        %v2881 = vunpack.c.l.b16 %v2362
        %v2882 = vunpack.c.l.b16 %v2363
        %v2883 = vunpack.c.l.b16 %v2364
        %v2884 = vunpack.c.l.b16 %v2365
        %v2885 = vunpack.c.l.b16 %v2366
        %v2886 = vunpack.c.l.b16 %v2367
        %v2887 = vunpack.c.l.b16 %v2368
        %v2888 = vunpack.c.l.b16 %v2369
        %v2889 = vunpack.c.l.b16 %v2370
        %v2890 = vunpack.c.l.b16 %v2371
        %v2891 = vunpack.c.l.b16 %v2372
        %v2892 = vunpack.c.l.b16 %v2373
        %v2893 = vunpack.c.l.b16 %v2374
        %v2894 = vunpack.c.l.b16 %v2375
        %v2895 = vunpack.c.l.b16 %v2376
        %v2896 = vunpack.c.l.b16 %v2377
        %v2897 = vunpack.c.l.b16 %v2378
        %v2898 = vunpack.c.l.b16 %v2379
        %v2899 = vunpack.c.l.b16 %v2380
        %v2900 = vunpack.c.l.b16 %v2381
        %v2901 = vunpack.c.l.b16 %v2382
        %v2902 = vunpack.c.l.b16 %v2383
        %v2903 = vunpack.c.l.b16 %v2384
        %v2904 = vunpack.c.l.b16 %v2385
        %v2905 = vunpack.c.l.b16 %v2386
        %v2906 = vunpack.c.l.b16 %v2387
        %v2907 = vunpack.c.l.b16 %v2388
        %v2908 = vunpack.c.l.b16 %v2389
        %v2909 = vunpack.c.l.b16 %v2390
        %v2910 = vunpack.c.l.b16 %v2391
        %v2911 = vunpack.c.l.b16 %v2392
        %v2912 = vunpack.c.l.b16 %v2393
        %v2913 = vunpack.c.l.b16 %v2394
        %v2914 = vunpack.c.l.b16 %v2395
        %v2915 = vunpack.c.l.b16 %v2396
        %v2916 = vunpack.c.l.b16 %v2397
        %v2917 = vunpack.c.l.b16 %v2398
        %v2918 = vunpack.c.l.b16 %v2399
        %v2919 = vunpack.c.l.b16 %v2400
        %v2920 = vunpack.c.l.b16 %v2401
        %v2921 = vunpack.c.l.b16 %v2402
        %v2922 = vunpack.c.l.b16 %v2403
        %v2923 = vunpack.c.l.b16 %v2404
        %v2924 = vunpack.c.l.b16 %v2405
        %v2925 = vunpack.c.l.b16 %v2406
        %v2926 = vunpack.c.l.b16 %v2407
        %v2927 = vunpack.c.l.b16 %v2408
        %v2928 = vunpack.c.l.b16 %v2409
        %v2929 = vunpack.c.l.b16 %v2410
        %v2930 = vunpack.c.l.b16 %v2411
        %v2931 = vunpack.c.l.b16 %v2412
        %v2932 = vunpack.c.l.b16 %v2413
        %v2933 = vunpack.c.l.b16 %v2414
        %v2934 = vpack.c.b16 %v2679, %v2678
        %v2935 = vpack.c.b16 %v2681, %v2680
        %v2936 = vpack.c.b16 %v2683, %v2682
        %v2937 = vpack.c.b16 %v2685, %v2684
        %v2938 = vpack.c.b16 %v2687, %v2686
        %v2939 = vpack.c.b16 %v2689, %v2688
        %v2940 = vpack.c.b16 %v2691, %v2690
        %v2941 = vpack.c.b16 %v2693, %v2692
        %v2942 = vpack.c.b16 %v2695, %v2694
        %v2943 = vpack.c.b16 %v2697, %v2696
        %v2944 = vpack.c.b16 %v2699, %v2698
        %v2945 = vpack.c.b16 %v2701, %v2700
        %v2946 = vpack.c.b16 %v2703, %v2702
        %v2947 = vpack.c.b16 %v2705, %v2704
        %v2948 = vpack.c.b16 %v2707, %v2706
        %v2949 = vpack.c.b16 %v2709, %v2708
        %v2950 = vpack.c.b16 %v2711, %v2710
        %v2951 = vpack.c.b16 %v2713, %v2712
        %v2952 = vpack.c.b16 %v2715, %v2714
        %v2953 = vpack.c.b16 %v2717, %v2716
        %v2954 = vpack.c.b16 %v2719, %v2718
        %v2955 = vpack.c.b16 %v2721, %v2720
        %v2956 = vpack.c.b16 %v2723, %v2722
        %v2957 = vpack.c.b16 %v2725, %v2724
        %v2958 = vpack.c.b16 %v2727, %v2726
        %v2959 = vpack.c.b16 %v2729, %v2728
        %v2960 = vpack.c.b16 %v2731, %v2730
        %v2961 = vpack.c.b16 %v2733, %v2732
        %v2962 = vpack.c.b16 %v2735, %v2734
        %v2963 = vpack.c.b16 %v2737, %v2736
        %v2964 = vpack.c.b16 %v2739, %v2738
        %v2965 = vpack.c.b16 %v2741, %v2740
        %v2966 = vpack.c.b16 %v2743, %v2742
        %v2967 = vpack.c.b16 %v2745, %v2744
        %v2968 = vpack.c.b16 %v2747, %v2746
        %v2969 = vpack.c.b16 %v2749, %v2748
        %v2970 = vpack.c.b16 %v2751, %v2750
        %v2971 = vpack.c.b16 %v2753, %v2752
        %v2972 = vpack.c.b16 %v2755, %v2754
        %v2973 = vpack.c.b16 %v2757, %v2756
        %v2974 = vpack.c.b16 %v2759, %v2758
        %v2975 = vpack.c.b16 %v2761, %v2760
        %v2976 = vpack.c.b16 %v2763, %v2762
        %v2977 = vpack.c.b16 %v2765, %v2764
        %v2978 = vpack.c.b16 %v2767, %v2766
        %v2979 = vpack.c.b16 %v2769, %v2768
        %v2980 = vpack.c.b16 %v2771, %v2770
        %v2981 = vpack.c.b16 %v2773, %v2772
        %v2982 = vpack.c.b16 %v2775, %v2774
        %v2983 = vpack.c.b16 %v2777, %v2776
        %v2984 = vpack.c.b16 %v2779, %v2778
        %v2985 = vpack.c.b16 %v2781, %v2780
        %v2986 = vpack.c.b16 %v2783, %v2782
        %v2987 = vpack.c.b16 %v2785, %v2784
        %v2988 = vpack.c.b16 %v2787, %v2786
        %v2989 = vpack.c.b16 %v2789, %v2788
        %v2990 = vpack.c.b16 %v2791, %v2790
        %v2991 = vpack.c.b16 %v2793, %v2792
        %v2992 = vpack.c.b16 %v2795, %v2794
        %v2993 = vpack.c.b16 %v2797, %v2796
        %v2994 = vpack.c.b16 %v2799, %v2798
        %v2995 = vpack.c.b16 %v2801, %v2800
        %v2996 = vpack.c.b16 %v2803, %v2802
        %v2997 = vpack.c.b16 %v2805, %v2804
        %v2998 = vpack.c.b16 %v2807, %v2806
        %v2999 = vpack.c.b16 %v2809, %v2808
        %v3000 = vpack.c.b16 %v2811, %v2810
        %v3001 = vpack.c.b16 %v2813, %v2812
        %v3002 = vpack.c.b16 %v2815, %v2814
        %v3003 = vpack.c.b16 %v2817, %v2816
        %v3004 = vpack.c.b16 %v2819, %v2818
        %v3005 = vpack.c.b16 %v2821, %v2820
        %v3006 = vpack.c.b16 %v2823, %v2822
        %v3007 = vpack.c.b16 %v2825, %v2824
        %v3008 = vpack.c.b16 %v2827, %v2826
        %v3009 = vpack.c.b16 %v2829, %v2828
        %v3010 = vpack.c.b16 %v2831, %v2830
        %v3011 = vpack.c.b16 %v2833, %v2832
        %v3012 = vpack.c.b16 %v2835, %v2834
        %v3013 = vpack.c.b16 %v2837, %v2836
        %v3014 = vpack.c.b16 %v2839, %v2838
        %v3015 = vpack.c.b16 %v2841, %v2840
        %v3016 = vpack.c.b16 %v2843, %v2842
        %v3017 = vpack.c.b16 %v2845, %v2844
        %v3018 = vpack.c.b16 %v2847, %v2846
        %v3019 = vpack.c.b16 %v2849, %v2848
        %v3020 = vpack.c.b16 %v2851, %v2850
        %v3021 = vpack.c.b16 %v2853, %v2852
        %v3022 = vpack.c.b16 %v2855, %v2854
        %v3023 = vpack.c.b16 %v2857, %v2856
        %v3024 = vpack.c.b16 %v2859, %v2858
        %v3025 = vpack.c.b16 %v2861, %v2860
        %v3026 = vpack.c.b16 %v2863, %v2862
        %v3027 = vpack.c.b16 %v2865, %v2864
        %v3028 = vpack.c.b16 %v2867, %v2866
        %v3029 = vpack.c.b16 %v2869, %v2868
        %v3030 = vpack.c.b16 %v2871, %v2870
        %v3031 = vpack.c.b16 %v2873, %v2872
        %v3032 = vpack.c.b16 %v2875, %v2874
        %v3033 = vpack.c.b16 %v2877, %v2876
        %v3034 = vpack.c.b16 %v2879, %v2878
        %v3035 = vpack.c.b16 %v2881, %v2880
        %v3036 = vpack.c.b16 %v2883, %v2882
        %v3037 = vpack.c.b16 %v2885, %v2884
        %v3038 = vpack.c.b16 %v2887, %v2886
        %v3039 = vpack.c.b16 %v2889, %v2888
        %v3040 = vpack.c.b16 %v2891, %v2890
        %v3041 = vpack.c.b16 %v2893, %v2892
        %v3042 = vpack.c.b16 %v2895, %v2894
        %v3043 = vpack.c.b16 %v2897, %v2896
        %v3044 = vpack.c.b16 %v2899, %v2898
        %v3045 = vpack.c.b16 %v2901, %v2900
        %v3046 = vpack.c.b16 %v2903, %v2902
        %v3047 = vpack.c.b16 %v2905, %v2904
        %v3048 = vpack.c.b16 %v2907, %v2906
        %v3049 = vpack.c.b16 %v2909, %v2908
        %v3050 = vpack.c.b16 %v2911, %v2910
        %v3051 = vpack.c.b16 %v2913, %v2912
        %v3052 = vpack.c.b16 %v2915, %v2914
        %v3053 = vpack.c.b16 %v2917, %v2916
        %v3054 = vpack.c.b16 %v2919, %v2918
        %v3055 = vpack.c.b16 %v2921, %v2920
        %v3056 = vpack.c.b16 %v2923, %v2922
        %v3057 = vpack.c.b16 %v2925, %v2924
        %v3058 = vpack.c.b16 %v2927, %v2926
        %v3059 = vpack.c.b16 %v2929, %v2928
        %v3060 = vpack.c.b16 %v2931, %v2930
        %v3061 = vpack.c.b16 %v2933, %v2932
        %3190 = vmatprep.subr.bf16.mxu0 0
        %3191 = vmatpush1.bf16.msra.mxu0 %v2934
        %3192 = vmatprep.subr.bf16.mxu0 0
        %3193 = vmatpush1.bf16.msra.mxu0 %v2935
        %3194 = vmatprep.subr.bf16.mxu0 0
        %3195 = vmatpush1.bf16.msra.mxu0 %v2936
        %3196 = vmatprep.subr.bf16.mxu0 0
        %3197 = vmatpush1.bf16.msra.mxu0 %v2937
        %3198 = vmatprep.subr.bf16.mxu0 0
        %3199 = vmatpush1.bf16.msra.mxu0 %v2938
        %3200 = vmatprep.subr.bf16.mxu0 0
        %3201 = vmatpush1.bf16.msra.mxu0 %v2939
        %3202 = vmatprep.subr.bf16.mxu0 0
        %3203 = vmatpush1.bf16.msra.mxu0 %v2940
        %3204 = vmatprep.subr.bf16.mxu0 0
        %3205 = vmatpush1.bf16.msra.mxu0 %v2941
        %3206 = vmatprep.subr.bf16.mxu0 0
        %3207 = vmatpush1.bf16.msra.mxu0 %v2942
        %3208 = vmatprep.subr.bf16.mxu0 0
        %3209 = vmatpush1.bf16.msra.mxu0 %v2943
        %3210 = vmatprep.subr.bf16.mxu0 0
        %3211 = vmatpush1.bf16.msra.mxu0 %v2944
        %3212 = vmatprep.subr.bf16.mxu0 0
        %3213 = vmatpush1.bf16.msra.mxu0 %v2945
        %3214 = vmatprep.subr.bf16.mxu0 0
        %3215 = vmatpush1.bf16.msra.mxu0 %v2946
        %3216 = vmatprep.subr.bf16.mxu0 0
        %3217 = vmatpush1.bf16.msra.mxu0 %v2947
        %3218 = vmatprep.subr.bf16.mxu0 0
        %3219 = vmatpush1.bf16.msra.mxu0 %v2948
        %3220 = vmatprep.subr.bf16.mxu0 0
        %3221 = vmatpush1.bf16.msra.mxu0 %v2949
        %3222 = vmatprep.mubr.bf16.mxu0 %v2144
        %3223 = vmatmul.mubr.bf16.gmra.mrb[0].mxu0 %v2143
        %v3224 = vpop.f32.mrb[0].mxu0
        %v3225 = vadd.f32 %v2420, %v3224
        %v3226 = vpop.f32.mrb[0].mxu0
        %v3227 = vpop.f32.mrb[0].mxu0
        %v3228 = vpop.f32.mrb[0].mxu0
        %3229 = vdwg.mxu0
        %3230 = vmatprep.subr.bf16.mxu0 0
        %3231 = vmatpush1.bf16.msra.mxu0 %v2950
        %3232 = vmatprep.subr.bf16.mxu0 0
        %3233 = vmatpush1.bf16.msra.mxu0 %v2951
        %3234 = vmatprep.subr.bf16.mxu0 0
        %3235 = vmatpush1.bf16.msra.mxu0 %v2952
        %3236 = vmatprep.subr.bf16.mxu0 0
        %3237 = vmatpush1.bf16.msra.mxu0 %v2953
        %3238 = vmatprep.subr.bf16.mxu0 0
        %3239 = vmatpush1.bf16.msra.mxu0 %v2954
        %3240 = vmatprep.subr.bf16.mxu0 0
        %3241 = vmatpush1.bf16.msra.mxu0 %v2955
        %3242 = vmatprep.subr.bf16.mxu0 0
        %3243 = vmatpush1.bf16.msra.mxu0 %v2956
        %3244 = vmatprep.subr.bf16.mxu0 0
        %3245 = vmatpush1.bf16.msra.mxu0 %v2957
        %3246 = vmatprep.subr.bf16.mxu0 0
        %3247 = vmatpush1.bf16.msra.mxu0 %v2958
        %3248 = vmatprep.subr.bf16.mxu0 0
        %3249 = vmatpush1.bf16.msra.mxu0 %v2959
        %3250 = vmatprep.subr.bf16.mxu0 0
        %3251 = vmatpush1.bf16.msra.mxu0 %v2960
        %3252 = vmatprep.subr.bf16.mxu0 0
        %3253 = vmatpush1.bf16.msra.mxu0 %v2961
        %3254 = vmatprep.subr.bf16.mxu0 0
        %3255 = vmatpush1.bf16.msra.mxu0 %v2962
        %3256 = vmatprep.subr.bf16.mxu0 0
        %3257 = vmatpush1.bf16.msra.mxu0 %v2963
        %3258 = vmatprep.subr.bf16.mxu0 0
        %3259 = vmatpush1.bf16.msra.mxu0 %v2964
        %3260 = vmatprep.subr.bf16.mxu0 0
        %3261 = vmatpush1.bf16.msra.mxu0 %v2965
        %3262 = vmatprep.mubr.bf16.mxu0 %v2146
        %3263 = vmatmul.mubr.bf16.gmra.mrb[0].mxu0 %v2145
        %v3264 = vpop.f32.mrb[0].mxu0
        %v3265 = vadd.f32 %v3225, %v3264
        %v3266 = vpop.f32.mrb[0].mxu0
        %v3267 = vpop.f32.mrb[0].mxu0
        %v3268 = vpop.f32.mrb[0].mxu0
        %3269 = vdwg.mxu0
        %3270 = vmatprep.subr.bf16.mxu0 0
        %3271 = vmatpush1.bf16.msra.mxu0 %v2966
        %3272 = vmatprep.subr.bf16.mxu0 0
        %3273 = vmatpush1.bf16.msra.mxu0 %v2967
        %3274 = vmatprep.subr.bf16.mxu0 0
        %3275 = vmatpush1.bf16.msra.mxu0 %v2968
        %3276 = vmatprep.subr.bf16.mxu0 0
        %3277 = vmatpush1.bf16.msra.mxu0 %v2969
        %3278 = vmatprep.subr.bf16.mxu0 0
        %3279 = vmatpush1.bf16.msra.mxu0 %v2970
        %3280 = vmatprep.subr.bf16.mxu0 0
        %3281 = vmatpush1.bf16.msra.mxu0 %v2971
        %3282 = vmatprep.subr.bf16.mxu0 0
        %3283 = vmatpush1.bf16.msra.mxu0 %v2972
        %3284 = vmatprep.subr.bf16.mxu0 0
        %3285 = vmatpush1.bf16.msra.mxu0 %v2973
        %3286 = vmatprep.subr.bf16.mxu0 0
        %3287 = vmatpush1.bf16.msra.mxu0 %v2974
        %3288 = vmatprep.subr.bf16.mxu0 0
        %3289 = vmatpush1.bf16.msra.mxu0 %v2975
        %3290 = vmatprep.subr.bf16.mxu0 0
        %3291 = vmatpush1.bf16.msra.mxu0 %v2976
        %3292 = vmatprep.subr.bf16.mxu0 0
        %3293 = vmatpush1.bf16.msra.mxu0 %v2977
        %3294 = vmatprep.subr.bf16.mxu0 0
        %3295 = vmatpush1.bf16.msra.mxu0 %v2978
        %3296 = vmatprep.subr.bf16.mxu0 0
        %3297 = vmatpush1.bf16.msra.mxu0 %v2979
        %3298 = vmatprep.subr.bf16.mxu0 0
        %3299 = vmatpush1.bf16.msra.mxu0 %v2980
        %3300 = vmatprep.subr.bf16.mxu0 0
        %3301 = vmatpush1.bf16.msra.mxu0 %v2981
        %3302 = vmatprep.mubr.bf16.mxu0 %v2148
        %3303 = vmatmul.mubr.bf16.gmra.mrb[0].mxu0 %v2147
        %v3304 = vpop.f32.mrb[0].mxu0
        %v3305 = vadd.f32 %v3265, %v3304
        %v3306 = vpop.f32.mrb[0].mxu0
        %v3307 = vpop.f32.mrb[0].mxu0
        %v3308 = vpop.f32.mrb[0].mxu0
        %3309 = vdwg.mxu0
        %3310 = vmatprep.subr.bf16.mxu0 0
        %3311 = vmatpush1.bf16.msra.mxu0 %v2982
        %3312 = vmatprep.subr.bf16.mxu0 0
        %3313 = vmatpush1.bf16.msra.mxu0 %v2983
        %3314 = vmatprep.subr.bf16.mxu0 0
        %3315 = vmatpush1.bf16.msra.mxu0 %v2984
        %3316 = vmatprep.subr.bf16.mxu0 0
        %3317 = vmatpush1.bf16.msra.mxu0 %v2985
        %3318 = vmatprep.subr.bf16.mxu0 0
        %3319 = vmatpush1.bf16.msra.mxu0 %v2986
        %3320 = vmatprep.subr.bf16.mxu0 0
        %3321 = vmatpush1.bf16.msra.mxu0 %v2987
        %3322 = vmatprep.subr.bf16.mxu0 0
        %3323 = vmatpush1.bf16.msra.mxu0 %v2988
        %3324 = vmatprep.subr.bf16.mxu0 0
        %3325 = vmatpush1.bf16.msra.mxu0 %v2989
        %3326 = vmatprep.subr.bf16.mxu0 0
        %3327 = vmatpush1.bf16.msra.mxu0 %v2990
        %3328 = vmatprep.subr.bf16.mxu0 0
        %3329 = vmatpush1.bf16.msra.mxu0 %v2991
        %3330 = vmatprep.subr.bf16.mxu0 0
        %3331 = vmatpush1.bf16.msra.mxu0 %v2992
        %3332 = vmatprep.subr.bf16.mxu0 0
        %3333 = vmatpush1.bf16.msra.mxu0 %v2993
        %3334 = vmatprep.subr.bf16.mxu0 0
        %3335 = vmatpush1.bf16.msra.mxu0 %v2994
        %3336 = vmatprep.subr.bf16.mxu0 0
        %3337 = vmatpush1.bf16.msra.mxu0 %v2995
        %3338 = vmatprep.subr.bf16.mxu0 0
        %3339 = vmatpush1.bf16.msra.mxu0 %v2996
        %3340 = vmatprep.subr.bf16.mxu0 0
        %3341 = vmatpush1.bf16.msra.mxu0 %v2997
        %3342 = vmatprep.mubr.bf16.mxu0 %v2150
        %3343 = vmatmul.mubr.bf16.gmra.mrb[0].mxu0 %v2149
        %v3344 = vpop.f32.mrb[0].mxu0
        %v3345 = vadd.f32 %v3305, %v3344
        %v3346 = vpop.f32.mrb[0].mxu0
        %v3347 = vpop.f32.mrb[0].mxu0
        %v3348 = vpop.f32.mrb[0].mxu0
        %3349 = vdwg.mxu0
        %3350 = vmatprep.subr.bf16.mxu0 0
        %3351 = vmatpush1.bf16.msra.mxu0 %v2998
        %3352 = vmatprep.subr.bf16.mxu0 0
        %3353 = vmatpush1.bf16.msra.mxu0 %v2999
        %3354 = vmatprep.subr.bf16.mxu0 0
        %3355 = vmatpush1.bf16.msra.mxu0 %v3000
        %3356 = vmatprep.subr.bf16.mxu0 0
        %3357 = vmatpush1.bf16.msra.mxu0 %v3001
        %3358 = vmatprep.subr.bf16.mxu0 0
        %3359 = vmatpush1.bf16.msra.mxu0 %v3002
        %3360 = vmatprep.subr.bf16.mxu0 0
        %3361 = vmatpush1.bf16.msra.mxu0 %v3003
        %3362 = vmatprep.subr.bf16.mxu0 0
        %3363 = vmatpush1.bf16.msra.mxu0 %v3004
        %3364 = vmatprep.subr.bf16.mxu0 0
        %3365 = vmatpush1.bf16.msra.mxu0 %v3005
        %3366 = vmatprep.subr.bf16.mxu0 0
        %3367 = vmatpush1.bf16.msra.mxu0 %v3006
        %3368 = vmatprep.subr.bf16.mxu0 0
        %3369 = vmatpush1.bf16.msra.mxu0 %v3007
        %3370 = vmatprep.subr.bf16.mxu0 0
        %3371 = vmatpush1.bf16.msra.mxu0 %v3008
        %3372 = vmatprep.subr.bf16.mxu0 0
        %3373 = vmatpush1.bf16.msra.mxu0 %v3009
        %3374 = vmatprep.subr.bf16.mxu0 0
        %3375 = vmatpush1.bf16.msra.mxu0 %v3010
        %3376 = vmatprep.subr.bf16.mxu0 0
        %3377 = vmatpush1.bf16.msra.mxu0 %v3011
        %3378 = vmatprep.subr.bf16.mxu0 0
        %3379 = vmatpush1.bf16.msra.mxu0 %v3012
        %3380 = vmatprep.subr.bf16.mxu0 0
        %3381 = vmatpush1.bf16.msra.mxu0 %v3013
        %3382 = vmatprep.mubr.bf16.mxu0 %v2152
        %3383 = vmatmul.mubr.bf16.gmra.mrb[0].mxu0 %v2151
        %v3384 = vpop.f32.mrb[0].mxu0
        %v3385 = vadd.f32 %v3345, %v3384
        %v3386 = vpop.f32.mrb[0].mxu0
        %v3387 = vpop.f32.mrb[0].mxu0
        %v3388 = vpop.f32.mrb[0].mxu0
        %3389 = vdwg.mxu0
        %3390 = vmatprep.subr.bf16.mxu0 0
        %3391 = vmatpush1.bf16.msra.mxu0 %v3014
        %3392 = vmatprep.subr.bf16.mxu0 0
        %3393 = vmatpush1.bf16.msra.mxu0 %v3015
        %3394 = vmatprep.subr.bf16.mxu0 0
        %3395 = vmatpush1.bf16.msra.mxu0 %v3016
        %3396 = vmatprep.subr.bf16.mxu0 0
        %3397 = vmatpush1.bf16.msra.mxu0 %v3017
        %3398 = vmatprep.subr.bf16.mxu0 0
        %3399 = vmatpush1.bf16.msra.mxu0 %v3018
        %3400 = vmatprep.subr.bf16.mxu0 0
        %3401 = vmatpush1.bf16.msra.mxu0 %v3019
        %3402 = vmatprep.subr.bf16.mxu0 0
        %3403 = vmatpush1.bf16.msra.mxu0 %v3020
        %3404 = vmatprep.subr.bf16.mxu0 0
        %3405 = vmatpush1.bf16.msra.mxu0 %v3021
        %3406 = vmatprep.subr.bf16.mxu0 0
        %3407 = vmatpush1.bf16.msra.mxu0 %v3022
        %3408 = vmatprep.subr.bf16.mxu0 0
        %3409 = vmatpush1.bf16.msra.mxu0 %v3023
        %3410 = vmatprep.subr.bf16.mxu0 0
        %3411 = vmatpush1.bf16.msra.mxu0 %v3024
        %3412 = vmatprep.subr.bf16.mxu0 0
        %3413 = vmatpush1.bf16.msra.mxu0 %v3025
        %3414 = vmatprep.subr.bf16.mxu0 0
        %3415 = vmatpush1.bf16.msra.mxu0 %v3026
        %3416 = vmatprep.subr.bf16.mxu0 0
        %3417 = vmatpush1.bf16.msra.mxu0 %v3027
        %3418 = vmatprep.subr.bf16.mxu0 0
        %3419 = vmatpush1.bf16.msra.mxu0 %v3028
        %3420 = vmatprep.subr.bf16.mxu0 0
        %3421 = vmatpush1.bf16.msra.mxu0 %v3029
        %3422 = vmatprep.mubr.bf16.mxu0 %v2154
        %3423 = vmatmul.mubr.bf16.gmra.mrb[0].mxu0 %v2153
        %v3424 = vpop.f32.mrb[0].mxu0
        %v3425 = vadd.f32 %v3385, %v3424
        %v3426 = vpop.f32.mrb[0].mxu0
        %v3427 = vpop.f32.mrb[0].mxu0
        %v3428 = vpop.f32.mrb[0].mxu0
        %3429 = vdwg.mxu0
        %3430 = vmatprep.subr.bf16.mxu0 0
        %3431 = vmatpush1.bf16.msra.mxu0 %v3030
        %3432 = vmatprep.subr.bf16.mxu0 0
        %3433 = vmatpush1.bf16.msra.mxu0 %v3031
        %3434 = vmatprep.subr.bf16.mxu0 0
        %3435 = vmatpush1.bf16.msra.mxu0 %v3032
        %3436 = vmatprep.subr.bf16.mxu0 0
        %3437 = vmatpush1.bf16.msra.mxu0 %v3033
        %3438 = vmatprep.subr.bf16.mxu0 0
        %3439 = vmatpush1.bf16.msra.mxu0 %v3034
        %3440 = vmatprep.subr.bf16.mxu0 0
        %3441 = vmatpush1.bf16.msra.mxu0 %v3035
        %3442 = vmatprep.subr.bf16.mxu0 0
        %3443 = vmatpush1.bf16.msra.mxu0 %v3036
        %3444 = vmatprep.subr.bf16.mxu0 0
        %3445 = vmatpush1.bf16.msra.mxu0 %v3037
        %3446 = vmatprep.subr.bf16.mxu0 0
        %3447 = vmatpush1.bf16.msra.mxu0 %v3038
        %3448 = vmatprep.subr.bf16.mxu0 0
        %3449 = vmatpush1.bf16.msra.mxu0 %v3039
        %3450 = vmatprep.subr.bf16.mxu0 0
        %3451 = vmatpush1.bf16.msra.mxu0 %v3040
        %3452 = vmatprep.subr.bf16.mxu0 0
        %3453 = vmatpush1.bf16.msra.mxu0 %v3041
        %3454 = vmatprep.subr.bf16.mxu0 0
        %3455 = vmatpush1.bf16.msra.mxu0 %v3042
        %3456 = vmatprep.subr.bf16.mxu0 0
        %3457 = vmatpush1.bf16.msra.mxu0 %v3043
        %3458 = vmatprep.subr.bf16.mxu0 0
        %3459 = vmatpush1.bf16.msra.mxu0 %v3044
        %3460 = vmatprep.subr.bf16.mxu0 0
        %3461 = vmatpush1.bf16.msra.mxu0 %v3045
        %3462 = vmatprep.mubr.bf16.mxu0 %v2156
        %3463 = vmatmul.mubr.bf16.gmra.mrb[0].mxu0 %v2155
        %v3464 = vpop.f32.mrb[0].mxu0
        %v3465 = vadd.f32 %v3425, %v3464
        %v3466 = vpop.f32.mrb[0].mxu0
        %v3467 = vpop.f32.mrb[0].mxu0
        %v3468 = vpop.f32.mrb[0].mxu0
        %3469 = vdwg.mxu0
        %3470 = vmatprep.subr.bf16.mxu0 0
        %3471 = vmatpush1.bf16.msra.mxu0 %v3046
        %3472 = vmatprep.subr.bf16.mxu0 0
        %3473 = vmatpush1.bf16.msra.mxu0 %v3047
        %3474 = vmatprep.subr.bf16.mxu0 0
        %3475 = vmatpush1.bf16.msra.mxu0 %v3048
        %3476 = vmatprep.subr.bf16.mxu0 0
        %3477 = vmatpush1.bf16.msra.mxu0 %v3049
        %3478 = vmatprep.subr.bf16.mxu0 0
        %3479 = vmatpush1.bf16.msra.mxu0 %v3050
        %3480 = vmatprep.subr.bf16.mxu0 0
        %3481 = vmatpush1.bf16.msra.mxu0 %v3051
        %3482 = vmatprep.subr.bf16.mxu0 0
        %3483 = vmatpush1.bf16.msra.mxu0 %v3052
        %3484 = vmatprep.subr.bf16.mxu0 0
        %3485 = vmatpush1.bf16.msra.mxu0 %v3053
        %3486 = vmatprep.subr.bf16.mxu0 0
        %3487 = vmatpush1.bf16.msra.mxu0 %v3054
        %3488 = vmatprep.subr.bf16.mxu0 0
        %3489 = vmatpush1.bf16.msra.mxu0 %v3055
        %3490 = vmatprep.subr.bf16.mxu0 0
        %3491 = vmatpush1.bf16.msra.mxu0 %v3056
        %3492 = vmatprep.subr.bf16.mxu0 0
        %3493 = vmatpush1.bf16.msra.mxu0 %v3057
        %3494 = vmatprep.subr.bf16.mxu0 0
        %3495 = vmatpush1.bf16.msra.mxu0 %v3058
        %3496 = vmatprep.subr.bf16.mxu0 0
        %3497 = vmatpush1.bf16.msra.mxu0 %v3059
        %3498 = vmatprep.subr.bf16.mxu0 0
        %3499 = vmatpush1.bf16.msra.mxu0 %v3060
        %3500 = vmatprep.subr.bf16.mxu0 0
        %3501 = vmatpush1.bf16.msra.mxu0 %v3061
        %3502 = vmatprep.mubr.bf16.mxu0 %v2158
        %3503 = vmatmul.mubr.bf16.gmra.mrb[0].mxu0 %v2157
        %v3504 = vpop.f32.mrb[0].mxu0
        %v3505 = vadd.f32 %v3465, %v3504
        %v3506 = vpop.f32.mrb[0].mxu0
        %v3507 = vpop.f32.mrb[0].mxu0
        %v3508 = vpop.f32.mrb[0].mxu0
        %3509 = vdwg.mxu0
        %v3510 = vadd.f32 %v1518, %v3505
        %v3511 = vld [vmem:[%s652] sm:$0x1]
        %v3512 = vld [vmem:[%s655] sm:$0x1]
        %v3513 = vsel %vm689, %v3510, 0.0
        %3514 = vadd.xlane.f32.xlu0 %v3513
        %v3515 = vpop.xlane.xlu0 %3514
        %v3516 = vmul.f32 %v3515, %v1494
        %v3517 = vsub.f32 %v3510, %v3516
        %v3518 = vmul.f32 %v3517, %v3517
        %v3519 = vsel %vm689, %v3518, 0.0
        %3520 = vadd.xlane.f32.xlu0 %v3519
        %v3521 = vpop.xlane.xlu0 %3520
        %v3522 = vmul.f32 %v3521, %v1494
        %v3523 = vadd.f32 %v3522, 1e-05
        %v3524 = vrsqrt.pop %v3523
        %v3525 = vmul.f32 %v3517, %v3524
        %v3527 = vlaneseq
        %v3528 = vshrl.u32 %v3527, 7
        %v3529 = vsub.s32 0, %v3528
        %v3530 = vrot.slane %v3511, %v3529
        %v3532 = vmul.f32 %v3525, %v3530
        %v3534 = vlaneseq
        %v3535 = vshrl.u32 %v3534, 7
        %v3536 = vsub.s32 0, %v3535
        %v3537 = vrot.slane %v3512, %v3536
        %v3539 = vadd.f32 %v3532, %v3537
        %3540 = vst.msk [vmem:[#allocation2] sm:$0xff] %vm689, %v3539
        %p3541 = scmp.eq.s32.totalorder %s27, 1
        // Predicated region
        $region85: #{tpu_custom_call.1} parent=79 // pred_check
          %p3542 = pneg %p3541
        $region86: #{tpu_custom_call.1} parent=79 // pred_check_branch
          %3544 = sbr.rel (%p3542) target = $region88
        $region87: #{tpu_custom_call.1} parent=79 // pred_region
          %v3545 = vpack.c.bf16 %v3539, %v3539
          %v3546 = vld [vmem:[%s13] sm:$0xf]
          %v3547 = vld [vmem:[%s13 + $0x4] sm:$0xf]
          %v3548 = vld [vmem:[%s13 + $0x8] sm:$0xf]
          %v3549 = vld [vmem:[%s13 + $0xc] sm:$0xf]
          %v3550 = vld [vmem:[%s14] sm:$0x1]
          %v3552 = vlaneseq
          %v3553 = vshrl.u32 %v3552, 7
          %v3554 = vsub.s32 0, %v3553
          %v3555 = vrot.slane %v3550, %v3554
          %v3561 = vunpack.c.l.b16 %v3546
          %v3562 = vunpack.c.l.b16 %v3547
          %v3563 = vunpack.c.l.b16 %v3548
          %v3564 = vunpack.c.l.b16 %v3549
          %v3565 = vpack.c.b16 %v3562, %v3561
          %v3566 = vpack.c.b16 %v3564, %v3563
          %v3570 = vsel %vm689, %v3545, 0
          %3572 = vmatprep.subr.bf16.mxu0 0
          %3573 = vmatpush1.bf16.msra.mxu0 %v3565
          %3574 = vmatprep.subr.bf16.mxu0 0
          %3575 = vmatpush1.bf16.msra.mxu0 %v3566
          %3576 = vmatprep.subr.bf16.mxu0 0
          %3577 = vmatpush1.bf16.msra.mxu0 0
          %3578 = vmatprep.subr.bf16.mxu0 0
          %3579 = vmatpush1.bf16.msra.mxu0 0
          %3580 = vmatprep.subr.bf16.mxu0 0
          %3581 = vmatpush1.bf16.msra.mxu0 0
          %3582 = vmatprep.subr.bf16.mxu0 0
          %3583 = vmatpush1.bf16.msra.mxu0 0
          %3584 = vmatprep.subr.bf16.mxu0 0
          %3585 = vmatpush1.bf16.msra.mxu0 0
          %3586 = vmatprep.subr.bf16.mxu0 0
          %3587 = vmatpush1.bf16.msra.mxu0 0
          %3588 = vmatprep.subr.bf16.mxu0 0
          %3589 = vmatpush1.bf16.msra.mxu0 0
          %3590 = vmatprep.subr.bf16.mxu0 0
          %3591 = vmatpush1.bf16.msra.mxu0 0
          %3592 = vmatprep.subr.bf16.mxu0 0
          %3593 = vmatpush1.bf16.msra.mxu0 0
          %3594 = vmatprep.subr.bf16.mxu0 0
          %3595 = vmatpush1.bf16.msra.mxu0 0
          %3596 = vmatprep.subr.bf16.mxu0 0
          %3597 = vmatpush1.bf16.msra.mxu0 0
          %3598 = vmatprep.subr.bf16.mxu0 0
          %3599 = vmatpush1.bf16.msra.mxu0 0
          %3600 = vmatprep.subr.bf16.mxu0 0
          %3601 = vmatpush1.bf16.msra.mxu0 0
          %3602 = vmatprep.subr.bf16.mxu0 0
          %3603 = vmatpush1.bf16.msra.mxu0 0
          %3604 = vmatprep.mubr.bf16.mxu0 0
          %3605 = vmatmul.mubr.bf16.gmra.mrb[0].mxu0 %v3570
          %v3606 = vpop.f32.mrb[0].mxu0
          %v3607 = vadd.f32 %v3555, %v3606
          %v3608 = vpop.f32.mrb[0].mxu0
          %v3609 = vpop.f32.mrb[0].mxu0
          %v3610 = vpop.f32.mrb[0].mxu0
          %3611 = vdwg.mxu0
          %3612 = vst [vmem:[#allocation5] sm:$0xff] %v3607
        $region88: #{tpu_custom_call.1} parent=79 // pred_fallthru
          _
        // Predicated region
        $region89: #{tpu_custom_call.1} parent=79 // pred_check
          %p3613 = pneg %p415
        $region90: #{tpu_custom_call.1} parent=79 // pred_check_branch
          %3615 = sbr.rel (%p3613) target = $region92
        $region91: #{tpu_custom_call.1} parent=79 // pred_region
          %s3617 = ssub.s32 128, 128
          %3618 = vsyncadd [#allocation6], %s3617
          %s3620 = sshll.u32 [#allocation5], 4
          %s3621 = int_to_ptr.vmem [resolvable:$true] %s3620
          %3623 = dma.vmem_to_hbm [thread:$0]  %s3621, 128, %s15, [#allocation6]
        $region92: #{tpu_custom_call.1} parent=79 // pred_fallthru
          _
        // Predicated region
        $region93: #{tpu_custom_call.1} parent=79 // pred_check
          %p3624 = pneg %p415
        $region94: #{tpu_custom_call.1} parent=79 // pred_check_branch
          %3626 = sbr.rel (%p3624) target = $region96
        $region95: #{tpu_custom_call.1} parent=79 // pred_region
          %3627 = dma.done [#allocation6], 128
        $region96: #{tpu_custom_call.1} parent=79 // pred_fallthru
          _
      $region80: #{tpu_custom_call.1} parent=5 // pred_fallthru
        _
      %p3628 = scmp.le.s32.totalorder 2, %s22
      // Predicated region
      $region97: #{tpu_custom_call.1} parent=5 // pred_check
        %p3629 = pneg %p3628
      $region98: #{tpu_custom_call.1} parent=5 // pred_check_branch
        %3631 = sbr.rel (%p3629) target = $region100
      $region99: #{tpu_custom_call.1} parent=5 // pred_region
        %s3632 = ssub.s32 %s22, 2
      $region100: #{tpu_custom_call.1} parent=5 // pred_fallthru
        _
    $region6: #{tpu_custom_call.1} parent=1 // loop_footer
      %s26 = sadd.s32 1, %s22
    $region7: #{tpu_custom_call.1} parent=1 // loop_footer_branch
      %21 = sbr.rel target = $region3
    $region8: #{tpu_custom_call.1} parent=1 // loop_exit
      _
    %3633 = vsyncpa [#allocation6], 1
    %s3634 = scalar_lea.sflag [#allocation6], 1
    %3635 = vsyncpa %s3634, 1

</llo_original>
